<compile_context>
chip_gen: v7x
topology: tpu7x:2x2x1
jax: 0.10.0
libtpu: 0.0.40
codegen_flags: <defaults>
</compile_context>

<pallas_src>
import functools

import jax
import jax.numpy as jnp
from jax.experimental import pallas as pl
from jax.experimental.pallas import tpu as pltpu

EPS = 1e-5          # nn.BatchNorm2d default eps
LANES = 128         # channel axis stays lane-dense
NCORES = 2          # leading "parallel" grid axis (megacore split on v7x; harmless elsewhere)


def _round_up(v, m):
    return (v + m - 1) // m * m


def _cdiv(a, b):
    return -(-a // b)


def _vmem_limit_bytes():
    """~75% of this generation's physical VMEM (v5e/v6e: 128 MiB, v7x: 64 MiB/TC)."""
    cap = 64 * 1024 * 1024
    try:
        info = pltpu.get_tpu_info()
        cap = int(getattr(info, "vmem_capacity_bytes", cap) or cap)
    except Exception:
        pass
    return int(cap * 3 // 4)


def _choose_row_tiling(p, target):
    """Pick (TP, n_tiles, P_pad) for the (P, C) row tiling.

    Prefers a multiple-of-8 divisor of p (no padding); otherwise pads the tail with
    zero rows (they contribute 0 to the BN sums; inv_p always uses the true P).
    n_tiles is rounded up to a multiple of NCORES so the "parallel" axis splits evenly.
    """
    cap = max(8, (_round_up(p, 8) // NCORES) // 8 * 8)
    target = max(8, min(target, cap) // 8 * 8)
    tp = 0
    t = target
    while t >= 8:
        if p % t == 0:
            tp = t
            break
        t -= 8
    if tp < min(256, target):          # degenerate divisor -> pad the tail instead
        tp = target
    n_tiles = _round_up(_cdiv(p, tp), NCORES)
    return tp, n_tiles, n_tiles * tp


# ---------------------------------------------------------------------------
# Pallas kernels
# ---------------------------------------------------------------------------
def _cv1_stats_kernel(x_ref, w1_ref, st1_ref, *, cdt):
    """Pass 1: y1 = x @ w1 per tile; accumulate per-core sum / sum-of-squares of y1."""
    @pl.when(pl.program_id(1) == 0)
    def _init():
        st1_ref[...] = jnp.zeros_like(st1_ref)

    y1 = jnp.dot(x_ref[...].astype(cdt), w1_ref[...],
                 preferred_element_type=jnp.float32)
    st1_ref[0:1, :] += jnp.sum(y1, axis=0, keepdims=True)
    st1_ref[1:2, :] += jnp.sum(y1 * y1, axis=0, keepdims=True)


def _cv2_conv_stats_kernel(x_ref, w1_ref, sc1_ref, sh1_ref, w2_ref, msk_ref,
                           y2_ref, st2_ref, hp_ref, *, W, cdt):
    """Pass 2 (one image per step): recompute + normalize cv1 in VMEM, run the 3x3
    conv as 3 grouped-tap MXU matmuls, accumulate per-core stats of the output."""
    HW = x_ref.shape[0]
    CHP = w1_ref.shape[1]
    PAD = (hp_ref.shape[0] - HW) // 2

    @pl.when(pl.program_id(1) == 0)
    def _init():
        st2_ref[...] = jnp.zeros_like(st2_ref)
        # Vertical halo rows zeroed once per core; interior is rewritten every image.
        hp_ref[0:PAD, :] = jnp.zeros((PAD, hp_ref.shape[1]), hp_ref.dtype)
        hp_ref[PAD + HW:PAD + HW + PAD, :] = jnp.zeros((PAD, hp_ref.shape[1]),
                                                       hp_ref.dtype)

    # cv1 (1x1 conv) recomputed for this image -- h1 never round-trips through HBM.
    y1 = jnp.dot(x_ref[...].astype(cdt), w1_ref[...],
                 preferred_element_type=jnp.float32)
    h = jnp.maximum(y1 * sc1_ref[...] + sh1_ref[...], 0.0)          # (HW, CHP) f32

    # Scratch layout: row PAD+r, lane block kx holds the (kx-1)-horizontal-neighbour
    # of flat row r (0 where the neighbour wraps across an image row or the image
    # edge).  Left/right blocks are built by re-reading the middle block at +-1 row
    # offsets (the zero halo supplies the out-of-image rows) and masking once.
    hp_ref[PAD:PAD + HW, CHP:2 * CHP] = h.astype(cdt)
    hp_ref[PAD:PAD + HW, 0:CHP] = (
        hp_ref[PAD - 1:PAD + HW - 1, CHP:2 * CHP] * msk_ref[0]).astype(cdt)
    hp_ref[PAD:PAD + HW, 2 * CHP:3 * CHP] = (
        hp_ref[PAD + 1:PAD + HW + 1, CHP:2 * CHP] * msk_ref[1]).astype(cdt)

    # 3x3 / stride 1 / pad 1 conv == 3 grouped (HW, 3*CHP) @ (3*CHP, CP) matmuls
    # (vertical out-of-bounds taps read the zero halo).  Accumulate locally and
    # write y2 exactly once.
    acc = None
    for ky in range(3):
        s0 = PAD + (ky - 1) * W
        c = jnp.dot(hp_ref[s0:s0 + HW, :], w2_ref[ky],
                    preferred_element_type=jnp.float32)
        acc = c if acc is None else acc + c

    y2_ref[...] = acc
    st2_ref[0:1, :] += jnp.sum(acc, axis=0, keepdims=True)
    st2_ref[1:2, :] += jnp.sum(acc * acc, axis=0, keepdims=True)


def _bn_relu_add_kernel(y2_ref, x_ref, sc2_ref, sh2_ref, o_ref):
    """Pass 3: out = x + relu(y2 * scale2 + shift2)."""
    o_ref[...] = x_ref[...] + jnp.maximum(
        y2_ref[...] * sc2_ref[...] + sh2_ref[...], 0.0)


# ---------------------------------------------------------------------------
# Glue + wrapper
# ---------------------------------------------------------------------------
def _scale_shift(stats, gamma, beta, inv_p, cpad):
    """Fold batch statistics (sum, sumsq) + gamma/beta into y*scale + shift."""
    # TODO(synk): switch to a compensated / Welford combine if very large P shows
    # cancellation drift in E[y^2] - mean^2.
    mean = stats[0, :] * inv_p
    var = jnp.maximum(stats[1, :] * inv_p - mean * mean, 0.0)   # biased (train-mode BN)
    rstd = jax.lax.rsqrt(var + EPS)
    g = jnp.pad(gamma.astype(jnp.float32), (0, cpad - gamma.shape[0]))
    b = jnp.pad(beta.astype(jnp.float32), (0, cpad - beta.shape[0]))
    scale = g * rstd
    shift = b - mean * scale
    return scale.reshape(1, cpad), shift.reshape(1, cpad)


def bottleneck_forward(x_nchw, params, *, p_tile=1024, use_bf16=True):
    """Forward pass of Bottleneck(ch, shortcut=True, e=0.5).  Input/output NCHW f32."""
    w1, g1, b1, w2, g2, b2 = params
    N, C, H, W = x_nchw.shape
    Ch = w1.shape[0]
    HW = H * W
    P = N * HW
    assert HW % 8 == 0, f"H*W must be a multiple of 8, got {HW}"

    cdt = jnp.bfloat16 if use_bf16 else jnp.float32
    CP = _round_up(C, LANES)                 # lane-dense channel padding
    CHP = _round_up(Ch, LANES)
    PAD = max(8, _round_up(W, 8))            # vertical halo rows (sublane aligned)
    TP, n_tiles, P_pad = _choose_row_tiling(P, p_tile)
    tiles_per_core = n_tiles // NCORES
    nc2 = NCORES if (N % NCORES == 0) else 1
    imgs_per_core = N // nc2
    vmem_limit = _vmem_limit_bytes()
    inv_p = 1.0 / float(P)

    # NCHW -> NHWC -> (P_pad, CP) rows: channels lane-dense, rows zero-padded to the
    # tile grid (zero rows contribute 0 to the BN sums).
    x_nhwc = jnp.transpose(x_nchw, (0, 2, 3, 1)).astype(jnp.float32)
    x2d = jnp.pad(x_nhwc.reshape(P, C), ((0, P_pad - P), (0, CP - C)))

    # Weights in the MXU compute dtype.  w2 is laid out as 3 grouped taps:
    # w2g[ky][kx*CHP + ci, co] = w2[co, ci, ky, kx], matching the scratch layout.
    w1m = jnp.pad(w1.reshape(Ch, C).T, ((0, CP - C), (0, CHP - Ch))).astype(cdt)
    w2t = jnp.transpose(w2, (2, 3, 1, 0)).astype(jnp.float32)        # (ky, kx, ci, co)
    w2g = jnp.pad(w2t, ((0, 0), (0, 0), (0, CHP - Ch), (0, CP - C))
                  ).reshape(3, 3 * CHP, CP).astype(cdt)

    # Row masks for the horizontal taps of the flattened (H*W) layout.
    col = jnp.arange(HW, dtype=jnp.int32) % W
    masks = jnp.stack([(col > 0).astype(jnp.float32),
                       (col < W - 1).astype(jnp.float32)], axis=0)[:, :, None]  # (2,HW,1)

    # --- pass 1: cv1 batch statistics (per-core partial sums) ---------------------
    st1 = pl.pallas_call(
        functools.partial(_cv1_stats_kernel, cdt=cdt),
        out_shape=jax.ShapeDtypeStruct((NCORES * 8, CHP), jnp.float32),
        grid=(NCORES, tiles_per_core),
        in_specs=[pl.BlockSpec((TP, CP), lambda c, i: (c * tiles_per_core + i, 0)),
                  pl.BlockSpec((CP, CHP), lambda c, i: (0, 0))],      # resident weight
        out_specs=pl.BlockSpec((8, CHP), lambda c, i: (c, 0)),        # per-core accum
        compiler_params=pltpu.CompilerParams(
            dimension_semantics=("parallel", "arbitrary"),
            vmem_limit_bytes=vmem_limit),
    )(x2d, w1m)
    sc1, sh1 = _scale_shift(st1.reshape(NCORES, 8, CHP).sum(axis=0), g1, b1, inv_p, CHP)

    # --- pass 2: normalize cv1 + grouped-tap 3x3 conv + cv2 batch statistics -------
    y2_flat, st2 = pl.pallas_call(
        functools.partial(_cv2_conv_stats_kernel, W=W, cdt=cdt),
        out_shape=(jax.ShapeDtypeStruct((P_pad, CP), jnp.float32),
                   jax.ShapeDtypeStruct((nc2 * 8, CP), jnp.float32)),
        grid=(nc2, imgs_per_core),
        in_specs=[pl.BlockSpec((HW, CP), lambda c, n: (c * imgs_per_core + n, 0)),
                  pl.BlockSpec((CP, CHP), lambda c, n: (0, 0)),          # resident
                  pl.BlockSpec((1, CHP), lambda c, n: (0, 0)),           # resident
                  pl.BlockSpec((1, CHP), lambda c, n: (0, 0)),           # resident
                  pl.BlockSpec((3, 3 * CHP, CP), lambda c, n: (0, 0, 0)),  # resident
                  pl.BlockSpec((2, HW, 1), lambda c, n: (0, 0, 0))],     # resident
        out_specs=(pl.BlockSpec((HW, CP), lambda c, n: (c * imgs_per_core + n, 0)),
                   pl.BlockSpec((8, CP), lambda c, n: (c, 0))),          # per-core accum
        scratch_shapes=[pltpu.VMEM((HW + 2 * PAD, 3 * CHP), cdt)],
        compiler_params=pltpu.CompilerParams(
            dimension_semantics=("parallel", "arbitrary"),
            vmem_limit_bytes=vmem_limit),
    )(x2d, w1m, sc1, sh1, w2g, masks)
    sc2, sh2 = _scale_shift(st2.reshape(nc2, 8, CP).sum(axis=0), g2, b2, inv_p, CP)

    # --- pass 3: normalize cv2, ReLU, residual add (pure "parallel", HBM-bound) ----
    out2d = pl.pallas_call(
        _bn_relu_add_kernel,
        out_shape=jax.ShapeDtypeStruct((P_pad, CP), jnp.float32),
        grid=(n_tiles,),
        in_specs=[pl.BlockSpec((TP, CP), lambda i: (i, 0)),
                  pl.BlockSpec((TP, CP), lambda i: (i, 0)),
                  pl.BlockSpec((1, CP), lambda i: (0, 0)),
                  pl.BlockSpec((1, CP), lambda i: (0, 0))],
        out_specs=pl.BlockSpec((TP, CP), lambda i: (i, 0)),
        compiler_params=pltpu.CompilerParams(
            dimension_semantics=("parallel",),
            vmem_limit_bytes=vmem_limit),
    )(y2_flat, x2d, sc2, sh2)

    out = out2d[:P, :C].reshape(N, H, W, C)
    return jnp.transpose(out, (0, 3, 1, 2))


# ---------------------------------------------------------------------------
# Pure-JAX reference (correctness check only)
# ---------------------------------------------------------------------------
def _bn_relu_ref(y, g, b):
    mean = y.mean(axis=(0, 2, 3), keepdims=True)
    var = jnp.square(y - mean).mean(axis=(0, 2, 3), keepdims=True)
    z = (y - mean) * jax.lax.rsqrt(var + EPS) * g.reshape(1, -1, 1, 1) + b.reshape(1, -1, 1, 1)
    return jnp.maximum(z, 0.0)


def _reference(x, params):
    w1, g1, b1, w2, g2, b2 = params
    dn = ('NCHW', 'OIHW', 'NCHW')
    y1 = jax.lax.conv_general_dilated(x, w1, (1, 1), 'VALID', dimension_numbers=dn)
    y1 = _bn_relu_ref(y1, g1, b1)
    y2 = jax.lax.conv_general_dilated(y1, w2, (1, 1), ((1, 1), (1, 1)), dimension_numbers=dn)
    y2 = _bn_relu_ref(y2, g2, b2)
    return x + y2


# ---------------------------------------------------------------------------
if __name__ == "__main__":
    key = jax.random.PRNGKey(0)
    N, C, H, W = 4, 8, 16, 16        # P = 1024; exercises the per-core stat split
    e = 0.5                          # plus multi-tile / multi-image accumulation.
    Ch = int(C * e)

    kx_, k1, k2, kg1, kb1, kg2, kb2 = jax.random.split(key, 7)
    x = jax.random.normal(kx_, (N, C, H, W), dtype=jnp.float32)

    # Deterministic parameter init (shapes match nn.Conv2d / nn.BatchNorm2d).
    w1 = jax.random.normal(k1, (Ch, C, 1, 1), dtype=jnp.float32) * 0.1   # cv1.conv.weight
    w2 = jax.random.normal(k2, (C, Ch, 3, 3), dtype=jnp.float32) * 0.1   # cv2.conv.weight
    g1 = 1.0 + 0.1 * jax.random.normal(kg1, (Ch,), dtype=jnp.float32)    # cv1.bn.weight
    b1 = 0.1 * jax.random.normal(kb1, (Ch,), dtype=jnp.float32)          # cv1.bn.bias
    g2 = 1.0 + 0.1 * jax.random.normal(kg2, (C,), dtype=jnp.float32)     # cv2.bn.weight
    b2 = 0.1 * jax.random.normal(kb2, (C,), dtype=jnp.float32)           # cv2.bn.bias
    params = (w1, g1, b1, w2, g2, b2)

    ref = jax.block_until_ready(_reference(x, params))

    # Exact f32-MXU path (matches the f32 PyTorch module to ~1e-6); small p_tile to
    # also exercise multiple row tiles per core in pass 1.
    fwd_exact = jax.jit(functools.partial(bottleneck_forward, use_bf16=False, p_tile=256))
    out_exact = jax.block_until_ready(fwd_exact(x, params))
    assert out_exact.shape == (N, C, H, W)
    err_exact = float(jnp.abs(out_exact - ref).max())
    assert jnp.allclose(out_exact, ref, atol=2e-4, rtol=2e-4), err_exact

    # Default fast path: bf16 MXU operands, f32 accumulation / BN stats / residual.
    fwd_fast = jax.jit(bottleneck_forward)
    out_fast = jax.block_until_ready(fwd_fast(x, params))
    assert out_fast.shape == (N, C, H, W)
    err_fast = float(jnp.abs(out_fast - ref).max())
    assert jnp.allclose(out_fast, ref, atol=5e-2, rtol=5e-2), err_fast

    print("KERNEL_OK")
</pallas_src>

<mosaic_0001>
module attributes {stable_mosaic.version = 11 : i64} {
  func.func @_cv1_stats_kernel(%arg0: i32, %arg1: i32, %arg2: memref<256x128xf32, #tpu.memory_space<vmem>>, %arg3: memref<128x128xf32, #tpu.memory_space<vmem>>, %arg4: memref<8x128xf32, #tpu.memory_space<vmem>>) attributes {dimension_semantics = [#tpu.dimension_semantics<parallel>, #tpu.dimension_semantics<arbitrary>], iteration_bounds = array<i64: 2, 2>, scalar_prefetch = 0 : i64, scratch_operands = 0 : i64, tpu.core_type = #tpu.core_type<tc>, window_params = [{transform_indices = @transform_0, window_bounds = array<i64: 256, 128>}, {pipeline_mode = #tpu.pipeline_mode<synchronous>, transform_indices = @transform_1, window_bounds = array<i64: 128, 128>}, {transform_indices = @transform_2, window_bounds = array<i64: 8, 128>}]} {
    %c0_i32 = arith.constant 0 : i32
    %0 = arith.cmpi eq, %arg1, %c0_i32 : i32
    %1 = arith.extui %0 : i1 to i32
    %c0_i32_0 = arith.constant 0 : i32
    %2 = arith.cmpi ne, %1, %c0_i32_0 : i32
    scf.if %2 {
      %cst_13 = arith.constant 0.000000e+00 : f32
      %17 = vector.broadcast %cst_13 : f32 to vector<8x128xf32>
      %c0_14 = arith.constant 0 : index
      %c0_15 = arith.constant 0 : index
      %18 = vector.load %arg4[%c0_14, %c0_15] : memref<8x128xf32, #tpu.memory_space<vmem>>, vector<8x128xf32>
      tpu.vector_store %arg4[%c0_14, %c0_15], %17 {strides = array<i32>} : memref<8x128xf32, #tpu.memory_space<vmem>>, vector<8x128xf32>,
    } else {
    }
    %c0 = arith.constant 0 : index
    %c0_1 = arith.constant 0 : index
    %3 = vector.load %arg2[%c0, %c0_1] : memref<256x128xf32, #tpu.memory_space<vmem>>, vector<256x128xf32>
    %c0_2 = arith.constant 0 : index
    %c0_3 = arith.constant 0 : index
    %4 = vector.load %arg3[%c0_2, %c0_3] : memref<128x128xf32, #tpu.memory_space<vmem>>, vector<128x128xf32>
    %cst = arith.constant dense<0.000000e+00> : vector<256x128xf32>
    %5 = tpu.matmul %3, %4, %cst {dimension_numbers = #tpu.dot_dimension_numbers<[1], [0], [0], [1], [0, 0, 1, 1], [], []>} : vector<256x128xf32>, vector<128x128xf32>, vector<256x128xf32> -> vector<256x128xf32>
    %c0_4 = arith.constant 0 : index
    %c0_5 = arith.constant 0 : index
    %6 = vector.load %arg4[%c0_4, %c0_5] : memref<8x128xf32, #tpu.memory_space<vmem>>, vector<1x128xf32>
    %cst_6 = arith.constant dense<0.000000e+00> : vector<128xf32>
    %7 = vector.multi_reduction <add>, %5, %cst_6 [0] : vector<256x128xf32> to vector<128xf32>
    %8 = vector.shape_cast %7 : vector<128xf32> to vector<1x128xf32>
    %9 = arith.addf %6, %8 : vector<1x128xf32>
    %c0_7 = arith.constant 0 : index
    %c0_8 = arith.constant 0 : index
    %10 = vector.load %arg4[%c0_7, %c0_8] : memref<8x128xf32, #tpu.memory_space<vmem>>, vector<1x128xf32>
    tpu.vector_store %arg4[%c0_7, %c0_8], %9 {strides = array<i32>} : memref<8x128xf32, #tpu.memory_space<vmem>>, vector<1x128xf32>,
    %c1 = arith.constant 1 : index
    %c0_9 = arith.constant 0 : index
    %11 = vector.load %arg4[%c1, %c0_9] : memref<8x128xf32, #tpu.memory_space<vmem>>, vector<1x128xf32>
    %12 = arith.mulf %5, %5 : vector<256x128xf32>
    %cst_10 = arith.constant dense<0.000000e+00> : vector<128xf32>
    %13 = vector.multi_reduction <add>, %12, %cst_10 [0] : vector<256x128xf32> to vector<128xf32>
    %14 = vector.shape_cast %13 : vector<128xf32> to vector<1x128xf32>
    %15 = arith.addf %11, %14 : vector<1x128xf32>
    %c1_11 = arith.constant 1 : index
    %c0_12 = arith.constant 0 : index
    %16 = vector.load %arg4[%c1_11, %c0_12] : memref<8x128xf32, #tpu.memory_space<vmem>>, vector<1x128xf32>
    tpu.vector_store %arg4[%c1_11, %c0_12], %15 {strides = array<i32>} : memref<8x128xf32, #tpu.memory_space<vmem>>, vector<1x128xf32>,
    return
  }
  func.func @transform_0(%arg0: i32, %arg1: i32) -> (i32, i32) {
    %c2_i32 = arith.constant 2 : i32
    %0 = arith.muli %arg0, %c2_i32 : i32
    %1 = arith.addi %0, %arg1 : i32
    %c0_i32 = arith.constant 0 : i32
    %c0_i32_0 = arith.constant 0 : i32
    return %1, %c0_i32 : i32, i32
  }
  func.func @transform_1(%arg0: i32, %arg1: i32) -> (i32, i32) {
    %c0_i32 = arith.constant 0 : i32
    %c0_i32_0 = arith.constant 0 : i32
    %c0_i32_1 = arith.constant 0 : i32
    return %c0_i32, %c0_i32_0 : i32, i32
  }
  func.func @transform_2(%arg0: i32, %arg1: i32) -> (i32, i32) {
    %c0_i32 = arith.constant 0 : i32
    %c0_i32_0 = arith.constant 0 : i32
    return %arg0, %c0_i32 : i32, i32
  }
}

module attributes {stable_mosaic.version = 11 : i64} {
  func.func @_cv2_conv_stats_kernel(%arg0: i32, %arg1: i32, %arg2: memref<256x128xf32, #tpu.memory_space<vmem>>, %arg3: memref<128x128xf32, #tpu.memory_space<vmem>>, %arg4: memref<1x128xf32, #tpu.memory_space<vmem>>, %arg5: memref<1x128xf32, #tpu.memory_space<vmem>>, %arg6: memref<3x384x128xf32, #tpu.memory_space<vmem>>, %arg7: memref<2x256x1xf32, #tpu.memory_space<vmem>>, %arg8: memref<256x128xf32, #tpu.memory_space<vmem>>, %arg9: memref<8x128xf32, #tpu.memory_space<vmem>>, %arg10: memref<288x384xf32, #tpu.memory_space<vmem>>) attributes {dimension_semantics = [#tpu.dimension_semantics<parallel>, #tpu.dimension_semantics<arbitrary>], iteration_bounds = array<i64: 2, 2>, scalar_prefetch = 0 : i64, scratch_operands = 1 : i64, tpu.core_type = #tpu.core_type<tc>, window_params = [{transform_indices = @transform_0, window_bounds = array<i64: 256, 128>}, {pipeline_mode = #tpu.pipeline_mode<synchronous>, transform_indices = @transform_1, window_bounds = array<i64: 128, 128>}, {pipeline_mode = #tpu.pipeline_mode<synchronous>, transform_indices = @transform_2, window_bounds = array<i64: 1, 128>}, {pipeline_mode = #tpu.pipeline_mode<synchronous>, transform_indices = @transform_3, window_bounds = array<i64: 1, 128>}, {pipeline_mode = #tpu.pipeline_mode<synchronous>, transform_indices = @transform_4, window_bounds = array<i64: 3, 384, 128>}, {pipeline_mode = #tpu.pipeline_mode<synchronous>, transform_indices = @transform_5, window_bounds = array<i64: 2, 256, 1>}, {transform_indices = @transform_6, window_bounds = array<i64: 256, 128>}, {transform_indices = @transform_7, window_bounds = array<i64: 8, 128>}]} {
    %c0_i32 = arith.constant 0 : i32
    %0 = arith.cmpi eq, %arg1, %c0_i32 : i32
    %1 = arith.extui %0 : i1 to i32
    %c0_i32_0 = arith.constant 0 : i32
    %2 = arith.cmpi ne, %1, %c0_i32_0 : i32
    scf.if %2 {
      %cst_47 = arith.constant 0.000000e+00 : f32
      %53 = vector.broadcast %cst_47 : f32 to vector<8x128xf32>
      %c0_48 = arith.constant 0 : index
      %c0_49 = arith.constant 0 : index
      %54 = vector.load %arg9[%c0_48, %c0_49] : memref<8x128xf32, #tpu.memory_space<vmem>>, vector<8x128xf32>
      tpu.vector_store %arg9[%c0_48, %c0_49], %53 {strides = array<i32>} : memref<8x128xf32, #tpu.memory_space<vmem>>, vector<8x128xf32>,
      %cst_50 = arith.constant 0.000000e+00 : f32
      %55 = vector.broadcast %cst_50 : f32 to vector<16x384xf32>
      %c0_51 = arith.constant 0 : index
      %c0_52 = arith.constant 0 : index
      %56 = vector.load %arg10[%c0_51, %c0_52] : memref<288x384xf32, #tpu.memory_space<vmem>>, vector<16x384xf32>
      tpu.vector_store %arg10[%c0_51, %c0_52], %55 {strides = array<i32>} : memref<288x384xf32, #tpu.memory_space<vmem>>, vector<16x384xf32>,
      %cst_53 = arith.constant 0.000000e+00 : f32
      %57 = vector.broadcast %cst_53 : f32 to vector<16x384xf32>
      %c272 = arith.constant 272 : index
      %c0_54 = arith.constant 0 : index
      %58 = vector.load %arg10[%c272, %c0_54] : memref<288x384xf32, #tpu.memory_space<vmem>>, vector<16x384xf32>
      tpu.vector_store %arg10[%c272, %c0_54], %57 {strides = array<i32>} : memref<288x384xf32, #tpu.memory_space<vmem>>, vector<16x384xf32>,
    } else {
    }
    %c0 = arith.constant 0 : index
    %c0_1 = arith.constant 0 : index
    %3 = vector.load %arg2[%c0, %c0_1] : memref<256x128xf32, #tpu.memory_space<vmem>>, vector<256x128xf32>
    %c0_2 = arith.constant 0 : index
    %c0_3 = arith.constant 0 : index
    %4 = vector.load %arg3[%c0_2, %c0_3] : memref<128x128xf32, #tpu.memory_space<vmem>>, vector<128x128xf32>
    %cst = arith.constant dense<0.000000e+00> : vector<256x128xf32>
    %5 = tpu.matmul %3, %4, %cst {dimension_numbers = #tpu.dot_dimension_numbers<[1], [0], [0], [1], [0, 0, 1, 1], [], []>} : vector<256x128xf32>, vector<128x128xf32>, vector<256x128xf32> -> vector<256x128xf32>
    %c0_4 = arith.constant 0 : index
    %c0_5 = arith.constant 0 : index
    %6 = vector.load %arg4[%c0_4, %c0_5] : memref<1x128xf32, #tpu.memory_space<vmem>>, vector<1x128xf32>
    %7 = vector.broadcast %6 : vector<1x128xf32> to vector<256x128xf32>
    %8 = arith.mulf %5, %7 : vector<256x128xf32>
    %c0_6 = arith.constant 0 : index
    %c0_7 = arith.constant 0 : index
    %9 = vector.load %arg5[%c0_6, %c0_7] : memref<1x128xf32, #tpu.memory_space<vmem>>, vector<1x128xf32>
    %10 = vector.broadcast %9 : vector<1x128xf32> to vector<256x128xf32>
    %11 = arith.addf %8, %10 : vector<256x128xf32>
    %cst_8 = arith.constant 0.000000e+00 : f32
    %12 = vector.broadcast %cst_8 : f32 to vector<256x128xf32>
    %13 = arith.maximumf %11, %12 : vector<256x128xf32>
    %c16 = arith.constant 16 : index
    %c128 = arith.constant 128 : index
    %14 = vector.load %arg10[%c16, %c128] : memref<288x384xf32, #tpu.memory_space<vmem>>, vector<256x128xf32>
    tpu.vector_store %arg10[%c16, %c128], %13 {strides = array<i32>} : memref<288x384xf32, #tpu.memory_space<vmem>>, vector<256x128xf32>,
    %c15 = arith.constant 15 : index
    %c128_9 = arith.constant 128 : index
    %15 = vector.load %arg10[%c15, %c128_9] : memref<288x384xf32, #tpu.memory_space<vmem>>, vector<256x128xf32>
    %c0_10 = arith.constant 0 : index
    %c0_11 = arith.constant 0 : index
    %c0_12 = arith.constant 0 : index
    %16 = vector.load %arg7[%c0_10, %c0_11, %c0_12] : memref<2x256x1xf32, #tpu.memory_space<vmem>>, vector<1x256x1xf32>
    %17 = vector.shape_cast %16 : vector<1x256x1xf32> to vector<256x1xf32>
    %18 = vector.broadcast %17 : vector<256x1xf32> to vector<256x128xf32>
    %19 = arith.mulf %15, %18 : vector<256x128xf32>
    %c16_13 = arith.constant 16 : index
    %c0_14 = arith.constant 0 : index
    %20 = vector.load %arg10[%c16_13, %c0_14] : memref<288x384xf32, #tpu.memory_space<vmem>>, vector<256x128xf32>
    tpu.vector_store %arg10[%c16_13, %c0_14], %19 {strides = array<i32>} : memref<288x384xf32, #tpu.memory_space<vmem>>, vector<256x128xf32>,
    %c17 = arith.constant 17 : index
    %c128_15 = arith.constant 128 : index
    %21 = vector.load %arg10[%c17, %c128_15] : memref<288x384xf32, #tpu.memory_space<vmem>>, vector<256x128xf32>
    %c1 = arith.constant 1 : index
    %c0_16 = arith.constant 0 : index
    %c0_17 = arith.constant 0 : index
    %22 = vector.load %arg7[%c1, %c0_16, %c0_17] : memref<2x256x1xf32, #tpu.memory_space<vmem>>, vector<1x256x1xf32>
    %23 = vector.shape_cast %22 : vector<1x256x1xf32> to vector<256x1xf32>
    %24 = vector.broadcast %23 : vector<256x1xf32> to vector<256x128xf32>
    %25 = arith.mulf %21, %24 : vector<256x128xf32>
    %c16_18 = arith.constant 16 : index
    %c256 = arith.constant 256 : index
    %26 = vector.load %arg10[%c16_18, %c256] : memref<288x384xf32, #tpu.memory_space<vmem>>, vector<256x128xf32>
    tpu.vector_store %arg10[%c16_18, %c256], %25 {strides = array<i32>} : memref<288x384xf32, #tpu.memory_space<vmem>>, vector<256x128xf32>,
    %c0_19 = arith.constant 0 : index
    %c0_20 = arith.constant 0 : index
    %27 = vector.load %arg10[%c0_19, %c0_20] : memref<288x384xf32, #tpu.memory_space<vmem>>, vector<256x384xf32>
    %c0_21 = arith.constant 0 : index
    %c0_22 = arith.constant 0 : index
    %c0_23 = arith.constant 0 : index
    %28 = vector.load %arg6[%c0_21, %c0_22, %c0_23] : memref<3x384x128xf32, #tpu.memory_space<vmem>>, vector<1x384x128xf32>
    %29 = vector.shape_cast %28 : vector<1x384x128xf32> to vector<384x128xf32>
    %cst_24 = arith.constant dense<0.000000e+00> : vector<256x128xf32>
    %30 = tpu.matmul %27, %29, %cst_24 {dimension_numbers = #tpu.dot_dimension_numbers<[1], [0], [0], [1], [0, 0, 1, 1], [], []>} : vector<256x384xf32>, vector<384x128xf32>, vector<256x128xf32> -> vector<256x128xf32>
    %c16_25 = arith.constant 16 : index
    %c0_26 = arith.constant 0 : index
    %31 = vector.load %arg10[%c16_25, %c0_26] : memref<288x384xf32, #tpu.memory_space<vmem>>, vector<256x384xf32>
    %c1_27 = arith.constant 1 : index
    %c0_28 = arith.constant 0 : index
    %c0_29 = arith.constant 0 : index
    %32 = vector.load %arg6[%c1_27, %c0_28, %c0_29] : memref<3x384x128xf32, #tpu.memory_space<vmem>>, vector<1x384x128xf32>
    %33 = vector.shape_cast %32 : vector<1x384x128xf32> to vector<384x128xf32>
    %cst_30 = arith.constant dense<0.000000e+00> : vector<256x128xf32>
    %34 = tpu.matmul %31, %33, %cst_30 {dimension_numbers = #tpu.dot_dimension_numbers<[1], [0], [0], [1], [0, 0, 1, 1], [], []>} : vector<256x384xf32>, vector<384x128xf32>, vector<256x128xf32> -> vector<256x128xf32>
    %35 = arith.addf %30, %34 : vector<256x128xf32>
    %c32 = arith.constant 32 : index
    %c0_31 = arith.constant 0 : index
    %36 = vector.load %arg10[%c32, %c0_31] : memref<288x384xf32, #tpu.memory_space<vmem>>, vector<256x384xf32>
    %c2 = arith.constant 2 : index
    %c0_32 = arith.constant 0 : index
    %c0_33 = arith.constant 0 : index
    %37 = vector.load %arg6[%c2, %c0_32, %c0_33] : memref<3x384x128xf32, #tpu.memory_space<vmem>>, vector<1x384x128xf32>
    %38 = vector.shape_cast %37 : vector<1x384x128xf32> to vector<384x128xf32>
    %cst_34 = arith.constant dense<0.000000e+00> : vector<256x128xf32>
    %39 = tpu.matmul %36, %38, %cst_34 {dimension_numbers = #tpu.dot_dimension_numbers<[1], [0], [0], [1], [0, 0, 1, 1], [], []>} : vector<256x384xf32>, vector<384x128xf32>, vector<256x128xf32> -> vector<256x128xf32>
    %40 = arith.addf %35, %39 : vector<256x128xf32>
    %c0_35 = arith.constant 0 : index
    %c0_36 = arith.constant 0 : index
    %41 = vector.load %arg8[%c0_35, %c0_36] : memref<256x128xf32, #tpu.memory_space<vmem>>, vector<256x128xf32>
    tpu.vector_store %arg8[%c0_35, %c0_36], %40 {strides = array<i32>} : memref<256x128xf32, #tpu.memory_space<vmem>>, vector<256x128xf32>,
    %c0_37 = arith.constant 0 : index
    %c0_38 = arith.constant 0 : index
    %42 = vector.load %arg9[%c0_37, %c0_38] : memref<8x128xf32, #tpu.memory_space<vmem>>, vector<1x128xf32>
    %cst_39 = arith.constant dense<0.000000e+00> : vector<128xf32>
    %43 = vector.multi_reduction <add>, %40, %cst_39 [0] : vector<256x128xf32> to vector<128xf32>
    %44 = vector.shape_cast %43 : vector<128xf32> to vector<1x128xf32>
    %45 = arith.addf %42, %44 : vector<1x128xf32>
    %c0_40 = arith.constant 0 : index
    %c0_41 = arith.constant 0 : index
    %46 = vector.load %arg9[%c0_40, %c0_41] : memref<8x128xf32, #tpu.memory_space<vmem>>, vector<1x128xf32>
    tpu.vector_store %arg9[%c0_40, %c0_41], %45 {strides = array<i32>} : memref<8x128xf32, #tpu.memory_space<vmem>>, vector<1x128xf32>,
    %c1_42 = arith.constant 1 : index
    %c0_43 = arith.constant 0 : index
    %47 = vector.load %arg9[%c1_42, %c0_43] : memref<8x128xf32, #tpu.memory_space<vmem>>, vector<1x128xf32>
    %48 = arith.mulf %40, %40 : vector<256x128xf32>
    %cst_44 = arith.constant dense<0.000000e+00> : vector<128xf32>
    %49 = vector.multi_reduction <add>, %48, %cst_44 [0] : vector<256x128xf32> to vector<128xf32>
    %50 = vector.shape_cast %49 : vector<128xf32> to vector<1x128xf32>
    %51 = arith.addf %47, %50 : vector<1x128xf32>
    %c1_45 = arith.constant 1 : index
    %c0_46 = arith.constant 0 : index
    %52 = vector.load %arg9[%c1_45, %c0_46] : memref<8x128xf32, #tpu.memory_space<vmem>>, vector<1x128xf32>
    tpu.vector_store %arg9[%c1_45, %c0_46], %51 {strides = array<i32>} : memref<8x128xf32, #tpu.memory_space<vmem>>, vector<1x128xf32>,
    return
  }
  func.func @transform_0(%arg0: i32, %arg1: i32) -> (i32, i32) {
    %c2_i32 = arith.constant 2 : i32
    %0 = arith.muli %arg0, %c2_i32 : i32
    %1 = arith.addi %0, %arg1 : i32
    %c0_i32 = arith.constant 0 : i32
    %c0_i32_0 = arith.constant 0 : i32
    return %1, %c0_i32 : i32, i32
  }
  func.func @transform_1(%arg0: i32, %arg1: i32) -> (i32, i32) {
    %c0_i32 = arith.constant 0 : i32
    %c0_i32_0 = arith.constant 0 : i32
    %c0_i32_1 = arith.constant 0 : i32
    return %c0_i32, %c0_i32_0 : i32, i32
  }
  func.func @transform_2(%arg0: i32, %arg1: i32) -> (i32, i32) {
    %c0_i32 = arith.constant 0 : i32
    %c0_i32_0 = arith.constant 0 : i32
    %c0_i32_1 = arith.constant 0 : i32
    return %c0_i32, %c0_i32_0 : i32, i32
  }
  func.func @transform_3(%arg0: i32, %arg1: i32) -> (i32, i32) {
    %c0_i32 = arith.constant 0 : i32
    %c0_i32_0 = arith.constant 0 : i32
    %c0_i32_1 = arith.constant 0 : i32
    return %c0_i32, %c0_i32_0 : i32, i32
  }
  func.func @transform_4(%arg0: i32, %arg1: i32) -> (i32, i32, i32) {
    %c0_i32 = arith.constant 0 : i32
    %c0_i32_0 = arith.constant 0 : i32
    %c0_i32_1 = arith.constant 0 : i32
    %c0_i32_2 = arith.constant 0 : i32
    return %c0_i32, %c0_i32_0, %c0_i32_1 : i32, i32, i32
  }
  func.func @transform_5(%arg0: i32, %arg1: i32) -> (i32, i32, i32) {
    %c0_i32 = arith.constant 0 : i32
    %c0_i32_0 = arith.constant 0 : i32
    %c0_i32_1 = arith.constant 0 : i32
    %c0_i32_2 = arith.constant 0 : i32
    return %c0_i32, %c0_i32_0, %c0_i32_1 : i32, i32, i32
  }
  func.func @transform_6(%arg0: i32, %arg1: i32) -> (i32, i32) {
    %c2_i32 = arith.constant 2 : i32
    %0 = arith.muli %arg0, %c2_i32 : i32
    %1 = arith.addi %0, %arg1 : i32
    %c0_i32 = arith.constant 0 : i32
    %c0_i32_0 = arith.constant 0 : i32
    return %1, %c0_i32 : i32, i32
  }
  func.func @transform_7(%arg0: i32, %arg1: i32) -> (i32, i32) {
    %c0_i32 = arith.constant 0 : i32
    %c0_i32_0 = arith.constant 0 : i32
    return %arg0, %c0_i32 : i32, i32
  }
}

module attributes {stable_mosaic.version = 11 : i64} {
  func.func @_bn_relu_add_kernel(%arg0: i32, %arg1: memref<256x128xf32, #tpu.memory_space<vmem>>, %arg2: memref<256x128xf32, #tpu.memory_space<vmem>>, %arg3: memref<1x128xf32, #tpu.memory_space<vmem>>, %arg4: memref<1x128xf32, #tpu.memory_space<vmem>>, %arg5: memref<256x128xf32, #tpu.memory_space<vmem>>) attributes {dimension_semantics = [#tpu.dimension_semantics<parallel>], iteration_bounds = array<i64: 4>, scalar_prefetch = 0 : i64, scratch_operands = 0 : i64, tpu.core_type = #tpu.core_type<tc>, window_params = [{transform_indices = @transform_0, window_bounds = array<i64: 256, 128>}, {transform_indices = @transform_1, window_bounds = array<i64: 256, 128>}, {pipeline_mode = #tpu.pipeline_mode<synchronous>, transform_indices = @transform_2, window_bounds = array<i64: 1, 128>}, {pipeline_mode = #tpu.pipeline_mode<synchronous>, transform_indices = @transform_3, window_bounds = array<i64: 1, 128>}, {transform_indices = @transform_4, window_bounds = array<i64: 256, 128>}]} {
    %c0 = arith.constant 0 : index
    %c0_0 = arith.constant 0 : index
    %0 = vector.load %arg2[%c0, %c0_0] : memref<256x128xf32, #tpu.memory_space<vmem>>, vector<256x128xf32>
    %c0_1 = arith.constant 0 : index
    %c0_2 = arith.constant 0 : index
    %1 = vector.load %arg1[%c0_1, %c0_2] : memref<256x128xf32, #tpu.memory_space<vmem>>, vector<256x128xf32>
    %c0_3 = arith.constant 0 : index
    %c0_4 = arith.constant 0 : index
    %2 = vector.load %arg3[%c0_3, %c0_4] : memref<1x128xf32, #tpu.memory_space<vmem>>, vector<1x128xf32>
    %3 = vector.broadcast %2 : vector<1x128xf32> to vector<256x128xf32>
    %4 = arith.mulf %1, %3 : vector<256x128xf32>
    %c0_5 = arith.constant 0 : index
    %c0_6 = arith.constant 0 : index
    %5 = vector.load %arg4[%c0_5, %c0_6] : memref<1x128xf32, #tpu.memory_space<vmem>>, vector<1x128xf32>
    %6 = vector.broadcast %5 : vector<1x128xf32> to vector<256x128xf32>
    %7 = arith.addf %4, %6 : vector<256x128xf32>
    %cst = arith.constant 0.000000e+00 : f32
    %8 = vector.broadcast %cst : f32 to vector<256x128xf32>
    %9 = arith.maximumf %7, %8 : vector<256x128xf32>
    %10 = arith.addf %0, %9 : vector<256x128xf32>
    %c0_7 = arith.constant 0 : index
    %c0_8 = arith.constant 0 : index
    %11 = vector.load %arg5[%c0_7, %c0_8] : memref<256x128xf32, #tpu.memory_space<vmem>>, vector<256x128xf32>
    tpu.vector_store %arg5[%c0_7, %c0_8], %10 {strides = array<i32>} : memref<256x128xf32, #tpu.memory_space<vmem>>, vector<256x128xf32>,
    return
  }
  func.func @transform_0(%arg0: i32) -> (i32, i32) {
    %c0_i32 = arith.constant 0 : i32
    %c0_i32_0 = arith.constant 0 : i32
    return %arg0, %c0_i32 : i32, i32
  }
  func.func @transform_1(%arg0: i32) -> (i32, i32) {
    %c0_i32 = arith.constant 0 : i32
    %c0_i32_0 = arith.constant 0 : i32
    return %arg0, %c0_i32 : i32, i32
  }
  func.func @transform_2(%arg0: i32) -> (i32, i32) {
    %c0_i32 = arith.constant 0 : i32
    %c0_i32_0 = arith.constant 0 : i32
    %c0_i32_1 = arith.constant 0 : i32
    return %c0_i32, %c0_i32_0 : i32, i32
  }
  func.func @transform_3(%arg0: i32) -> (i32, i32) {
    %c0_i32 = arith.constant 0 : i32
    %c0_i32_0 = arith.constant 0 : i32
    %c0_i32_1 = arith.constant 0 : i32
    return %c0_i32, %c0_i32_0 : i32, i32
  }
  func.func @transform_4(%arg0: i32) -> (i32, i32) {
    %c0_i32 = arith.constant 0 : i32
    %c0_i32_0 = arith.constant 0 : i32
    return %arg0, %c0_i32 : i32, i32
  }
}

</mosaic_0001>

<llo_original>
// kernel: bottleneck_forward.3
$region0: #{bottleneck_forward.3}
  #allocation0 [shape = 'u32[]', space=smem, size = 0x4, offset = 0x4, fixed_abs, tag = 'smem constant byte address 0x4 - core index']
  #allocation1 [shape = 'u32[144,128]{1,0:T(1,128)}', space=vmem, size = 0x12000, scoped, tag = 'internal scratch']
  %s0 = inlined_call_operand.vmem [shape: f32[1024,128], index: 0, kind: input, shape index: {}]
  %s1 = inlined_call_operand.vmem [shape: f32[128,128], index: 1, kind: input, shape index: {}]
  %s2 = inlined_call_operand.vmem [shape: f32[16,128], index: 2, kind: output, shape index: {}]
  %s3 = sld [smem:[#allocation0]]
  $region45: #{bottleneck_forward.3} parent=0
    _
  %s5 = ssub.s32 1, %s3
  %s6 = scalar_select 0, %s5, %s3
  loop: start=0, step=1, limit=6
  $region2: #{bottleneck_forward.3} parent=0 // loop_pre_header
    _
  $region3: #{bottleneck_forward.3} parent=0 // loop_header
    %s8 = sphi 0, %s12
    %p9 = scmp.ge.s32.totalorder %s8, 6
    %s15 = sphi 0, %s27
    %s16 = sphi 0, %s23
    %s17 = sphi 0, %s15
    %s18 = sphi 0, %s16
    %s19 = sphi 0, %s17
    %s20 = sphi 0, %s18
    %s34 = sphi 0, %s36
    %s37 = sphi 0, %s34
    %s38 = sphi 0, %s37
    %s54 = sphi 0, %s38
    %s58 = sphi 0, %s58
    %s60 = sphi 0, %s58
    %s61 = sphi 0, %s60
    %s75 = sphi 0, %s61
    %s81 = sphi 0, %s83
    %s84 = sphi 0, %s81
    %s85 = sphi 0, %s84
    %s101 = sphi 0, %s85
  $region4: #{bottleneck_forward.3} parent=0 // loop_header_branch
    %11 = sbr.rel (%p9) target = $region8
  $region5: #{bottleneck_forward.3} parent=0 // loop_body
    %s13 = ssub.s32 %s8, 1
    %s14 = ssub.s32 %s8, 2
    %s21 = sadd.s32 1, %s16
    %p22 = scmp.ge.s32.totalorder %s21, 2
    %s23 = scalar_select %p22, 0, %s21
    %s24 = sadd.s32 1, %s15
    %s25 = scalar_select %p22, %s24, %s15
    %p26 = scmp.ge.s32.totalorder %s25, 2
    %s27 = scalar_select %p26, 0, %s25
    %s28 = smul.u32 %s15, 2
    %s29 = sadd.s32 %s28, %s16
    %s30 = smul.u32 %s27, 2
    %s31 = sadd.s32 %s30, %s23
    %s32 = ssub.s32 %s29, %s31
    %p33 = scmp.eq.s32.totalorder %s32, 0
    %s35 = sadd.s32 %s34, 1
    %s36 = scalar_select %p33, %s34, %s35
    %p39 = pneg %p33
    %p40 = scmp.eq.s32.totalorder %s8, 3
    %p41 = por %p39, %p40
    %p42 = scmp.ne.s32.totalorder %s34, %s37
    %p43 = scmp.eq.s32.totalorder %s8, 0
    %p44 = por %p42, %p43
    %p45 = scmp.ne.s32.totalorder %s34, %s37
    %p46 = scmp.eq.s32.totalorder %s13, 3
    %p47 = por %p45, %p46
    %p48 = scmp.ne.s32.totalorder %s37, %s38
    %p49 = scmp.eq.s32.totalorder %s13, 0
    %p50 = por %p48, %p49
    %p51 = scmp.ne.s32.totalorder %s37, %s38
    %p52 = scmp.eq.s32.totalorder %s14, 3
    %p53 = por %p51, %p52
    %p55 = scmp.ne.s32.totalorder %s38, %s54
    %p56 = scmp.eq.s32.totalorder %s14, 0
    %p57 = por %p55, %p56
    %s59 = sadd.s32 %s58, 1
    %p62 = scmp.eq.s32.totalorder %s8, 3
    %p63 = scmp.ne.s32.totalorder %s58, %s60
    %p64 = scmp.eq.s32.totalorder %s8, 0
    %p65 = por %p63, %p64
    %p66 = scmp.ne.s32.totalorder %s58, %s60
    %p67 = scmp.eq.s32.totalorder %s13, 3
    %p68 = por %p66, %p67
    %p69 = scmp.ne.s32.totalorder %s60, %s61
    %p70 = scmp.eq.s32.totalorder %s13, 0
    %p71 = por %p69, %p70
    %p72 = scmp.ne.s32.totalorder %s60, %s61
    %p73 = scmp.eq.s32.totalorder %s14, 3
    %p74 = por %p72, %p73
    %p76 = scmp.ne.s32.totalorder %s61, %s75
    %p77 = scmp.eq.s32.totalorder %s14, 0
    %p78 = por %p76, %p77
    %s79 = ssub.s32 %s15, %s27
    %p80 = scmp.eq.s32.totalorder %s79, 0
    %s82 = sadd.s32 %s81, 1
    %s83 = scalar_select %p80, %s81, %s82
    %p86 = pneg %p80
    %p87 = scmp.eq.s32.totalorder %s8, 3
    %p88 = por %p86, %p87
    %p89 = scmp.ne.s32.totalorder %s81, %s84
    %p90 = scmp.eq.s32.totalorder %s8, 0
    %p91 = por %p89, %p90
    %p92 = scmp.ne.s32.totalorder %s81, %s84
    %p93 = scmp.eq.s32.totalorder %s13, 3
    %p94 = por %p92, %p93
    %p95 = scmp.ne.s32.totalorder %s84, %s85
    %p96 = scmp.eq.s32.totalorder %s13, 0
    %p97 = por %p95, %p96
    %p98 = scmp.ne.s32.totalorder %s84, %s85
    %p99 = scmp.eq.s32.totalorder %s14, 3
    %p100 = por %p98, %p99
    %p102 = scmp.ne.s32.totalorder %s85, %s101
    %p103 = scmp.eq.s32.totalorder %s14, 0
    %p104 = por %p102, %p103
    %p105 = scmp.le.s32.totalorder 1, %s8
    %p106 = scmp.lt.s32.totalorder %s8, 5
    %p107 = pnand %p105, %p106
    %p108 = pneg %p107
    // Predicated region
    $region9: #{bottleneck_forward.3} parent=5 // pred_check
      _
    $region10: #{bottleneck_forward.3} parent=5 // pred_check_branch
      %110 = sbr.rel (%p107) target = $region12
    $region11: #{bottleneck_forward.3} parent=5 // pred_region
      %s111 = ssub.s32 %s8, 1
      // Predicated region
      $region13: #{bottleneck_forward.3} parent=11 // pred_check
        %p112 = pneg %p71
      $region14: #{bottleneck_forward.3} parent=11 // pred_check_branch
        %114 = sbr.rel (%p112) target = $region16
      $region15: #{bottleneck_forward.3} parent=11 // pred_region
        _
      $region16: #{bottleneck_forward.3} parent=11 // pred_fallthru
        _
    $region12: #{bottleneck_forward.3} parent=5 // pred_fallthru
      _
    %p115 = scmp.lt.s32.totalorder %s8, 4
    // Predicated region
    $region17: #{bottleneck_forward.3} parent=5 // pred_check
      %p116 = pneg %p115
    $region18: #{bottleneck_forward.3} parent=5 // pred_check_branch
      %118 = sbr.rel (%p116) target = $region20
    $region19: #{bottleneck_forward.3} parent=5 // pred_region
      // Predicated region
      $region21: #{bottleneck_forward.3} parent=19 // pred_check
        %p119 = pneg %p44
      $region22: #{bottleneck_forward.3} parent=19 // pred_check_branch
        %121 = sbr.rel (%p119) target = $region24
      $region23: #{bottleneck_forward.3} parent=19 // pred_region
        %s122 = smul.u32 %s15, 2
        %s123 = sadd.s32 %s122, %s16
        %s124 = smul.u32 32, %s123
        %p125 = scmp.lt.s32.totalorder %s124, 127
        %s126 = scalar_select %p125, %s124, 127
        %s127 = smul.addr %s126, 8
        %s128 = scalar_lea.vmem %s0, %s127
        %s129 = smul.u32 %s15, 2
        %s130 = sadd.s32 %s129, %s16
        %s131 = smul.u32 32, %s130
      $region24: #{bottleneck_forward.3} parent=19 // pred_fallthru
        _
    $region20: #{bottleneck_forward.3} parent=5 // pred_fallthru
      _
    %p132 = scmp.le.s32.totalorder 1, %s8
    %p133 = scmp.lt.s32.totalorder %s8, 5
    %p134 = pnand %p132, %p133
    %p135 = pneg %p134
    // Predicated region
    $region25: #{bottleneck_forward.3} parent=5 // pred_check
      _
    $region26: #{bottleneck_forward.3} parent=5 // pred_check_branch
      %137 = sbr.rel (%p134) target = $region28
    $region27: #{bottleneck_forward.3} parent=5 // pred_region
      %s138 = ssub.s32 %s8, 1
      %s139 = smul.u32 %s17, 2
      %s140 = sadd.s32 %s139, %s18
      %s141 = smul.u32 32, %s140
      %p142 = scmp.lt.s32.totalorder %s141, 127
      %s143 = scalar_select %p142, %s141, 127
      %s144 = smul.addr %s143, 8
      %s145 = scalar_lea.vmem %s0, %s144
      %p146 = pneg %p50
      %p147 = pneg %p47
      %p148 = pneg %p71
      %p149 = pneg %p68
      %p150 = pneg %p97
      %p151 = pneg %p94
      %p152 = scmp.lt.s32.totalorder %s17, 1
      %s153 = scalar_select %p152, %s17, 1
      %s154 = smul.addr %s153, 8
      %s155 = scalar_lea.vmem %s2, %s154
      %s156 = smul.u32 %s17, 2
      %s157 = sadd.s32 %s156, %s18
      %s158 = smul.u32 32, %s157
      %p159 = scmp.lt.s32.totalorder %s158, 127
      %s160 = scalar_select %p159, %s158, 127
      %s161 = smul.addr %s160, 8
      %s162 = scalar_lea.vmem %s0, %s161
      %s163 = smul.u32 %s17, 2
      %s164 = sadd.s32 %s163, %s18
      %s165 = smul.u32 32, %s164
      %p166 = scmp.lt.s32.totalorder %s17, 1
      %s167 = scalar_select %p166, %s17, 1
      %s168 = smul.addr %s167, 8
      %s169 = scalar_lea.vmem %s2, %s168
      %p170 = scmp.eq.s32.totalorder %s18, 0
      // Predicated region
      $region29: #{bottleneck_forward.3} parent=27 // pred_check
        %p171 = pneg %p170
      $region30: #{bottleneck_forward.3} parent=27 // pred_check_branch
        %173 = sbr.rel (%p171) target = $region32
      $region31: #{bottleneck_forward.3} parent=27 // pred_region
        %174 = vst [vmem:[%s169] sm:$0xff] 0.0
      $region32: #{bottleneck_forward.3} parent=27 // pred_fallthru
        _
      %v175 = vld [vmem:[%s162] sm:$0xff]
      %v176 = vld [vmem:[%s162 + $0x8] sm:$0xff]
      %v177 = vld [vmem:[%s162 + $0x10] sm:$0xff]
      %v178 = vld [vmem:[%s162 + $0x18] sm:$0xff]
      %v179 = vld [vmem:[%s162 + $0x20] sm:$0xff]
      %v180 = vld [vmem:[%s162 + $0x28] sm:$0xff]
      %v181 = vld [vmem:[%s162 + $0x30] sm:$0xff]
      %v182 = vld [vmem:[%s162 + $0x38] sm:$0xff]
      %v183 = vld [vmem:[%s162 + $0x40] sm:$0xff]
      %v184 = vld [vmem:[%s162 + $0x48] sm:$0xff]
      %v185 = vld [vmem:[%s162 + $0x50] sm:$0xff]
      %v186 = vld [vmem:[%s162 + $0x58] sm:$0xff]
      %v187 = vld [vmem:[%s162 + $0x60] sm:$0xff]
      %v188 = vld [vmem:[%s162 + $0x68] sm:$0xff]
      %v189 = vld [vmem:[%s162 + $0x70] sm:$0xff]
      %v190 = vld [vmem:[%s162 + $0x78] sm:$0xff]
      %v191 = vld [vmem:[%s162 + $0x80] sm:$0xff]
      %v192 = vld [vmem:[%s162 + $0x88] sm:$0xff]
      %v193 = vld [vmem:[%s162 + $0x90] sm:$0xff]
      %v194 = vld [vmem:[%s162 + $0x98] sm:$0xff]
      %v195 = vld [vmem:[%s162 + $0xa0] sm:$0xff]
      %v196 = vld [vmem:[%s162 + $0xa8] sm:$0xff]
      %v197 = vld [vmem:[%s162 + $0xb0] sm:$0xff]
      %v198 = vld [vmem:[%s162 + $0xb8] sm:$0xff]
      %v199 = vld [vmem:[%s162 + $0xc0] sm:$0xff]
      %v200 = vld [vmem:[%s162 + $0xc8] sm:$0xff]
      %v201 = vld [vmem:[%s162 + $0xd0] sm:$0xff]
      %v202 = vld [vmem:[%s162 + $0xd8] sm:$0xff]
      %v203 = vld [vmem:[%s162 + $0xe0] sm:$0xff]
      %v204 = vld [vmem:[%s162 + $0xe8] sm:$0xff]
      %v205 = vld [vmem:[%s162 + $0xf0] sm:$0xff]
      %v206 = vld [vmem:[%s162 + $0xf8] sm:$0xff]
      %v207 = vld [vmem:[%s1] sm:$0xff]
      %v208 = vld [vmem:[%s1 + $0x8] sm:$0xff]
      %v209 = vld [vmem:[%s1 + $0x10] sm:$0xff]
      %v210 = vld [vmem:[%s1 + $0x18] sm:$0xff]
      %v211 = vld [vmem:[%s1 + $0x20] sm:$0xff]
      %v212 = vld [vmem:[%s1 + $0x28] sm:$0xff]
      %v213 = vld [vmem:[%s1 + $0x30] sm:$0xff]
      %v214 = vld [vmem:[%s1 + $0x38] sm:$0xff]
      %v215 = vld [vmem:[%s1 + $0x40] sm:$0xff]
      %v216 = vld [vmem:[%s1 + $0x48] sm:$0xff]
      %v217 = vld [vmem:[%s1 + $0x50] sm:$0xff]
      %v218 = vld [vmem:[%s1 + $0x58] sm:$0xff]
      %v219 = vld [vmem:[%s1 + $0x60] sm:$0xff]
      %v220 = vld [vmem:[%s1 + $0x68] sm:$0xff]
      %v221 = vld [vmem:[%s1 + $0x70] sm:$0xff]
      %v222 = vld [vmem:[%s1 + $0x78] sm:$0xff]
      %223 = vmatprep.subr.mxu0 0.0
      %224 = vmatpush1.msra.mxu0 %v207
      %225 = vmatprep.subr.mxu0 0.0
      %226 = vmatpush1.msra.mxu0 %v208
      %227 = vmatprep.subr.mxu0 0.0
      %228 = vmatpush1.msra.mxu0 %v209
      %229 = vmatprep.subr.mxu0 0.0
      %230 = vmatpush1.msra.mxu0 %v210
      %231 = vmatprep.subr.mxu0 0.0
      %232 = vmatpush1.msra.mxu0 %v211
      %233 = vmatprep.subr.mxu0 0.0
      %234 = vmatpush1.msra.mxu0 %v212
      %235 = vmatprep.subr.mxu0 0.0
      %236 = vmatpush1.msra.mxu0 %v213
      %237 = vmatprep.subr.mxu0 0.0
      %238 = vmatpush1.msra.mxu0 %v214
      %239 = vmatprep.subr.mxu0 0.0
      %240 = vmatpush1.msra.mxu0 %v215
      %241 = vmatprep.subr.mxu0 0.0
      %242 = vmatpush1.msra.mxu0 %v216
      %243 = vmatprep.subr.mxu0 0.0
      %244 = vmatpush1.msra.mxu0 %v217
      %245 = vmatprep.subr.mxu0 0.0
      %246 = vmatpush1.msra.mxu0 %v218
      %247 = vmatprep.subr.mxu0 0.0
      %248 = vmatpush1.msra.mxu0 %v219
      %249 = vmatprep.subr.mxu0 0.0
      %250 = vmatpush1.msra.mxu0 %v220
      %251 = vmatprep.subr.mxu0 0.0
      %252 = vmatpush1.msra.mxu0 %v221
      %253 = vmatprep.subr.mxu0 0.0
      %254 = vmatpush1.msra.mxu0 %v222
      %255 = vmatprep.subr.mxu0 0.0
      %256 = vmatpush1.msra.mxu0 0.0
      %257 = vmatprep.subr.mxu0 0.0
      %258 = vmatpush1.msra.mxu0 0.0
      %259 = vmatprep.subr.mxu0 0.0
      %260 = vmatpush1.msra.mxu0 0.0
      %261 = vmatprep.subr.mxu0 0.0
      %262 = vmatpush1.msra.mxu0 0.0
      %263 = vmatprep.subr.mxu0 0.0
      %264 = vmatpush1.msra.mxu0 0.0
      %265 = vmatprep.subr.mxu0 0.0
      %266 = vmatpush1.msra.mxu0 0.0
      %267 = vmatprep.subr.mxu0 0.0
      %268 = vmatpush1.msra.mxu0 0.0
      %269 = vmatprep.subr.mxu0 0.0
      %270 = vmatpush1.msra.mxu0 0.0
      %271 = vmatprep.subr.mxu0 0.0
      %272 = vmatpush1.msra.mxu0 0.0
      %273 = vmatprep.subr.mxu0 0.0
      %274 = vmatpush1.msra.mxu0 0.0
      %275 = vmatprep.subr.mxu0 0.0
      %276 = vmatpush1.msra.mxu0 0.0
      %277 = vmatprep.subr.mxu0 0.0
      %278 = vmatpush1.msra.mxu0 0.0
      %279 = vmatprep.subr.mxu0 0.0
      %280 = vmatpush1.msra.mxu0 0.0
      %281 = vmatprep.subr.mxu0 0.0
      %282 = vmatpush1.msra.mxu0 0.0
      %283 = vmatprep.subr.mxu0 0.0
      %284 = vmatpush1.msra.mxu0 0.0
      %285 = vmatprep.subr.mxu0 0.0
      %286 = vmatpush1.msra.mxu0 0.0
      %287 = vmatprep.mubr.f32.mxu0 0.0
      %288 = vmatmul.mubr.f32.gmra.mrb[0].mxu0 %v175
      %v289 = vpop.f32.mrb[0].mxu0
      %v290 = vadd.f32 0.0, %v289
      %v291 = vpop.f32.mrb[0].mxu0
      %292 = vmatprep.mubr.f32.mxu0 0.0
      %293 = vmatmul.mubr.f32.gmra.mrb[0].mxu0 %v176
      %v294 = vpop.f32.mrb[0].mxu0
      %v295 = vadd.f32 0.0, %v294
      %v296 = vpop.f32.mrb[0].mxu0
      %297 = vmatprep.mubr.f32.mxu0 0.0
      %298 = vmatmul.mubr.f32.gmra.mrb[0].mxu0 %v177
      %v299 = vpop.f32.mrb[0].mxu0
      %v300 = vadd.f32 0.0, %v299
      %v301 = vpop.f32.mrb[0].mxu0
      %302 = vmatprep.mubr.f32.mxu0 0.0
      %303 = vmatmul.mubr.f32.gmra.mrb[0].mxu0 %v178
      %v304 = vpop.f32.mrb[0].mxu0
      %v305 = vadd.f32 0.0, %v304
      %v306 = vpop.f32.mrb[0].mxu0
      %307 = vmatprep.mubr.f32.mxu0 0.0
      %308 = vmatmul.mubr.f32.gmra.mrb[0].mxu0 %v179
      %v309 = vpop.f32.mrb[0].mxu0
      %v310 = vadd.f32 0.0, %v309
      %v311 = vpop.f32.mrb[0].mxu0
      %312 = vmatprep.mubr.f32.mxu0 0.0
      %313 = vmatmul.mubr.f32.gmra.mrb[0].mxu0 %v180
      %v314 = vpop.f32.mrb[0].mxu0
      %v315 = vadd.f32 0.0, %v314
      %v316 = vpop.f32.mrb[0].mxu0
      %317 = vmatprep.mubr.f32.mxu0 0.0
      %318 = vmatmul.mubr.f32.gmra.mrb[0].mxu0 %v181
      %v319 = vpop.f32.mrb[0].mxu0
      %v320 = vadd.f32 0.0, %v319
      %v321 = vpop.f32.mrb[0].mxu0
      %322 = vmatprep.mubr.f32.mxu0 0.0
      %323 = vmatmul.mubr.f32.gmra.mrb[0].mxu0 %v182
      %v324 = vpop.f32.mrb[0].mxu0
      %v325 = vadd.f32 0.0, %v324
      %v326 = vpop.f32.mrb[0].mxu0
      %327 = vmatprep.mubr.f32.mxu0 0.0
      %328 = vmatmul.mubr.f32.gmra.mrb[0].mxu0 %v183
      %v329 = vpop.f32.mrb[0].mxu0
      %v330 = vadd.f32 0.0, %v329
      %v331 = vpop.f32.mrb[0].mxu0
      %332 = vmatprep.mubr.f32.mxu0 0.0
      %333 = vmatmul.mubr.f32.gmra.mrb[0].mxu0 %v184
      %v334 = vpop.f32.mrb[0].mxu0
      %v335 = vadd.f32 0.0, %v334
      %v336 = vpop.f32.mrb[0].mxu0
      %337 = vmatprep.mubr.f32.mxu0 0.0
      %338 = vmatmul.mubr.f32.gmra.mrb[0].mxu0 %v185
      %v339 = vpop.f32.mrb[0].mxu0
      %v340 = vadd.f32 0.0, %v339
      %v341 = vpop.f32.mrb[0].mxu0
      %342 = vmatprep.mubr.f32.mxu0 0.0
      %343 = vmatmul.mubr.f32.gmra.mrb[0].mxu0 %v186
      %v344 = vpop.f32.mrb[0].mxu0
      %v345 = vadd.f32 0.0, %v344
      %v346 = vpop.f32.mrb[0].mxu0
      %347 = vmatprep.mubr.f32.mxu0 0.0
      %348 = vmatmul.mubr.f32.gmra.mrb[0].mxu0 %v187
      %v349 = vpop.f32.mrb[0].mxu0
      %v350 = vadd.f32 0.0, %v349
      %v351 = vpop.f32.mrb[0].mxu0
      %352 = vmatprep.mubr.f32.mxu0 0.0
      %353 = vmatmul.mubr.f32.gmra.mrb[0].mxu0 %v188
      %v354 = vpop.f32.mrb[0].mxu0
      %v355 = vadd.f32 0.0, %v354
      %v356 = vpop.f32.mrb[0].mxu0
      %357 = vmatprep.mubr.f32.mxu0 0.0
      %358 = vmatmul.mubr.f32.gmra.mrb[0].mxu0 %v189
      %v359 = vpop.f32.mrb[0].mxu0
      %v360 = vadd.f32 0.0, %v359
      %v361 = vpop.f32.mrb[0].mxu0
      %362 = vmatprep.mubr.f32.mxu0 0.0
      %363 = vmatmul.mubr.f32.gmra.mrb[0].mxu0 %v190
      %v364 = vpop.f32.mrb[0].mxu0
      %v365 = vadd.f32 0.0, %v364
      %v366 = vpop.f32.mrb[0].mxu0
      %367 = vmatprep.mubr.f32.mxu0 0.0
      %368 = vmatmul.mubr.f32.gmra.mrb[0].mxu0 %v191
      %v369 = vpop.f32.mrb[0].mxu0
      %v370 = vadd.f32 0.0, %v369
      %v371 = vpop.f32.mrb[0].mxu0
      %372 = vmatprep.mubr.f32.mxu0 0.0
      %373 = vmatmul.mubr.f32.gmra.mrb[0].mxu0 %v192
      %v374 = vpop.f32.mrb[0].mxu0
      %v375 = vadd.f32 0.0, %v374
      %v376 = vpop.f32.mrb[0].mxu0
      %377 = vmatprep.mubr.f32.mxu0 0.0
      %378 = vmatmul.mubr.f32.gmra.mrb[0].mxu0 %v193
      %v379 = vpop.f32.mrb[0].mxu0
      %v380 = vadd.f32 0.0, %v379
      %v381 = vpop.f32.mrb[0].mxu0
      %382 = vmatprep.mubr.f32.mxu0 0.0
      %383 = vmatmul.mubr.f32.gmra.mrb[0].mxu0 %v194
      %v384 = vpop.f32.mrb[0].mxu0
      %v385 = vadd.f32 0.0, %v384
      %v386 = vpop.f32.mrb[0].mxu0
      %387 = vmatprep.mubr.f32.mxu0 0.0
      %388 = vmatmul.mubr.f32.gmra.mrb[0].mxu0 %v195
      %v389 = vpop.f32.mrb[0].mxu0
      %v390 = vadd.f32 0.0, %v389
      %v391 = vpop.f32.mrb[0].mxu0
      %392 = vmatprep.mubr.f32.mxu0 0.0
      %393 = vmatmul.mubr.f32.gmra.mrb[0].mxu0 %v196
      %v394 = vpop.f32.mrb[0].mxu0
      %v395 = vadd.f32 0.0, %v394
      %v396 = vpop.f32.mrb[0].mxu0
      %397 = vmatprep.mubr.f32.mxu0 0.0
      %398 = vmatmul.mubr.f32.gmra.mrb[0].mxu0 %v197
      %v399 = vpop.f32.mrb[0].mxu0
      %v400 = vadd.f32 0.0, %v399
      %v401 = vpop.f32.mrb[0].mxu0
      %402 = vmatprep.mubr.f32.mxu0 0.0
      %403 = vmatmul.mubr.f32.gmra.mrb[0].mxu0 %v198
      %v404 = vpop.f32.mrb[0].mxu0
      %v405 = vadd.f32 0.0, %v404
      %v406 = vpop.f32.mrb[0].mxu0
      %407 = vmatprep.mubr.f32.mxu0 0.0
      %408 = vmatmul.mubr.f32.gmra.mrb[0].mxu0 %v199
      %v409 = vpop.f32.mrb[0].mxu0
      %v410 = vadd.f32 0.0, %v409
      %v411 = vpop.f32.mrb[0].mxu0
      %412 = vmatprep.mubr.f32.mxu0 0.0
      %413 = vmatmul.mubr.f32.gmra.mrb[0].mxu0 %v200
      %v414 = vpop.f32.mrb[0].mxu0
      %v415 = vadd.f32 0.0, %v414
      %v416 = vpop.f32.mrb[0].mxu0
      %417 = vmatprep.mubr.f32.mxu0 0.0
      %418 = vmatmul.mubr.f32.gmra.mrb[0].mxu0 %v201
      %v419 = vpop.f32.mrb[0].mxu0
      %v420 = vadd.f32 0.0, %v419
      %v421 = vpop.f32.mrb[0].mxu0
      %422 = vmatprep.mubr.f32.mxu0 0.0
      %423 = vmatmul.mubr.f32.gmra.mrb[0].mxu0 %v202
      %v424 = vpop.f32.mrb[0].mxu0
      %v425 = vadd.f32 0.0, %v424
      %v426 = vpop.f32.mrb[0].mxu0
      %427 = vmatprep.mubr.f32.mxu0 0.0
      %428 = vmatmul.mubr.f32.gmra.mrb[0].mxu0 %v203
      %v429 = vpop.f32.mrb[0].mxu0
      %v430 = vadd.f32 0.0, %v429
      %v431 = vpop.f32.mrb[0].mxu0
      %432 = vmatprep.mubr.f32.mxu0 0.0
      %433 = vmatmul.mubr.f32.gmra.mrb[0].mxu0 %v204
      %v434 = vpop.f32.mrb[0].mxu0
      %v435 = vadd.f32 0.0, %v434
      %v436 = vpop.f32.mrb[0].mxu0
      %437 = vmatprep.mubr.f32.mxu0 0.0
      %438 = vmatmul.mubr.f32.gmra.mrb[0].mxu0 %v205
      %v439 = vpop.f32.mrb[0].mxu0
      %v440 = vadd.f32 0.0, %v439
      %v441 = vpop.f32.mrb[0].mxu0
      %442 = vmatprep.mubr.f32.mxu0 0.0
      %443 = vmatmul.mubr.f32.gmra.mrb[0].mxu0 %v206
      %v444 = vpop.f32.mrb[0].mxu0
      %v445 = vadd.f32 0.0, %v444
      %v446 = vpop.f32.mrb[0].mxu0
      %447 = vdwg.mxu0
      %v448 = vld [vmem:[%s169] sm:$0x1]
      %v449 = vadd.f32 %v290, %v295
      %v450 = vadd.f32 %v449, %v300
      %v451 = vadd.f32 %v450, %v305
      %v452 = vadd.f32 %v451, %v310
      %v453 = vadd.f32 %v452, %v315
      %v454 = vadd.f32 %v453, %v320
      %v455 = vadd.f32 %v454, %v325
      %v456 = vadd.f32 %v455, %v330
      %v457 = vadd.f32 %v456, %v335
      %v458 = vadd.f32 %v457, %v340
      %v459 = vadd.f32 %v458, %v345
      %v460 = vadd.f32 %v459, %v350
      %v461 = vadd.f32 %v460, %v355
      %v462 = vadd.f32 %v461, %v360
      %v463 = vadd.f32 %v462, %v365
      %v464 = vadd.f32 %v463, %v370
      %v465 = vadd.f32 %v464, %v375
      %v466 = vadd.f32 %v465, %v380
      %v467 = vadd.f32 %v466, %v385
      %v468 = vadd.f32 %v467, %v390
      %v469 = vadd.f32 %v468, %v395
      %v470 = vadd.f32 %v469, %v400
      %v471 = vadd.f32 %v470, %v405
      %v472 = vadd.f32 %v471, %v410
      %v473 = vadd.f32 %v472, %v415
      %v474 = vadd.f32 %v473, %v420
      %v475 = vadd.f32 %v474, %v425
      %v476 = vadd.f32 %v475, %v430
      %v477 = vadd.f32 %v476, %v435
      %v478 = vadd.f32 %v477, %v440
      %v479 = vadd.f32 %v478, %v445
      %v480 = vrot.slane %v479, 4
      %v481 = vadd.f32 %v479, %v480
      %v482 = vrot.slane %v481, 2
      %v483 = vadd.f32 %v481, %v482
      %v484 = vrot.slane %v483, 1
      %v485 = vadd.f32 %v483, %v484
      %v486 = vadd.f32 %v448, %v485
      %487 = vst [vmem:[%s169] sm:$0x1] %v486
      %v488 = vld [vmem:[%s169 + $0x1] sm:$0x1]
      %v489 = vmul.f32 %v290, %v290
      %v490 = vmul.f32 %v295, %v295
      %v491 = vmul.f32 %v300, %v300
      %v492 = vmul.f32 %v305, %v305
      %v493 = vmul.f32 %v310, %v310
      %v494 = vmul.f32 %v315, %v315
      %v495 = vmul.f32 %v320, %v320
      %v496 = vmul.f32 %v325, %v325
      %v497 = vmul.f32 %v330, %v330
      %v498 = vmul.f32 %v335, %v335
      %v499 = vmul.f32 %v340, %v340
      %v500 = vmul.f32 %v345, %v345
      %v501 = vmul.f32 %v350, %v350
      %v502 = vmul.f32 %v355, %v355
      %v503 = vmul.f32 %v360, %v360
      %v504 = vmul.f32 %v365, %v365
      %v505 = vmul.f32 %v370, %v370
      %v506 = vmul.f32 %v375, %v375
      %v507 = vmul.f32 %v380, %v380
      %v508 = vmul.f32 %v385, %v385
      %v509 = vmul.f32 %v390, %v390
      %v510 = vmul.f32 %v395, %v395
      %v511 = vmul.f32 %v400, %v400
      %v512 = vmul.f32 %v405, %v405
      %v513 = vmul.f32 %v410, %v410
      %v514 = vmul.f32 %v415, %v415
      %v515 = vmul.f32 %v420, %v420
      %v516 = vmul.f32 %v425, %v425
      %v517 = vmul.f32 %v430, %v430
      %v518 = vmul.f32 %v435, %v435
      %v519 = vmul.f32 %v440, %v440
      %v520 = vmul.f32 %v445, %v445
      %v521 = vadd.f32 %v489, %v490
      %v522 = vadd.f32 %v521, %v491
      %v523 = vadd.f32 %v522, %v492
      %v524 = vadd.f32 %v523, %v493
      %v525 = vadd.f32 %v524, %v494
      %v526 = vadd.f32 %v525, %v495
      %v527 = vadd.f32 %v526, %v496
      %v528 = vadd.f32 %v527, %v497
      %v529 = vadd.f32 %v528, %v498
      %v530 = vadd.f32 %v529, %v499
      %v531 = vadd.f32 %v530, %v500
      %v532 = vadd.f32 %v531, %v501
      %v533 = vadd.f32 %v532, %v502
      %v534 = vadd.f32 %v533, %v503
      %v535 = vadd.f32 %v534, %v504
      %v536 = vadd.f32 %v535, %v505
      %v537 = vadd.f32 %v536, %v506
      %v538 = vadd.f32 %v537, %v507
      %v539 = vadd.f32 %v538, %v508
      %v540 = vadd.f32 %v539, %v509
      %v541 = vadd.f32 %v540, %v510
      %v542 = vadd.f32 %v541, %v511
      %v543 = vadd.f32 %v542, %v512
      %v544 = vadd.f32 %v543, %v513
      %v545 = vadd.f32 %v544, %v514
      %v546 = vadd.f32 %v545, %v515
      %v547 = vadd.f32 %v546, %v516
      %v548 = vadd.f32 %v547, %v517
      %v549 = vadd.f32 %v548, %v518
      %v550 = vadd.f32 %v549, %v519
      %v551 = vadd.f32 %v550, %v520
      %v552 = vrot.slane %v551, 4
      %v553 = vadd.f32 %v551, %v552
      %v554 = vrot.slane %v553, 2
      %v555 = vadd.f32 %v553, %v554
      %v556 = vrot.slane %v555, 1
      %v557 = vadd.f32 %v555, %v556
      %v558 = vadd.f32 %v488, %v557
      %559 = vst [vmem:[%s169 + $0x1] sm:$0x1] %v558
      %p560 = scmp.lt.s32.totalorder %s17, 1
      %s561 = scalar_select %p560, %s17, 1
      %s562 = smul.addr %s561, 8
      %s563 = scalar_lea.vmem %s2, %s562
      // Predicated region
      $region33: #{bottleneck_forward.3} parent=27 // pred_check
        %p564 = pneg %p94
      $region34: #{bottleneck_forward.3} parent=27 // pred_check_branch
        %566 = sbr.rel (%p564) target = $region36
      $region35: #{bottleneck_forward.3} parent=27 // pred_region
        _
      $region36: #{bottleneck_forward.3} parent=27 // pred_fallthru
        _
    $region28: #{bottleneck_forward.3} parent=5 // pred_fallthru
      _
    %p567 = scmp.le.s32.totalorder 2, %s8
    // Predicated region
    $region37: #{bottleneck_forward.3} parent=5 // pred_check
      %p568 = pneg %p567
    $region38: #{bottleneck_forward.3} parent=5 // pred_check_branch
      %570 = sbr.rel (%p568) target = $region40
    $region39: #{bottleneck_forward.3} parent=5 // pred_region
      %s571 = ssub.s32 %s8, 2
      // Predicated region
      $region41: #{bottleneck_forward.3} parent=39 // pred_check
        %p572 = pneg %p100
      $region42: #{bottleneck_forward.3} parent=39 // pred_check_branch
        %574 = sbr.rel (%p572) target = $region44
      $region43: #{bottleneck_forward.3} parent=39 // pred_region
        %p575 = scmp.lt.s32.totalorder %s19, 1
        %s576 = scalar_select %p575, %s19, 1
        %s577 = smul.addr %s576, 8
        %s578 = scalar_lea.vmem %s2, %s577
      $region44: #{bottleneck_forward.3} parent=39 // pred_fallthru
        _
    $region40: #{bottleneck_forward.3} parent=5 // pred_fallthru
      _
  $region6: #{bottleneck_forward.3} parent=0 // loop_footer
    %s12 = sadd.s32 1, %s8
  $region7: #{bottleneck_forward.3} parent=0 // loop_footer_branch
    %7 = sbr.rel target = $region3
  $region8: #{bottleneck_forward.3} parent=0 // loop_exit
    _

// kernel: bottleneck_forward.5
$region0: #{bottleneck_forward.5}
  #allocation0 [shape = 'u32[]', space=smem, size = 0x4, offset = 0x4, fixed_abs, tag = 'smem constant byte address 0x4 - core index']
  #allocation1 [shape = 'u32[144,128]{1,0:T(1,128)}', space=vmem, size = 0x12000, scoped, tag = 'internal scratch']
  %s0 = inlined_call_operand.vmem [shape: f32[1024,128], index: 0, kind: input, shape index: {}]
  %s1 = inlined_call_operand.vmem [shape: f32[1024,128], index: 1, kind: input, shape index: {}]
  %s2 = inlined_call_operand.vmem [shape: f32[1,128], index: 2, kind: input, shape index: {}]
  %s3 = inlined_call_operand.vmem [shape: f32[1,128], index: 3, kind: input, shape index: {}]
  %s4 = inlined_call_operand.vmem [shape: f32[1024,128], index: 4, kind: output, shape index: {}]
  %s5 = sld [smem:[#allocation0]]
  $region49: #{bottleneck_forward.5} parent=0
    _
  %s7 = ssub.s32 1, %s5
  %s8 = scalar_select 0, %s7, %s5
  loop: start=0, step=1, limit=6
  $region2: #{bottleneck_forward.5} parent=0 // loop_pre_header
    _
  $region3: #{bottleneck_forward.5} parent=0 // loop_header
    %s10 = sphi 0, %s14
    %p11 = scmp.ge.s32.totalorder %s10, 6
    %s20 = sphi 0, %s22
    %s23 = sphi 0, %s20
    %s24 = sphi 0, %s23
    %s40 = sphi 0, %s24
    %s46 = sphi 0, %s48
    %s49 = sphi 0, %s46
    %s50 = sphi 0, %s49
    %s66 = sphi 0, %s50
    %s70 = sphi 0, %s70
    %s72 = sphi 0, %s70
    %s73 = sphi 0, %s72
    %s87 = sphi 0, %s73
    %s91 = sphi 0, %s91
    %s93 = sphi 0, %s91
    %s94 = sphi 0, %s93
    %s108 = sphi 0, %s94
    %s114 = sphi 0, %s116
    %s117 = sphi 0, %s114
    %s118 = sphi 0, %s117
    %s134 = sphi 0, %s118
  $region4: #{bottleneck_forward.5} parent=0 // loop_header_branch
    %13 = sbr.rel (%p11) target = $region8
  $region5: #{bottleneck_forward.5} parent=0 // loop_body
    %s15 = ssub.s32 %s10, 1
    %s16 = ssub.s32 %s10, 2
    %s17 = sadd.s32 %s10, 1
    %s18 = ssub.s32 %s10, %s17
    %p19 = scmp.eq.s32.totalorder %s18, 0
    %s21 = sadd.s32 %s20, 1
    %s22 = scalar_select %p19, %s20, %s21
    %p25 = pneg %p19
    %p26 = scmp.eq.s32.totalorder %s10, 3
    %p27 = por %p25, %p26
    %p28 = scmp.ne.s32.totalorder %s20, %s23
    %p29 = scmp.eq.s32.totalorder %s10, 0
    %p30 = por %p28, %p29
    %p31 = scmp.ne.s32.totalorder %s20, %s23
    %p32 = scmp.eq.s32.totalorder %s15, 3
    %p33 = por %p31, %p32
    %p34 = scmp.ne.s32.totalorder %s23, %s24
    %p35 = scmp.eq.s32.totalorder %s15, 0
    %p36 = por %p34, %p35
    %p37 = scmp.ne.s32.totalorder %s23, %s24
    %p38 = scmp.eq.s32.totalorder %s16, 3
    %p39 = por %p37, %p38
    %p41 = scmp.ne.s32.totalorder %s24, %s40
    %p42 = scmp.eq.s32.totalorder %s16, 0
    %p43 = por %p41, %p42
    %s44 = ssub.s32 %s10, %s17
    %p45 = scmp.eq.s32.totalorder %s44, 0
    %s47 = sadd.s32 %s46, 1
    %s48 = scalar_select %p45, %s46, %s47
    %p51 = pneg %p45
    %p52 = scmp.eq.s32.totalorder %s10, 3
    %p53 = por %p51, %p52
    %p54 = scmp.ne.s32.totalorder %s46, %s49
    %p55 = scmp.eq.s32.totalorder %s10, 0
    %p56 = por %p54, %p55
    %p57 = scmp.ne.s32.totalorder %s46, %s49
    %p58 = scmp.eq.s32.totalorder %s15, 3
    %p59 = por %p57, %p58
    %p60 = scmp.ne.s32.totalorder %s49, %s50
    %p61 = scmp.eq.s32.totalorder %s15, 0
    %p62 = por %p60, %p61
    %p63 = scmp.ne.s32.totalorder %s49, %s50
    %p64 = scmp.eq.s32.totalorder %s16, 3
    %p65 = por %p63, %p64
    %p67 = scmp.ne.s32.totalorder %s50, %s66
    %p68 = scmp.eq.s32.totalorder %s16, 0
    %p69 = por %p67, %p68
    %s71 = sadd.s32 %s70, 1
    %p74 = scmp.eq.s32.totalorder %s10, 3
    %p75 = scmp.ne.s32.totalorder %s70, %s72
    %p76 = scmp.eq.s32.totalorder %s10, 0
    %p77 = por %p75, %p76
    %p78 = scmp.ne.s32.totalorder %s70, %s72
    %p79 = scmp.eq.s32.totalorder %s15, 3
    %p80 = por %p78, %p79
    %p81 = scmp.ne.s32.totalorder %s72, %s73
    %p82 = scmp.eq.s32.totalorder %s15, 0
    %p83 = por %p81, %p82
    %p84 = scmp.ne.s32.totalorder %s72, %s73
    %p85 = scmp.eq.s32.totalorder %s16, 3
    %p86 = por %p84, %p85
    %p88 = scmp.ne.s32.totalorder %s73, %s87
    %p89 = scmp.eq.s32.totalorder %s16, 0
    %p90 = por %p88, %p89
    %s92 = sadd.s32 %s91, 1
    %p95 = scmp.eq.s32.totalorder %s10, 3
    %p96 = scmp.ne.s32.totalorder %s91, %s93
    %p97 = scmp.eq.s32.totalorder %s10, 0
    %p98 = por %p96, %p97
    %p99 = scmp.ne.s32.totalorder %s91, %s93
    %p100 = scmp.eq.s32.totalorder %s15, 3
    %p101 = por %p99, %p100
    %p102 = scmp.ne.s32.totalorder %s93, %s94
    %p103 = scmp.eq.s32.totalorder %s15, 0
    %p104 = por %p102, %p103
    %p105 = scmp.ne.s32.totalorder %s93, %s94
    %p106 = scmp.eq.s32.totalorder %s16, 3
    %p107 = por %p105, %p106
    %p109 = scmp.ne.s32.totalorder %s94, %s108
    %p110 = scmp.eq.s32.totalorder %s16, 0
    %p111 = por %p109, %p110
    %s112 = ssub.s32 %s10, %s17
    %p113 = scmp.eq.s32.totalorder %s112, 0
    %s115 = sadd.s32 %s114, 1
    %s116 = scalar_select %p113, %s114, %s115
    %p119 = pneg %p113
    %p120 = scmp.eq.s32.totalorder %s10, 3
    %p121 = por %p119, %p120
    %p122 = scmp.ne.s32.totalorder %s114, %s117
    %p123 = scmp.eq.s32.totalorder %s10, 0
    %p124 = por %p122, %p123
    %p125 = scmp.ne.s32.totalorder %s114, %s117
    %p126 = scmp.eq.s32.totalorder %s15, 3
    %p127 = por %p125, %p126
    %p128 = scmp.ne.s32.totalorder %s117, %s118
    %p129 = scmp.eq.s32.totalorder %s15, 0
    %p130 = por %p128, %p129
    %p131 = scmp.ne.s32.totalorder %s117, %s118
    %p132 = scmp.eq.s32.totalorder %s16, 3
    %p133 = por %p131, %p132
    %p135 = scmp.ne.s32.totalorder %s118, %s134
    %p136 = scmp.eq.s32.totalorder %s16, 0
    %p137 = por %p135, %p136
    %p138 = scmp.le.s32.totalorder 1, %s10
    %p139 = scmp.lt.s32.totalorder %s10, 5
    %p140 = pnand %p138, %p139
    %p141 = pneg %p140
    // Predicated region
    $region9: #{bottleneck_forward.5} parent=5 // pred_check
      _
    $region10: #{bottleneck_forward.5} parent=5 // pred_check_branch
      %143 = sbr.rel (%p140) target = $region12
    $region11: #{bottleneck_forward.5} parent=5 // pred_region
      %s144 = ssub.s32 %s10, 1
      // Predicated region
      $region13: #{bottleneck_forward.5} parent=11 // pred_check
        %p145 = pneg %p83
      $region14: #{bottleneck_forward.5} parent=11 // pred_check_branch
        %147 = sbr.rel (%p145) target = $region16
      $region15: #{bottleneck_forward.5} parent=11 // pred_region
        _
      $region16: #{bottleneck_forward.5} parent=11 // pred_fallthru
        _
      // Predicated region
      $region17: #{bottleneck_forward.5} parent=11 // pred_check
        %p148 = pneg %p104
      $region18: #{bottleneck_forward.5} parent=11 // pred_check_branch
        %150 = sbr.rel (%p148) target = $region20
      $region19: #{bottleneck_forward.5} parent=11 // pred_region
        _
      $region20: #{bottleneck_forward.5} parent=11 // pred_fallthru
        _
    $region12: #{bottleneck_forward.5} parent=5 // pred_fallthru
      _
    %p151 = scmp.lt.s32.totalorder %s10, 4
    // Predicated region
    $region21: #{bottleneck_forward.5} parent=5 // pred_check
      %p152 = pneg %p151
    $region22: #{bottleneck_forward.5} parent=5 // pred_check_branch
      %154 = sbr.rel (%p152) target = $region24
    $region23: #{bottleneck_forward.5} parent=5 // pred_region
      // Predicated region
      $region25: #{bottleneck_forward.5} parent=23 // pred_check
        %p155 = pneg %p30
      $region26: #{bottleneck_forward.5} parent=23 // pred_check_branch
        %157 = sbr.rel (%p155) target = $region28
      $region27: #{bottleneck_forward.5} parent=23 // pred_region
        %s158 = smul.u32 32, %s10
        %p159 = scmp.lt.s32.totalorder %s158, 127
        %s160 = scalar_select %p159, %s158, 127
        %s161 = smul.addr %s160, 8
        %s162 = scalar_lea.vmem %s0, %s161
        %s163 = smul.u32 32, %s10
      $region28: #{bottleneck_forward.5} parent=23 // pred_fallthru
        _
      // Predicated region
      $region29: #{bottleneck_forward.5} parent=23 // pred_check
        %p164 = pneg %p56
      $region30: #{bottleneck_forward.5} parent=23 // pred_check_branch
        %166 = sbr.rel (%p164) target = $region32
      $region31: #{bottleneck_forward.5} parent=23 // pred_region
        %s167 = smul.u32 32, %s10
        %p168 = scmp.lt.s32.totalorder %s167, 127
        %s169 = scalar_select %p168, %s167, 127
        %s170 = smul.addr %s169, 8
        %s171 = scalar_lea.vmem %s1, %s170
        %s172 = smul.u32 32, %s10
      $region32: #{bottleneck_forward.5} parent=23 // pred_fallthru
        _
    $region24: #{bottleneck_forward.5} parent=5 // pred_fallthru
      _
    %p173 = scmp.le.s32.totalorder 1, %s10
    %p174 = scmp.lt.s32.totalorder %s10, 5
    %p175 = pnand %p173, %p174
    %p176 = pneg %p175
    // Predicated region
    $region33: #{bottleneck_forward.5} parent=5 // pred_check
      _
    $region34: #{bottleneck_forward.5} parent=5 // pred_check_branch
      %178 = sbr.rel (%p175) target = $region36
    $region35: #{bottleneck_forward.5} parent=5 // pred_region
      %s179 = ssub.s32 %s10, 1
      %s180 = smul.u32 32, %s15
      %p181 = scmp.lt.s32.totalorder %s180, 127
      %s182 = scalar_select %p181, %s180, 127
      %s183 = smul.addr %s182, 8
      %s184 = scalar_lea.vmem %s0, %s183
      %p185 = pneg %p36
      %p186 = pneg %p33
      %s187 = smul.u32 32, %s15
      %p188 = scmp.lt.s32.totalorder %s187, 127
      %s189 = scalar_select %p188, %s187, 127
      %s190 = smul.addr %s189, 8
      %s191 = scalar_lea.vmem %s1, %s190
      %p192 = pneg %p62
      %p193 = pneg %p59
      %p194 = pneg %p83
      %p195 = pneg %p80
      %p196 = pneg %p104
      %p197 = pneg %p101
      %p198 = pneg %p130
      %p199 = pneg %p127
      %s200 = smul.u32 32, %s15
      %p201 = scmp.lt.s32.totalorder %s200, 127
      %s202 = scalar_select %p201, %s200, 127
      %s203 = smul.addr %s202, 8
      %s204 = scalar_lea.vmem %s4, %s203
      %s205 = smul.u32 32, %s15
      %p206 = scmp.lt.s32.totalorder %s205, 127
      %s207 = scalar_select %p206, %s205, 127
      %s208 = smul.addr %s207, 8
      %s209 = scalar_lea.vmem %s0, %s208
      %s210 = smul.u32 32, %s15
      %s211 = smul.u32 32, %s15
      %p212 = scmp.lt.s32.totalorder %s211, 127
      %s213 = scalar_select %p212, %s211, 127
      %s214 = smul.addr %s213, 8
      %s215 = scalar_lea.vmem %s1, %s214
      %s216 = smul.u32 32, %s15
      %s217 = smul.u32 32, %s15
      %p218 = scmp.lt.s32.totalorder %s217, 127
      %s219 = scalar_select %p218, %s217, 127
      %s220 = smul.addr %s219, 8
      %s221 = scalar_lea.vmem %s4, %s220
      %s222 = smul.u32 32, %s15
      %v223 = vld [vmem:[%s215] sm:$0xff]
      %v224 = vld [vmem:[%s215 + $0x8] sm:$0xff]
      %v225 = vld [vmem:[%s215 + $0x10] sm:$0xff]
      %v226 = vld [vmem:[%s215 + $0x18] sm:$0xff]
      %v227 = vld [vmem:[%s215 + $0x20] sm:$0xff]
      %v228 = vld [vmem:[%s215 + $0x28] sm:$0xff]
      %v229 = vld [vmem:[%s215 + $0x30] sm:$0xff]
      %v230 = vld [vmem:[%s215 + $0x38] sm:$0xff]
      %v231 = vld [vmem:[%s215 + $0x40] sm:$0xff]
      %v232 = vld [vmem:[%s215 + $0x48] sm:$0xff]
      %v233 = vld [vmem:[%s215 + $0x50] sm:$0xff]
      %v234 = vld [vmem:[%s215 + $0x58] sm:$0xff]
      %v235 = vld [vmem:[%s215 + $0x60] sm:$0xff]
      %v236 = vld [vmem:[%s215 + $0x68] sm:$0xff]
      %v237 = vld [vmem:[%s215 + $0x70] sm:$0xff]
      %v238 = vld [vmem:[%s215 + $0x78] sm:$0xff]
      %v239 = vld [vmem:[%s215 + $0x80] sm:$0xff]
      %v240 = vld [vmem:[%s215 + $0x88] sm:$0xff]
      %v241 = vld [vmem:[%s215 + $0x90] sm:$0xff]
      %v242 = vld [vmem:[%s215 + $0x98] sm:$0xff]
      %v243 = vld [vmem:[%s215 + $0xa0] sm:$0xff]
      %v244 = vld [vmem:[%s215 + $0xa8] sm:$0xff]
      %v245 = vld [vmem:[%s215 + $0xb0] sm:$0xff]
      %v246 = vld [vmem:[%s215 + $0xb8] sm:$0xff]
      %v247 = vld [vmem:[%s215 + $0xc0] sm:$0xff]
      %v248 = vld [vmem:[%s215 + $0xc8] sm:$0xff]
      %v249 = vld [vmem:[%s215 + $0xd0] sm:$0xff]
      %v250 = vld [vmem:[%s215 + $0xd8] sm:$0xff]
      %v251 = vld [vmem:[%s215 + $0xe0] sm:$0xff]
      %v252 = vld [vmem:[%s215 + $0xe8] sm:$0xff]
      %v253 = vld [vmem:[%s215 + $0xf0] sm:$0xff]
      %v254 = vld [vmem:[%s215 + $0xf8] sm:$0xff]
      %v255 = vld [vmem:[%s209] sm:$0xff]
      %v256 = vld [vmem:[%s209 + $0x8] sm:$0xff]
      %v257 = vld [vmem:[%s209 + $0x10] sm:$0xff]
      %v258 = vld [vmem:[%s209 + $0x18] sm:$0xff]
      %v259 = vld [vmem:[%s209 + $0x20] sm:$0xff]
      %v260 = vld [vmem:[%s209 + $0x28] sm:$0xff]
      %v261 = vld [vmem:[%s209 + $0x30] sm:$0xff]
      %v262 = vld [vmem:[%s209 + $0x38] sm:$0xff]
      %v263 = vld [vmem:[%s209 + $0x40] sm:$0xff]
      %v264 = vld [vmem:[%s209 + $0x48] sm:$0xff]
      %v265 = vld [vmem:[%s209 + $0x50] sm:$0xff]
      %v266 = vld [vmem:[%s209 + $0x58] sm:$0xff]
      %v267 = vld [vmem:[%s209 + $0x60] sm:$0xff]
      %v268 = vld [vmem:[%s209 + $0x68] sm:$0xff]
      %v269 = vld [vmem:[%s209 + $0x70] sm:$0xff]
      %v270 = vld [vmem:[%s209 + $0x78] sm:$0xff]
      %v271 = vld [vmem:[%s209 + $0x80] sm:$0xff]
      %v272 = vld [vmem:[%s209 + $0x88] sm:$0xff]
      %v273 = vld [vmem:[%s209 + $0x90] sm:$0xff]
      %v274 = vld [vmem:[%s209 + $0x98] sm:$0xff]
      %v275 = vld [vmem:[%s209 + $0xa0] sm:$0xff]
      %v276 = vld [vmem:[%s209 + $0xa8] sm:$0xff]
      %v277 = vld [vmem:[%s209 + $0xb0] sm:$0xff]
      %v278 = vld [vmem:[%s209 + $0xb8] sm:$0xff]
      %v279 = vld [vmem:[%s209 + $0xc0] sm:$0xff]
      %v280 = vld [vmem:[%s209 + $0xc8] sm:$0xff]
      %v281 = vld [vmem:[%s209 + $0xd0] sm:$0xff]
      %v282 = vld [vmem:[%s209 + $0xd8] sm:$0xff]
      %v283 = vld [vmem:[%s209 + $0xe0] sm:$0xff]
      %v284 = vld [vmem:[%s209 + $0xe8] sm:$0xff]
      %v285 = vld [vmem:[%s209 + $0xf0] sm:$0xff]
      %v286 = vld [vmem:[%s209 + $0xf8] sm:$0xff]
      %v287 = vld [vmem:[%s2] sm:$0x1]
      %v289 = vlaneseq
      %v290 = vshrl.u32 %v289, 7
      %v291 = vsub.s32 0, %v290
      %v292 = vrot.slane %v287, %v291
      %v294 = vmul.f32 %v255, %v292
      %v295 = vmul.f32 %v256, %v292
      %v296 = vmul.f32 %v257, %v292
      %v297 = vmul.f32 %v258, %v292
      %v298 = vmul.f32 %v259, %v292
      %v299 = vmul.f32 %v260, %v292
      %v300 = vmul.f32 %v261, %v292
      %v301 = vmul.f32 %v262, %v292
      %v302 = vmul.f32 %v263, %v292
      %v303 = vmul.f32 %v264, %v292
      %v304 = vmul.f32 %v265, %v292
      %v305 = vmul.f32 %v266, %v292
      %v306 = vmul.f32 %v267, %v292
      %v307 = vmul.f32 %v268, %v292
      %v308 = vmul.f32 %v269, %v292
      %v309 = vmul.f32 %v270, %v292
      %v310 = vmul.f32 %v271, %v292
      %v311 = vmul.f32 %v272, %v292
      %v312 = vmul.f32 %v273, %v292
      %v313 = vmul.f32 %v274, %v292
      %v314 = vmul.f32 %v275, %v292
      %v315 = vmul.f32 %v276, %v292
      %v316 = vmul.f32 %v277, %v292
      %v317 = vmul.f32 %v278, %v292
      %v318 = vmul.f32 %v279, %v292
      %v319 = vmul.f32 %v280, %v292
      %v320 = vmul.f32 %v281, %v292
      %v321 = vmul.f32 %v282, %v292
      %v322 = vmul.f32 %v283, %v292
      %v323 = vmul.f32 %v284, %v292
      %v324 = vmul.f32 %v285, %v292
      %v325 = vmul.f32 %v286, %v292
      %v326 = vld [vmem:[%s3] sm:$0x1]
      %v328 = vlaneseq
      %v329 = vshrl.u32 %v328, 7
      %v330 = vsub.s32 0, %v329
      %v331 = vrot.slane %v326, %v330
      %v333 = vadd.f32 %v294, %v331
      %v334 = vadd.f32 %v295, %v331
      %v335 = vadd.f32 %v296, %v331
      %v336 = vadd.f32 %v297, %v331
      %v337 = vadd.f32 %v298, %v331
      %v338 = vadd.f32 %v299, %v331
      %v339 = vadd.f32 %v300, %v331
      %v340 = vadd.f32 %v301, %v331
      %v341 = vadd.f32 %v302, %v331
      %v342 = vadd.f32 %v303, %v331
      %v343 = vadd.f32 %v304, %v331
      %v344 = vadd.f32 %v305, %v331
      %v345 = vadd.f32 %v306, %v331
      %v346 = vadd.f32 %v307, %v331
      %v347 = vadd.f32 %v308, %v331
      %v348 = vadd.f32 %v309, %v331
      %v349 = vadd.f32 %v310, %v331
      %v350 = vadd.f32 %v311, %v331
      %v351 = vadd.f32 %v312, %v331
      %v352 = vadd.f32 %v313, %v331
      %v353 = vadd.f32 %v314, %v331
      %v354 = vadd.f32 %v315, %v331
      %v355 = vadd.f32 %v316, %v331
      %v356 = vadd.f32 %v317, %v331
      %v357 = vadd.f32 %v318, %v331
      %v358 = vadd.f32 %v319, %v331
      %v359 = vadd.f32 %v320, %v331
      %v360 = vadd.f32 %v321, %v331
      %v361 = vadd.f32 %v322, %v331
      %v362 = vadd.f32 %v323, %v331
      %v363 = vadd.f32 %v324, %v331
      %v364 = vadd.f32 %v325, %v331
      %v365 = vmax.f32 %v333, 0.0
      %v366 = vmax.f32 %v334, 0.0
      %v367 = vmax.f32 %v335, 0.0
      %v368 = vmax.f32 %v336, 0.0
      %v369 = vmax.f32 %v337, 0.0
      %v370 = vmax.f32 %v338, 0.0
      %v371 = vmax.f32 %v339, 0.0
      %v372 = vmax.f32 %v340, 0.0
      %v373 = vmax.f32 %v341, 0.0
      %v374 = vmax.f32 %v342, 0.0
      %v375 = vmax.f32 %v343, 0.0
      %v376 = vmax.f32 %v344, 0.0
      %v377 = vmax.f32 %v345, 0.0
      %v378 = vmax.f32 %v346, 0.0
      %v379 = vmax.f32 %v347, 0.0
      %v380 = vmax.f32 %v348, 0.0
      %v381 = vmax.f32 %v349, 0.0
      %v382 = vmax.f32 %v350, 0.0
      %v383 = vmax.f32 %v351, 0.0
      %v384 = vmax.f32 %v352, 0.0
      %v385 = vmax.f32 %v353, 0.0
      %v386 = vmax.f32 %v354, 0.0
      %v387 = vmax.f32 %v355, 0.0
      %v388 = vmax.f32 %v356, 0.0
      %v389 = vmax.f32 %v357, 0.0
      %v390 = vmax.f32 %v358, 0.0
      %v391 = vmax.f32 %v359, 0.0
      %v392 = vmax.f32 %v360, 0.0
      %v393 = vmax.f32 %v361, 0.0
      %v394 = vmax.f32 %v362, 0.0
      %v395 = vmax.f32 %v363, 0.0
      %v396 = vmax.f32 %v364, 0.0
      %v397 = vadd.f32 %v223, %v365
      %v398 = vadd.f32 %v224, %v366
      %v399 = vadd.f32 %v225, %v367
      %v400 = vadd.f32 %v226, %v368
      %v401 = vadd.f32 %v227, %v369
      %v402 = vadd.f32 %v228, %v370
      %v403 = vadd.f32 %v229, %v371
      %v404 = vadd.f32 %v230, %v372
      %v405 = vadd.f32 %v231, %v373
      %v406 = vadd.f32 %v232, %v374
      %v407 = vadd.f32 %v233, %v375
      %v408 = vadd.f32 %v234, %v376
      %v409 = vadd.f32 %v235, %v377
      %v410 = vadd.f32 %v236, %v378
      %v411 = vadd.f32 %v237, %v379
      %v412 = vadd.f32 %v238, %v380
      %v413 = vadd.f32 %v239, %v381
      %v414 = vadd.f32 %v240, %v382
      %v415 = vadd.f32 %v241, %v383
      %v416 = vadd.f32 %v242, %v384
      %v417 = vadd.f32 %v243, %v385
      %v418 = vadd.f32 %v244, %v386
      %v419 = vadd.f32 %v245, %v387
      %v420 = vadd.f32 %v246, %v388
      %v421 = vadd.f32 %v247, %v389
      %v422 = vadd.f32 %v248, %v390
      %v423 = vadd.f32 %v249, %v391
      %v424 = vadd.f32 %v250, %v392
      %v425 = vadd.f32 %v251, %v393
      %v426 = vadd.f32 %v252, %v394
      %v427 = vadd.f32 %v253, %v395
      %v428 = vadd.f32 %v254, %v396
      %429 = vst [vmem:[%s221] sm:$0xff] %v397
      %430 = vst [vmem:[%s221 + $0x8] sm:$0xff] %v398
      %431 = vst [vmem:[%s221 + $0x10] sm:$0xff] %v399
      %432 = vst [vmem:[%s221 + $0x18] sm:$0xff] %v400
      %433 = vst [vmem:[%s221 + $0x20] sm:$0xff] %v401
      %434 = vst [vmem:[%s221 + $0x28] sm:$0xff] %v402
      %435 = vst [vmem:[%s221 + $0x30] sm:$0xff] %v403
      %436 = vst [vmem:[%s221 + $0x38] sm:$0xff] %v404
      %437 = vst [vmem:[%s221 + $0x40] sm:$0xff] %v405
      %438 = vst [vmem:[%s221 + $0x48] sm:$0xff] %v406
      %439 = vst [vmem:[%s221 + $0x50] sm:$0xff] %v407
      %440 = vst [vmem:[%s221 + $0x58] sm:$0xff] %v408
      %441 = vst [vmem:[%s221 + $0x60] sm:$0xff] %v409
      %442 = vst [vmem:[%s221 + $0x68] sm:$0xff] %v410
      %443 = vst [vmem:[%s221 + $0x70] sm:$0xff] %v411
      %444 = vst [vmem:[%s221 + $0x78] sm:$0xff] %v412
      %445 = vst [vmem:[%s221 + $0x80] sm:$0xff] %v413
      %446 = vst [vmem:[%s221 + $0x88] sm:$0xff] %v414
      %447 = vst [vmem:[%s221 + $0x90] sm:$0xff] %v415
      %448 = vst [vmem:[%s221 + $0x98] sm:$0xff] %v416
      %449 = vst [vmem:[%s221 + $0xa0] sm:$0xff] %v417
      %450 = vst [vmem:[%s221 + $0xa8] sm:$0xff] %v418
      %451 = vst [vmem:[%s221 + $0xb0] sm:$0xff] %v419
      %452 = vst [vmem:[%s221 + $0xb8] sm:$0xff] %v420
      %453 = vst [vmem:[%s221 + $0xc0] sm:$0xff] %v421
      %454 = vst [vmem:[%s221 + $0xc8] sm:$0xff] %v422
      %455 = vst [vmem:[%s221 + $0xd0] sm:$0xff] %v423
      %456 = vst [vmem:[%s221 + $0xd8] sm:$0xff] %v424
      %457 = vst [vmem:[%s221 + $0xe0] sm:$0xff] %v425
      %458 = vst [vmem:[%s221 + $0xe8] sm:$0xff] %v426
      %459 = vst [vmem:[%s221 + $0xf0] sm:$0xff] %v427
      %460 = vst [vmem:[%s221 + $0xf8] sm:$0xff] %v428
      %s461 = smul.u32 32, %s15
      %p462 = scmp.lt.s32.totalorder %s461, 127
      %s463 = scalar_select %p462, %s461, 127
      %s464 = smul.addr %s463, 8
      %s465 = scalar_lea.vmem %s4, %s464
      // Predicated region
      $region37: #{bottleneck_forward.5} parent=35 // pred_check
        %p466 = pneg %p127
      $region38: #{bottleneck_forward.5} parent=35 // pred_check_branch
        %468 = sbr.rel (%p466) target = $region40
      $region39: #{bottleneck_forward.5} parent=35 // pred_region
        %s469 = smul.u32 32, %s15
      $region40: #{bottleneck_forward.5} parent=35 // pred_fallthru
        _
    $region36: #{bottleneck_forward.5} parent=5 // pred_fallthru
      _
    %p470 = scmp.le.s32.totalorder 2, %s10
    // Predicated region
    $region41: #{bottleneck_forward.5} parent=5 // pred_check
      %p471 = pneg %p470
    $region42: #{bottleneck_forward.5} parent=5 // pred_check_branch
      %473 = sbr.rel (%p471) target = $region44
    $region43: #{bottleneck_forward.5} parent=5 // pred_region
      %s474 = ssub.s32 %s10, 2
      // Predicated region
      $region45: #{bottleneck_forward.5} parent=43 // pred_check
        %p475 = pneg %p133
      $region46: #{bottleneck_forward.5} parent=43 // pred_check_branch
        %477 = sbr.rel (%p475) target = $region48
      $region47: #{bottleneck_forward.5} parent=43 // pred_region
        %s478 = smul.u32 32, %s16
        %p479 = scmp.lt.s32.totalorder %s478, 127
        %s480 = scalar_select %p479, %s478, 127
        %s481 = smul.addr %s480, 8
        %s482 = scalar_lea.vmem %s4, %s481
      $region48: #{bottleneck_forward.5} parent=43 // pred_fallthru
        _
    $region44: #{bottleneck_forward.5} parent=5 // pred_fallthru
      _
  $region6: #{bottleneck_forward.5} parent=0 // loop_footer
    %s14 = sadd.s32 1, %s10
  $region7: #{bottleneck_forward.5} parent=0 // loop_footer_branch
    %9 = sbr.rel target = $region3
  $region8: #{bottleneck_forward.5} parent=0 // loop_exit
    _

// kernel: bottleneck_forward.4
$region0: #{bottleneck_forward.4}
  #allocation0 [shape = 'u32[]', space=smem, size = 0x4, offset = 0x4, fixed_abs, tag = 'smem constant byte address 0x4 - core index']
  #allocation1 [shape = 'u32[144,128]{1,0:T(1,128)}', space=vmem, size = 0x12000, scoped, tag = 'internal scratch']
  #allocation2 [shape = 'f32[288,384]{1,0:T(8,128)}', space=vmem, size = 0x6c000, scoped, tag = 'scratch operand']
  %s0 = inlined_call_operand.vmem [shape: f32[1024,128], index: 0, kind: input, shape index: {}]
  %s1 = inlined_call_operand.vmem [shape: f32[128,128], index: 1, kind: input, shape index: {}]
  %s2 = inlined_call_operand.vmem [shape: f32[1,128], index: 2, kind: input, shape index: {}]
  %s3 = inlined_call_operand.vmem [shape: f32[1,128], index: 3, kind: input, shape index: {}]
  %s4 = inlined_call_operand.vmem [shape: f32[3,384,128], index: 4, kind: input, shape index: {}]
  %s5 = inlined_call_operand.vmem [shape: f32[2,256,1], index: 5, kind: input, shape index: {}]
  %s6 = inlined_call_operand.vmem [shape: f32[1024,128], index: 6, kind: output, shape index: {0}]
  %s7 = inlined_call_operand.vmem [shape: f32[16,128], index: 7, kind: output, shape index: {1}]
  %8 = xla_tuple %s6, %s7
  %s9 = sld [smem:[#allocation0]]
  $region69: #{bottleneck_forward.4} parent=0
    _
  %s11 = ssub.s32 1, %s9
  %s12 = scalar_select 0, %s11, %s9
  loop: start=0, step=1, limit=6
  $region2: #{bottleneck_forward.4} parent=0 // loop_pre_header
    _
  $region3: #{bottleneck_forward.4} parent=0 // loop_header
    %s14 = sphi 0, %s18
    %p15 = scmp.ge.s32.totalorder %s14, 6
    %s21 = sphi 0, %s33
    %s22 = sphi 0, %s29
    %s23 = sphi 0, %s21
    %s24 = sphi 0, %s22
    %s25 = sphi 0, %s23
    %s26 = sphi 0, %s24
    %s40 = sphi 0, %s42
    %s43 = sphi 0, %s40
    %s44 = sphi 0, %s43
    %s60 = sphi 0, %s44
    %s64 = sphi 0, %s64
    %s66 = sphi 0, %s64
    %s67 = sphi 0, %s66
    %s81 = sphi 0, %s67
    %s85 = sphi 0, %s85
    %s87 = sphi 0, %s85
    %s88 = sphi 0, %s87
    %s102 = sphi 0, %s88
    %s106 = sphi 0, %s106
    %s108 = sphi 0, %s106
    %s109 = sphi 0, %s108
    %s123 = sphi 0, %s109
    %s127 = sphi 0, %s127
    %s129 = sphi 0, %s127
    %s130 = sphi 0, %s129
    %s144 = sphi 0, %s130
    %s148 = sphi 0, %s148
    %s150 = sphi 0, %s148
    %s151 = sphi 0, %s150
    %s165 = sphi 0, %s151
    %s175 = sphi 0, %s177
    %s178 = sphi 0, %s175
    %s179 = sphi 0, %s178
    %s195 = sphi 0, %s179
    %s201 = sphi 0, %s203
    %s204 = sphi 0, %s201
    %s205 = sphi 0, %s204
    %s221 = sphi 0, %s205
  $region4: #{bottleneck_forward.4} parent=0 // loop_header_branch
    %17 = sbr.rel (%p15) target = $region8
  $region5: #{bottleneck_forward.4} parent=0 // loop_body
    %s19 = ssub.s32 %s14, 1
    %s20 = ssub.s32 %s14, 2
    %s27 = sadd.s32 1, %s22
    %p28 = scmp.ge.s32.totalorder %s27, 2
    %s29 = scalar_select %p28, 0, %s27
    %s30 = sadd.s32 1, %s21
    %s31 = scalar_select %p28, %s30, %s21
    %p32 = scmp.ge.s32.totalorder %s31, 2
    %s33 = scalar_select %p32, 0, %s31
    %s34 = smul.u32 %s21, 2
    %s35 = sadd.s32 %s34, %s22
    %s36 = smul.u32 %s33, 2
    %s37 = sadd.s32 %s36, %s29
    %s38 = ssub.s32 %s35, %s37
    %p39 = scmp.eq.s32.totalorder %s38, 0
    %s41 = sadd.s32 %s40, 1
    %s42 = scalar_select %p39, %s40, %s41
    %p45 = pneg %p39
    %p46 = scmp.eq.s32.totalorder %s14, 3
    %p47 = por %p45, %p46
    %p48 = scmp.ne.s32.totalorder %s40, %s43
    %p49 = scmp.eq.s32.totalorder %s14, 0
    %p50 = por %p48, %p49
    %p51 = scmp.ne.s32.totalorder %s40, %s43
    %p52 = scmp.eq.s32.totalorder %s19, 3
    %p53 = por %p51, %p52
    %p54 = scmp.ne.s32.totalorder %s43, %s44
    %p55 = scmp.eq.s32.totalorder %s19, 0
    %p56 = por %p54, %p55
    %p57 = scmp.ne.s32.totalorder %s43, %s44
    %p58 = scmp.eq.s32.totalorder %s20, 3
    %p59 = por %p57, %p58
    %p61 = scmp.ne.s32.totalorder %s44, %s60
    %p62 = scmp.eq.s32.totalorder %s20, 0
    %p63 = por %p61, %p62
    %s65 = sadd.s32 %s64, 1
    %p68 = scmp.eq.s32.totalorder %s14, 3
    %p69 = scmp.ne.s32.totalorder %s64, %s66
    %p70 = scmp.eq.s32.totalorder %s14, 0
    %p71 = por %p69, %p70
    %p72 = scmp.ne.s32.totalorder %s64, %s66
    %p73 = scmp.eq.s32.totalorder %s19, 3
    %p74 = por %p72, %p73
    %p75 = scmp.ne.s32.totalorder %s66, %s67
    %p76 = scmp.eq.s32.totalorder %s19, 0
    %p77 = por %p75, %p76
    %p78 = scmp.ne.s32.totalorder %s66, %s67
    %p79 = scmp.eq.s32.totalorder %s20, 3
    %p80 = por %p78, %p79
    %p82 = scmp.ne.s32.totalorder %s67, %s81
    %p83 = scmp.eq.s32.totalorder %s20, 0
    %p84 = por %p82, %p83
    %s86 = sadd.s32 %s85, 1
    %p89 = scmp.eq.s32.totalorder %s14, 3
    %p90 = scmp.ne.s32.totalorder %s85, %s87
    %p91 = scmp.eq.s32.totalorder %s14, 0
    %p92 = por %p90, %p91
    %p93 = scmp.ne.s32.totalorder %s85, %s87
    %p94 = scmp.eq.s32.totalorder %s19, 3
    %p95 = por %p93, %p94
    %p96 = scmp.ne.s32.totalorder %s87, %s88
    %p97 = scmp.eq.s32.totalorder %s19, 0
    %p98 = por %p96, %p97
    %p99 = scmp.ne.s32.totalorder %s87, %s88
    %p100 = scmp.eq.s32.totalorder %s20, 3
    %p101 = por %p99, %p100
    %p103 = scmp.ne.s32.totalorder %s88, %s102
    %p104 = scmp.eq.s32.totalorder %s20, 0
    %p105 = por %p103, %p104
    %s107 = sadd.s32 %s106, 1
    %p110 = scmp.eq.s32.totalorder %s14, 3
    %p111 = scmp.ne.s32.totalorder %s106, %s108
    %p112 = scmp.eq.s32.totalorder %s14, 0
    %p113 = por %p111, %p112
    %p114 = scmp.ne.s32.totalorder %s106, %s108
    %p115 = scmp.eq.s32.totalorder %s19, 3
    %p116 = por %p114, %p115
    %p117 = scmp.ne.s32.totalorder %s108, %s109
    %p118 = scmp.eq.s32.totalorder %s19, 0
    %p119 = por %p117, %p118
    %p120 = scmp.ne.s32.totalorder %s108, %s109
    %p121 = scmp.eq.s32.totalorder %s20, 3
    %p122 = por %p120, %p121
    %p124 = scmp.ne.s32.totalorder %s109, %s123
    %p125 = scmp.eq.s32.totalorder %s20, 0
    %p126 = por %p124, %p125
    %s128 = sadd.s32 %s127, 1
    %p131 = scmp.eq.s32.totalorder %s14, 3
    %p132 = scmp.ne.s32.totalorder %s127, %s129
    %p133 = scmp.eq.s32.totalorder %s14, 0
    %p134 = por %p132, %p133
    %p135 = scmp.ne.s32.totalorder %s127, %s129
    %p136 = scmp.eq.s32.totalorder %s19, 3
    %p137 = por %p135, %p136
    %p138 = scmp.ne.s32.totalorder %s129, %s130
    %p139 = scmp.eq.s32.totalorder %s19, 0
    %p140 = por %p138, %p139
    %p141 = scmp.ne.s32.totalorder %s129, %s130
    %p142 = scmp.eq.s32.totalorder %s20, 3
    %p143 = por %p141, %p142
    %p145 = scmp.ne.s32.totalorder %s130, %s144
    %p146 = scmp.eq.s32.totalorder %s20, 0
    %p147 = por %p145, %p146
    %s149 = sadd.s32 %s148, 1
    %p152 = scmp.eq.s32.totalorder %s14, 3
    %p153 = scmp.ne.s32.totalorder %s148, %s150
    %p154 = scmp.eq.s32.totalorder %s14, 0
    %p155 = por %p153, %p154
    %p156 = scmp.ne.s32.totalorder %s148, %s150
    %p157 = scmp.eq.s32.totalorder %s19, 3
    %p158 = por %p156, %p157
    %p159 = scmp.ne.s32.totalorder %s150, %s151
    %p160 = scmp.eq.s32.totalorder %s19, 0
    %p161 = por %p159, %p160
    %p162 = scmp.ne.s32.totalorder %s150, %s151
    %p163 = scmp.eq.s32.totalorder %s20, 3
    %p164 = por %p162, %p163
    %p166 = scmp.ne.s32.totalorder %s151, %s165
    %p167 = scmp.eq.s32.totalorder %s20, 0
    %p168 = por %p166, %p167
    %s169 = smul.u32 %s21, 2
    %s170 = sadd.s32 %s169, %s22
    %s171 = smul.u32 %s33, 2
    %s172 = sadd.s32 %s171, %s29
    %s173 = ssub.s32 %s170, %s172
    %p174 = scmp.eq.s32.totalorder %s173, 0
    %s176 = sadd.s32 %s175, 1
    %s177 = scalar_select %p174, %s175, %s176
    %p180 = pneg %p174
    %p181 = scmp.eq.s32.totalorder %s14, 3
    %p182 = por %p180, %p181
    %p183 = scmp.ne.s32.totalorder %s175, %s178
    %p184 = scmp.eq.s32.totalorder %s14, 0
    %p185 = por %p183, %p184
    %p186 = scmp.ne.s32.totalorder %s175, %s178
    %p187 = scmp.eq.s32.totalorder %s19, 3
    %p188 = por %p186, %p187
    %p189 = scmp.ne.s32.totalorder %s178, %s179
    %p190 = scmp.eq.s32.totalorder %s19, 0
    %p191 = por %p189, %p190
    %p192 = scmp.ne.s32.totalorder %s178, %s179
    %p193 = scmp.eq.s32.totalorder %s20, 3
    %p194 = por %p192, %p193
    %p196 = scmp.ne.s32.totalorder %s179, %s195
    %p197 = scmp.eq.s32.totalorder %s20, 0
    %p198 = por %p196, %p197
    %s199 = ssub.s32 %s21, %s33
    %p200 = scmp.eq.s32.totalorder %s199, 0
    %s202 = sadd.s32 %s201, 1
    %s203 = scalar_select %p200, %s201, %s202
    %p206 = pneg %p200
    %p207 = scmp.eq.s32.totalorder %s14, 3
    %p208 = por %p206, %p207
    %p209 = scmp.ne.s32.totalorder %s201, %s204
    %p210 = scmp.eq.s32.totalorder %s14, 0
    %p211 = por %p209, %p210
    %p212 = scmp.ne.s32.totalorder %s201, %s204
    %p213 = scmp.eq.s32.totalorder %s19, 3
    %p214 = por %p212, %p213
    %p215 = scmp.ne.s32.totalorder %s204, %s205
    %p216 = scmp.eq.s32.totalorder %s19, 0
    %p217 = por %p215, %p216
    %p218 = scmp.ne.s32.totalorder %s204, %s205
    %p219 = scmp.eq.s32.totalorder %s20, 3
    %p220 = por %p218, %p219
    %p222 = scmp.ne.s32.totalorder %s205, %s221
    %p223 = scmp.eq.s32.totalorder %s20, 0
    %p224 = por %p222, %p223
    %p225 = scmp.le.s32.totalorder 1, %s14
    %p226 = scmp.lt.s32.totalorder %s14, 5
    %p227 = pnand %p225, %p226
    %p228 = pneg %p227
    // Predicated region
    $region9: #{bottleneck_forward.4} parent=5 // pred_check
      _
    $region10: #{bottleneck_forward.4} parent=5 // pred_check_branch
      %230 = sbr.rel (%p227) target = $region12
    $region11: #{bottleneck_forward.4} parent=5 // pred_region
      %s231 = ssub.s32 %s14, 1
      // Predicated region
      $region13: #{bottleneck_forward.4} parent=11 // pred_check
        %p232 = pneg %p77
      $region14: #{bottleneck_forward.4} parent=11 // pred_check_branch
        %234 = sbr.rel (%p232) target = $region16
      $region15: #{bottleneck_forward.4} parent=11 // pred_region
        _
      $region16: #{bottleneck_forward.4} parent=11 // pred_fallthru
        _
      // Predicated region
      $region17: #{bottleneck_forward.4} parent=11 // pred_check
        %p235 = pneg %p98
      $region18: #{bottleneck_forward.4} parent=11 // pred_check_branch
        %237 = sbr.rel (%p235) target = $region20
      $region19: #{bottleneck_forward.4} parent=11 // pred_region
        _
      $region20: #{bottleneck_forward.4} parent=11 // pred_fallthru
        _
      // Predicated region
      $region21: #{bottleneck_forward.4} parent=11 // pred_check
        %p238 = pneg %p119
      $region22: #{bottleneck_forward.4} parent=11 // pred_check_branch
        %240 = sbr.rel (%p238) target = $region24
      $region23: #{bottleneck_forward.4} parent=11 // pred_region
        _
      $region24: #{bottleneck_forward.4} parent=11 // pred_fallthru
        _
      // Predicated region
      $region25: #{bottleneck_forward.4} parent=11 // pred_check
        %p241 = pneg %p140
      $region26: #{bottleneck_forward.4} parent=11 // pred_check_branch
        %243 = sbr.rel (%p241) target = $region28
      $region27: #{bottleneck_forward.4} parent=11 // pred_region
        _
      $region28: #{bottleneck_forward.4} parent=11 // pred_fallthru
        _
      // Predicated region
      $region29: #{bottleneck_forward.4} parent=11 // pred_check
        %p244 = pneg %p161
      $region30: #{bottleneck_forward.4} parent=11 // pred_check_branch
        %246 = sbr.rel (%p244) target = $region32
      $region31: #{bottleneck_forward.4} parent=11 // pred_region
        _
      $region32: #{bottleneck_forward.4} parent=11 // pred_fallthru
        _
    $region12: #{bottleneck_forward.4} parent=5 // pred_fallthru
      _
    %p247 = scmp.lt.s32.totalorder %s14, 4
    // Predicated region
    $region33: #{bottleneck_forward.4} parent=5 // pred_check
      %p248 = pneg %p247
    $region34: #{bottleneck_forward.4} parent=5 // pred_check_branch
      %250 = sbr.rel (%p248) target = $region36
    $region35: #{bottleneck_forward.4} parent=5 // pred_region
      // Predicated region
      $region37: #{bottleneck_forward.4} parent=35 // pred_check
        %p251 = pneg %p50
      $region38: #{bottleneck_forward.4} parent=35 // pred_check_branch
        %253 = sbr.rel (%p251) target = $region40
      $region39: #{bottleneck_forward.4} parent=35 // pred_region
        %s254 = smul.u32 %s21, 2
        %s255 = sadd.s32 %s254, %s22
        %s256 = smul.u32 32, %s255
        %p257 = scmp.lt.s32.totalorder %s256, 127
        %s258 = scalar_select %p257, %s256, 127
        %s259 = smul.addr %s258, 8
        %s260 = scalar_lea.vmem %s0, %s259
        %s261 = smul.u32 %s21, 2
        %s262 = sadd.s32 %s261, %s22
        %s263 = smul.u32 32, %s262
      $region40: #{bottleneck_forward.4} parent=35 // pred_fallthru
        _
    $region36: #{bottleneck_forward.4} parent=5 // pred_fallthru
      _
    %p264 = scmp.le.s32.totalorder 1, %s14
    %p265 = scmp.lt.s32.totalorder %s14, 5
    %p266 = pnand %p264, %p265
    %p267 = pneg %p266
    // Predicated region
    $region41: #{bottleneck_forward.4} parent=5 // pred_check
      _
    $region42: #{bottleneck_forward.4} parent=5 // pred_check_branch
      %269 = sbr.rel (%p266) target = $region44
    $region43: #{bottleneck_forward.4} parent=5 // pred_region
      %s270 = ssub.s32 %s14, 1
      %s271 = smul.u32 %s23, 2
      %s272 = sadd.s32 %s271, %s24
      %s273 = smul.u32 32, %s272
      %p274 = scmp.lt.s32.totalorder %s273, 127
      %s275 = scalar_select %p274, %s273, 127
      %s276 = smul.addr %s275, 8
      %s277 = scalar_lea.vmem %s0, %s276
      %p278 = pneg %p56
      %p279 = pneg %p53
      %p280 = pneg %p77
      %p281 = pneg %p74
      %p282 = pneg %p98
      %p283 = pneg %p95
      %p284 = pneg %p119
      %p285 = pneg %p116
      %p286 = pneg %p140
      %p287 = pneg %p137
      %p288 = pneg %p161
      %p289 = pneg %p158
      %p290 = pneg %p191
      %p291 = pneg %p188
      %s292 = smul.u32 %s23, 2
      %s293 = sadd.s32 %s292, %s24
      %s294 = smul.u32 32, %s293
      %p295 = scmp.lt.s32.totalorder %s294, 127
      %s296 = scalar_select %p295, %s294, 127
      %s297 = smul.addr %s296, 8
      %s298 = scalar_lea.vmem %s6, %s297
      %p299 = pneg %p217
      %p300 = pneg %p214
      %p301 = scmp.lt.s32.totalorder %s23, 1
      %s302 = scalar_select %p301, %s23, 1
      %s303 = smul.addr %s302, 8
      %s304 = scalar_lea.vmem %s7, %s303
      %s305 = smul.u32 %s23, 2
      %s306 = sadd.s32 %s305, %s24
      %s307 = smul.u32 32, %s306
      %p308 = scmp.lt.s32.totalorder %s307, 127
      %s309 = scalar_select %p308, %s307, 127
      %s310 = smul.addr %s309, 8
      %s311 = scalar_lea.vmem %s0, %s310
      %s312 = smul.u32 %s23, 2
      %s313 = sadd.s32 %s312, %s24
      %s314 = smul.u32 32, %s313
      %s315 = smul.u32 %s23, 2
      %s316 = sadd.s32 %s315, %s24
      %s317 = smul.u32 32, %s316
      %p318 = scmp.lt.s32.totalorder %s317, 127
      %s319 = scalar_select %p318, %s317, 127
      %s320 = smul.addr %s319, 8
      %s321 = scalar_lea.vmem %s6, %s320
      %s322 = smul.u32 %s23, 2
      %s323 = sadd.s32 %s322, %s24
      %s324 = smul.u32 32, %s323
      %p325 = scmp.lt.s32.totalorder %s23, 1
      %s326 = scalar_select %p325, %s23, 1
      %s327 = smul.addr %s326, 8
      %s328 = scalar_lea.vmem %s7, %s327
      %p329 = scmp.eq.s32.totalorder %s24, 0
      // Predicated region
      $region45: #{bottleneck_forward.4} parent=43 // pred_check
        %p330 = pneg %p329
      $region46: #{bottleneck_forward.4} parent=43 // pred_check_branch
        %332 = sbr.rel (%p330) target = $region48
      $region47: #{bottleneck_forward.4} parent=43 // pred_region
        %333 = vst [vmem:[%s328] sm:$0xff] 0.0
        %334 = vst [vmem:[#allocation2] sm:$0xff] 0.0
        %335 = vst [vmem:[#allocation2 + $0x8] sm:$0xff] 0.0
        %336 = vst [vmem:[#allocation2 + $0x10] sm:$0xff] 0.0
        %337 = vst [vmem:[#allocation2 + $0x18] sm:$0xff] 0.0
        %338 = vst [vmem:[#allocation2 + $0x20] sm:$0xff] 0.0
        %339 = vst [vmem:[#allocation2 + $0x28] sm:$0xff] 0.0
        %340 = vst [vmem:[#allocation2 + $0x330] sm:$0xff] 0.0
        %341 = vst [vmem:[#allocation2 + $0x338] sm:$0xff] 0.0
        %342 = vst [vmem:[#allocation2 + $0x340] sm:$0xff] 0.0
        %343 = vst [vmem:[#allocation2 + $0x348] sm:$0xff] 0.0
        %344 = vst [vmem:[#allocation2 + $0x350] sm:$0xff] 0.0
        %345 = vst [vmem:[#allocation2 + $0x358] sm:$0xff] 0.0
      $region48: #{bottleneck_forward.4} parent=43 // pred_fallthru
        _
      %v346 = vld [vmem:[%s311] sm:$0xff]
      %v347 = vld [vmem:[%s311 + $0x8] sm:$0xff]
      %v348 = vld [vmem:[%s311 + $0x10] sm:$0xff]
      %v349 = vld [vmem:[%s311 + $0x18] sm:$0xff]
      %v350 = vld [vmem:[%s311 + $0x20] sm:$0xff]
      %v351 = vld [vmem:[%s311 + $0x28] sm:$0xff]
      %v352 = vld [vmem:[%s311 + $0x30] sm:$0xff]
      %v353 = vld [vmem:[%s311 + $0x38] sm:$0xff]
      %v354 = vld [vmem:[%s311 + $0x40] sm:$0xff]
      %v355 = vld [vmem:[%s311 + $0x48] sm:$0xff]
      %v356 = vld [vmem:[%s311 + $0x50] sm:$0xff]
      %v357 = vld [vmem:[%s311 + $0x58] sm:$0xff]
      %v358 = vld [vmem:[%s311 + $0x60] sm:$0xff]
      %v359 = vld [vmem:[%s311 + $0x68] sm:$0xff]
      %v360 = vld [vmem:[%s311 + $0x70] sm:$0xff]
      %v361 = vld [vmem:[%s311 + $0x78] sm:$0xff]
      %v362 = vld [vmem:[%s311 + $0x80] sm:$0xff]
      %v363 = vld [vmem:[%s311 + $0x88] sm:$0xff]
      %v364 = vld [vmem:[%s311 + $0x90] sm:$0xff]
      %v365 = vld [vmem:[%s311 + $0x98] sm:$0xff]
      %v366 = vld [vmem:[%s311 + $0xa0] sm:$0xff]
      %v367 = vld [vmem:[%s311 + $0xa8] sm:$0xff]
      %v368 = vld [vmem:[%s311 + $0xb0] sm:$0xff]
      %v369 = vld [vmem:[%s311 + $0xb8] sm:$0xff]
      %v370 = vld [vmem:[%s311 + $0xc0] sm:$0xff]
      %v371 = vld [vmem:[%s311 + $0xc8] sm:$0xff]
      %v372 = vld [vmem:[%s311 + $0xd0] sm:$0xff]
      %v373 = vld [vmem:[%s311 + $0xd8] sm:$0xff]
      %v374 = vld [vmem:[%s311 + $0xe0] sm:$0xff]
      %v375 = vld [vmem:[%s311 + $0xe8] sm:$0xff]
      %v376 = vld [vmem:[%s311 + $0xf0] sm:$0xff]
      %v377 = vld [vmem:[%s311 + $0xf8] sm:$0xff]
      %v378 = vld [vmem:[%s1] sm:$0xff]
      %v379 = vld [vmem:[%s1 + $0x8] sm:$0xff]
      %v380 = vld [vmem:[%s1 + $0x10] sm:$0xff]
      %v381 = vld [vmem:[%s1 + $0x18] sm:$0xff]
      %v382 = vld [vmem:[%s1 + $0x20] sm:$0xff]
      %v383 = vld [vmem:[%s1 + $0x28] sm:$0xff]
      %v384 = vld [vmem:[%s1 + $0x30] sm:$0xff]
      %v385 = vld [vmem:[%s1 + $0x38] sm:$0xff]
      %v386 = vld [vmem:[%s1 + $0x40] sm:$0xff]
      %v387 = vld [vmem:[%s1 + $0x48] sm:$0xff]
      %v388 = vld [vmem:[%s1 + $0x50] sm:$0xff]
      %v389 = vld [vmem:[%s1 + $0x58] sm:$0xff]
      %v390 = vld [vmem:[%s1 + $0x60] sm:$0xff]
      %v391 = vld [vmem:[%s1 + $0x68] sm:$0xff]
      %v392 = vld [vmem:[%s1 + $0x70] sm:$0xff]
      %v393 = vld [vmem:[%s1 + $0x78] sm:$0xff]
      %394 = vmatprep.subr.mxu0 0.0
      %395 = vmatpush1.msra.mxu0 %v378
      %396 = vmatprep.subr.mxu0 0.0
      %397 = vmatpush1.msra.mxu0 %v379
      %398 = vmatprep.subr.mxu0 0.0
      %399 = vmatpush1.msra.mxu0 %v380
      %400 = vmatprep.subr.mxu0 0.0
      %401 = vmatpush1.msra.mxu0 %v381
      %402 = vmatprep.subr.mxu0 0.0
      %403 = vmatpush1.msra.mxu0 %v382
      %404 = vmatprep.subr.mxu0 0.0
      %405 = vmatpush1.msra.mxu0 %v383
      %406 = vmatprep.subr.mxu0 0.0
      %407 = vmatpush1.msra.mxu0 %v384
      %408 = vmatprep.subr.mxu0 0.0
      %409 = vmatpush1.msra.mxu0 %v385
      %410 = vmatprep.subr.mxu0 0.0
      %411 = vmatpush1.msra.mxu0 %v386
      %412 = vmatprep.subr.mxu0 0.0
      %413 = vmatpush1.msra.mxu0 %v387
      %414 = vmatprep.subr.mxu0 0.0
      %415 = vmatpush1.msra.mxu0 %v388
      %416 = vmatprep.subr.mxu0 0.0
      %417 = vmatpush1.msra.mxu0 %v389
      %418 = vmatprep.subr.mxu0 0.0
      %419 = vmatpush1.msra.mxu0 %v390
      %420 = vmatprep.subr.mxu0 0.0
      %421 = vmatpush1.msra.mxu0 %v391
      %422 = vmatprep.subr.mxu0 0.0
      %423 = vmatpush1.msra.mxu0 %v392
      %424 = vmatprep.subr.mxu0 0.0
      %425 = vmatpush1.msra.mxu0 %v393
      %426 = vmatprep.subr.mxu0 0.0
      %427 = vmatpush1.msra.mxu0 0.0
      %428 = vmatprep.subr.mxu0 0.0
      %429 = vmatpush1.msra.mxu0 0.0
      %430 = vmatprep.subr.mxu0 0.0
      %431 = vmatpush1.msra.mxu0 0.0
      %432 = vmatprep.subr.mxu0 0.0
      %433 = vmatpush1.msra.mxu0 0.0
      %434 = vmatprep.subr.mxu0 0.0
      %435 = vmatpush1.msra.mxu0 0.0
      %436 = vmatprep.subr.mxu0 0.0
      %437 = vmatpush1.msra.mxu0 0.0
      %438 = vmatprep.subr.mxu0 0.0
      %439 = vmatpush1.msra.mxu0 0.0
      %440 = vmatprep.subr.mxu0 0.0
      %441 = vmatpush1.msra.mxu0 0.0
      %442 = vmatprep.subr.mxu0 0.0
      %443 = vmatpush1.msra.mxu0 0.0
      %444 = vmatprep.subr.mxu0 0.0
      %445 = vmatpush1.msra.mxu0 0.0
      %446 = vmatprep.subr.mxu0 0.0
      %447 = vmatpush1.msra.mxu0 0.0
      %448 = vmatprep.subr.mxu0 0.0
      %449 = vmatpush1.msra.mxu0 0.0
      %450 = vmatprep.subr.mxu0 0.0
      %451 = vmatpush1.msra.mxu0 0.0
      %452 = vmatprep.subr.mxu0 0.0
      %453 = vmatpush1.msra.mxu0 0.0
      %454 = vmatprep.subr.mxu0 0.0
      %455 = vmatpush1.msra.mxu0 0.0
      %456 = vmatprep.subr.mxu0 0.0
      %457 = vmatpush1.msra.mxu0 0.0
      %458 = vmatprep.mubr.f32.mxu0 0.0
      %459 = vmatmul.mubr.f32.gmra.mrb[0].mxu0 %v346
      %v460 = vpop.f32.mrb[0].mxu0
      %v461 = vadd.f32 0.0, %v460
      %v462 = vpop.f32.mrb[0].mxu0
      %463 = vmatprep.mubr.f32.mxu0 0.0
      %464 = vmatmul.mubr.f32.gmra.mrb[0].mxu0 %v347
      %v465 = vpop.f32.mrb[0].mxu0
      %v466 = vadd.f32 0.0, %v465
      %v467 = vpop.f32.mrb[0].mxu0
      %468 = vmatprep.mubr.f32.mxu0 0.0
      %469 = vmatmul.mubr.f32.gmra.mrb[0].mxu0 %v348
      %v470 = vpop.f32.mrb[0].mxu0
      %v471 = vadd.f32 0.0, %v470
      %v472 = vpop.f32.mrb[0].mxu0
      %473 = vmatprep.mubr.f32.mxu0 0.0
      %474 = vmatmul.mubr.f32.gmra.mrb[0].mxu0 %v349
      %v475 = vpop.f32.mrb[0].mxu0
      %v476 = vadd.f32 0.0, %v475
      %v477 = vpop.f32.mrb[0].mxu0
      %478 = vmatprep.mubr.f32.mxu0 0.0
      %479 = vmatmul.mubr.f32.gmra.mrb[0].mxu0 %v350
      %v480 = vpop.f32.mrb[0].mxu0
      %v481 = vadd.f32 0.0, %v480
      %v482 = vpop.f32.mrb[0].mxu0
      %483 = vmatprep.mubr.f32.mxu0 0.0
      %484 = vmatmul.mubr.f32.gmra.mrb[0].mxu0 %v351
      %v485 = vpop.f32.mrb[0].mxu0
      %v486 = vadd.f32 0.0, %v485
      %v487 = vpop.f32.mrb[0].mxu0
      %488 = vmatprep.mubr.f32.mxu0 0.0
      %489 = vmatmul.mubr.f32.gmra.mrb[0].mxu0 %v352
      %v490 = vpop.f32.mrb[0].mxu0
      %v491 = vadd.f32 0.0, %v490
      %v492 = vpop.f32.mrb[0].mxu0
      %493 = vmatprep.mubr.f32.mxu0 0.0
      %494 = vmatmul.mubr.f32.gmra.mrb[0].mxu0 %v353
      %v495 = vpop.f32.mrb[0].mxu0
      %v496 = vadd.f32 0.0, %v495
      %v497 = vpop.f32.mrb[0].mxu0
      %498 = vmatprep.mubr.f32.mxu0 0.0
      %499 = vmatmul.mubr.f32.gmra.mrb[0].mxu0 %v354
      %v500 = vpop.f32.mrb[0].mxu0
      %v501 = vadd.f32 0.0, %v500
      %v502 = vpop.f32.mrb[0].mxu0
      %503 = vmatprep.mubr.f32.mxu0 0.0
      %504 = vmatmul.mubr.f32.gmra.mrb[0].mxu0 %v355
      %v505 = vpop.f32.mrb[0].mxu0
      %v506 = vadd.f32 0.0, %v505
      %v507 = vpop.f32.mrb[0].mxu0
      %508 = vmatprep.mubr.f32.mxu0 0.0
      %509 = vmatmul.mubr.f32.gmra.mrb[0].mxu0 %v356
      %v510 = vpop.f32.mrb[0].mxu0
      %v511 = vadd.f32 0.0, %v510
      %v512 = vpop.f32.mrb[0].mxu0
      %513 = vmatprep.mubr.f32.mxu0 0.0
      %514 = vmatmul.mubr.f32.gmra.mrb[0].mxu0 %v357
      %v515 = vpop.f32.mrb[0].mxu0
      %v516 = vadd.f32 0.0, %v515
      %v517 = vpop.f32.mrb[0].mxu0
      %518 = vmatprep.mubr.f32.mxu0 0.0
      %519 = vmatmul.mubr.f32.gmra.mrb[0].mxu0 %v358
      %v520 = vpop.f32.mrb[0].mxu0
      %v521 = vadd.f32 0.0, %v520
      %v522 = vpop.f32.mrb[0].mxu0
      %523 = vmatprep.mubr.f32.mxu0 0.0
      %524 = vmatmul.mubr.f32.gmra.mrb[0].mxu0 %v359
      %v525 = vpop.f32.mrb[0].mxu0
      %v526 = vadd.f32 0.0, %v525
      %v527 = vpop.f32.mrb[0].mxu0
      %528 = vmatprep.mubr.f32.mxu0 0.0
      %529 = vmatmul.mubr.f32.gmra.mrb[0].mxu0 %v360
      %v530 = vpop.f32.mrb[0].mxu0
      %v531 = vadd.f32 0.0, %v530
      %v532 = vpop.f32.mrb[0].mxu0
      %533 = vmatprep.mubr.f32.mxu0 0.0
      %534 = vmatmul.mubr.f32.gmra.mrb[0].mxu0 %v361
      %v535 = vpop.f32.mrb[0].mxu0
      %v536 = vadd.f32 0.0, %v535
      %v537 = vpop.f32.mrb[0].mxu0
      %538 = vmatprep.mubr.f32.mxu0 0.0
      %539 = vmatmul.mubr.f32.gmra.mrb[0].mxu0 %v362
      %v540 = vpop.f32.mrb[0].mxu0
      %v541 = vadd.f32 0.0, %v540
      %v542 = vpop.f32.mrb[0].mxu0
      %543 = vmatprep.mubr.f32.mxu0 0.0
      %544 = vmatmul.mubr.f32.gmra.mrb[0].mxu0 %v363
      %v545 = vpop.f32.mrb[0].mxu0
      %v546 = vadd.f32 0.0, %v545
      %v547 = vpop.f32.mrb[0].mxu0
      %548 = vmatprep.mubr.f32.mxu0 0.0
      %549 = vmatmul.mubr.f32.gmra.mrb[0].mxu0 %v364
      %v550 = vpop.f32.mrb[0].mxu0
      %v551 = vadd.f32 0.0, %v550
      %v552 = vpop.f32.mrb[0].mxu0
      %553 = vmatprep.mubr.f32.mxu0 0.0
      %554 = vmatmul.mubr.f32.gmra.mrb[0].mxu0 %v365
      %v555 = vpop.f32.mrb[0].mxu0
      %v556 = vadd.f32 0.0, %v555
      %v557 = vpop.f32.mrb[0].mxu0
      %558 = vmatprep.mubr.f32.mxu0 0.0
      %559 = vmatmul.mubr.f32.gmra.mrb[0].mxu0 %v366
      %v560 = vpop.f32.mrb[0].mxu0
      %v561 = vadd.f32 0.0, %v560
      %v562 = vpop.f32.mrb[0].mxu0
      %563 = vmatprep.mubr.f32.mxu0 0.0
      %564 = vmatmul.mubr.f32.gmra.mrb[0].mxu0 %v367
      %v565 = vpop.f32.mrb[0].mxu0
      %v566 = vadd.f32 0.0, %v565
      %v567 = vpop.f32.mrb[0].mxu0
      %568 = vmatprep.mubr.f32.mxu0 0.0
      %569 = vmatmul.mubr.f32.gmra.mrb[0].mxu0 %v368
      %v570 = vpop.f32.mrb[0].mxu0
      %v571 = vadd.f32 0.0, %v570
      %v572 = vpop.f32.mrb[0].mxu0
      %573 = vmatprep.mubr.f32.mxu0 0.0
      %574 = vmatmul.mubr.f32.gmra.mrb[0].mxu0 %v369
      %v575 = vpop.f32.mrb[0].mxu0
      %v576 = vadd.f32 0.0, %v575
      %v577 = vpop.f32.mrb[0].mxu0
      %578 = vmatprep.mubr.f32.mxu0 0.0
      %579 = vmatmul.mubr.f32.gmra.mrb[0].mxu0 %v370
      %v580 = vpop.f32.mrb[0].mxu0
      %v581 = vadd.f32 0.0, %v580
      %v582 = vpop.f32.mrb[0].mxu0
      %583 = vmatprep.mubr.f32.mxu0 0.0
      %584 = vmatmul.mubr.f32.gmra.mrb[0].mxu0 %v371
      %v585 = vpop.f32.mrb[0].mxu0
      %v586 = vadd.f32 0.0, %v585
      %v587 = vpop.f32.mrb[0].mxu0
      %588 = vmatprep.mubr.f32.mxu0 0.0
      %589 = vmatmul.mubr.f32.gmra.mrb[0].mxu0 %v372
      %v590 = vpop.f32.mrb[0].mxu0
      %v591 = vadd.f32 0.0, %v590
      %v592 = vpop.f32.mrb[0].mxu0
      %593 = vmatprep.mubr.f32.mxu0 0.0
      %594 = vmatmul.mubr.f32.gmra.mrb[0].mxu0 %v373
      %v595 = vpop.f32.mrb[0].mxu0
      %v596 = vadd.f32 0.0, %v595
      %v597 = vpop.f32.mrb[0].mxu0
      %598 = vmatprep.mubr.f32.mxu0 0.0
      %599 = vmatmul.mubr.f32.gmra.mrb[0].mxu0 %v374
      %v600 = vpop.f32.mrb[0].mxu0
      %v601 = vadd.f32 0.0, %v600
      %v602 = vpop.f32.mrb[0].mxu0
      %603 = vmatprep.mubr.f32.mxu0 0.0
      %604 = vmatmul.mubr.f32.gmra.mrb[0].mxu0 %v375
      %v605 = vpop.f32.mrb[0].mxu0
      %v606 = vadd.f32 0.0, %v605
      %v607 = vpop.f32.mrb[0].mxu0
      %608 = vmatprep.mubr.f32.mxu0 0.0
      %609 = vmatmul.mubr.f32.gmra.mrb[0].mxu0 %v376
      %v610 = vpop.f32.mrb[0].mxu0
      %v611 = vadd.f32 0.0, %v610
      %v612 = vpop.f32.mrb[0].mxu0
      %613 = vmatprep.mubr.f32.mxu0 0.0
      %614 = vmatmul.mubr.f32.gmra.mrb[0].mxu0 %v377
      %v615 = vpop.f32.mrb[0].mxu0
      %v616 = vadd.f32 0.0, %v615
      %v617 = vpop.f32.mrb[0].mxu0
      %618 = vdwg.mxu0
      %v619 = vld [vmem:[%s2] sm:$0x1]
      %v621 = vlaneseq
      %v622 = vshrl.u32 %v621, 7
      %v623 = vsub.s32 0, %v622
      %v624 = vrot.slane %v619, %v623
      %v626 = vmul.f32 %v461, %v624
      %v627 = vmul.f32 %v466, %v624
      %v628 = vmul.f32 %v471, %v624
      %v629 = vmul.f32 %v476, %v624
      %v630 = vmul.f32 %v481, %v624
      %v631 = vmul.f32 %v486, %v624
      %v632 = vmul.f32 %v491, %v624
      %v633 = vmul.f32 %v496, %v624
      %v634 = vmul.f32 %v501, %v624
      %v635 = vmul.f32 %v506, %v624
      %v636 = vmul.f32 %v511, %v624
      %v637 = vmul.f32 %v516, %v624
      %v638 = vmul.f32 %v521, %v624
      %v639 = vmul.f32 %v526, %v624
      %v640 = vmul.f32 %v531, %v624
      %v641 = vmul.f32 %v536, %v624
      %v642 = vmul.f32 %v541, %v624
      %v643 = vmul.f32 %v546, %v624
      %v644 = vmul.f32 %v551, %v624
      %v645 = vmul.f32 %v556, %v624
      %v646 = vmul.f32 %v561, %v624
      %v647 = vmul.f32 %v566, %v624
      %v648 = vmul.f32 %v571, %v624
      %v649 = vmul.f32 %v576, %v624
      %v650 = vmul.f32 %v581, %v624
      %v651 = vmul.f32 %v586, %v624
      %v652 = vmul.f32 %v591, %v624
      %v653 = vmul.f32 %v596, %v624
      %v654 = vmul.f32 %v601, %v624
      %v655 = vmul.f32 %v606, %v624
      %v656 = vmul.f32 %v611, %v624
      %v657 = vmul.f32 %v616, %v624
      %v658 = vld [vmem:[%s3] sm:$0x1]
      %v660 = vlaneseq
      %v661 = vshrl.u32 %v660, 7
      %v662 = vsub.s32 0, %v661
      %v663 = vrot.slane %v658, %v662
      %v665 = vadd.f32 %v626, %v663
      %v666 = vadd.f32 %v627, %v663
      %v667 = vadd.f32 %v628, %v663
      %v668 = vadd.f32 %v629, %v663
      %v669 = vadd.f32 %v630, %v663
      %v670 = vadd.f32 %v631, %v663
      %v671 = vadd.f32 %v632, %v663
      %v672 = vadd.f32 %v633, %v663
      %v673 = vadd.f32 %v634, %v663
      %v674 = vadd.f32 %v635, %v663
      %v675 = vadd.f32 %v636, %v663
      %v676 = vadd.f32 %v637, %v663
      %v677 = vadd.f32 %v638, %v663
      %v678 = vadd.f32 %v639, %v663
      %v679 = vadd.f32 %v640, %v663
      %v680 = vadd.f32 %v641, %v663
      %v681 = vadd.f32 %v642, %v663
      %v682 = vadd.f32 %v643, %v663
      %v683 = vadd.f32 %v644, %v663
      %v684 = vadd.f32 %v645, %v663
      %v685 = vadd.f32 %v646, %v663
      %v686 = vadd.f32 %v647, %v663
      %v687 = vadd.f32 %v648, %v663
      %v688 = vadd.f32 %v649, %v663
      %v689 = vadd.f32 %v650, %v663
      %v690 = vadd.f32 %v651, %v663
      %v691 = vadd.f32 %v652, %v663
      %v692 = vadd.f32 %v653, %v663
      %v693 = vadd.f32 %v654, %v663
      %v694 = vadd.f32 %v655, %v663
      %v695 = vadd.f32 %v656, %v663
      %v696 = vadd.f32 %v657, %v663
      %v697 = vmax.f32 %v665, 0.0
      %v698 = vmax.f32 %v666, 0.0
      %v699 = vmax.f32 %v667, 0.0
      %v700 = vmax.f32 %v668, 0.0
      %v701 = vmax.f32 %v669, 0.0
      %v702 = vmax.f32 %v670, 0.0
      %v703 = vmax.f32 %v671, 0.0
      %v704 = vmax.f32 %v672, 0.0
      %v705 = vmax.f32 %v673, 0.0
      %v706 = vmax.f32 %v674, 0.0
      %v707 = vmax.f32 %v675, 0.0
      %v708 = vmax.f32 %v676, 0.0
      %v709 = vmax.f32 %v677, 0.0
      %v710 = vmax.f32 %v678, 0.0
      %v711 = vmax.f32 %v679, 0.0
      %v712 = vmax.f32 %v680, 0.0
      %v713 = vmax.f32 %v681, 0.0
      %v714 = vmax.f32 %v682, 0.0
      %v715 = vmax.f32 %v683, 0.0
      %v716 = vmax.f32 %v684, 0.0
      %v717 = vmax.f32 %v685, 0.0
      %v718 = vmax.f32 %v686, 0.0
      %v719 = vmax.f32 %v687, 0.0
      %v720 = vmax.f32 %v688, 0.0
      %v721 = vmax.f32 %v689, 0.0
      %v722 = vmax.f32 %v690, 0.0
      %v723 = vmax.f32 %v691, 0.0
      %v724 = vmax.f32 %v692, 0.0
      %v725 = vmax.f32 %v693, 0.0
      %v726 = vmax.f32 %v694, 0.0
      %v727 = vmax.f32 %v695, 0.0
      %v728 = vmax.f32 %v696, 0.0
      %729 = vst [vmem:[#allocation2 + $0x38] sm:$0xff] %v697
      %730 = vst [vmem:[#allocation2 + $0x50] sm:$0xff] %v698
      %731 = vst [vmem:[#allocation2 + $0x68] sm:$0xff] %v699
      %732 = vst [vmem:[#allocation2 + $0x80] sm:$0xff] %v700
      %733 = vst [vmem:[#allocation2 + $0x98] sm:$0xff] %v701
      %734 = vst [vmem:[#allocation2 + $0xb0] sm:$0xff] %v702
      %735 = vst [vmem:[#allocation2 + $0xc8] sm:$0xff] %v703
      %736 = vst [vmem:[#allocation2 + $0xe0] sm:$0xff] %v704
      %737 = vst [vmem:[#allocation2 + $0xf8] sm:$0xff] %v705
      %738 = vst [vmem:[#allocation2 + $0x110] sm:$0xff] %v706
      %739 = vst [vmem:[#allocation2 + $0x128] sm:$0xff] %v707
      %740 = vst [vmem:[#allocation2 + $0x140] sm:$0xff] %v708
      %741 = vst [vmem:[#allocation2 + $0x158] sm:$0xff] %v709
      %742 = vst [vmem:[#allocation2 + $0x170] sm:$0xff] %v710
      %743 = vst [vmem:[#allocation2 + $0x188] sm:$0xff] %v711
      %744 = vst [vmem:[#allocation2 + $0x1a0] sm:$0xff] %v712
      %745 = vst [vmem:[#allocation2 + $0x1b8] sm:$0xff] %v713
      %746 = vst [vmem:[#allocation2 + $0x1d0] sm:$0xff] %v714
      %747 = vst [vmem:[#allocation2 + $0x1e8] sm:$0xff] %v715
      %748 = vst [vmem:[#allocation2 + $0x200] sm:$0xff] %v716
      %749 = vst [vmem:[#allocation2 + $0x218] sm:$0xff] %v717
      %750 = vst [vmem:[#allocation2 + $0x230] sm:$0xff] %v718
      %751 = vst [vmem:[#allocation2 + $0x248] sm:$0xff] %v719
      %752 = vst [vmem:[#allocation2 + $0x260] sm:$0xff] %v720
      %753 = vst [vmem:[#allocation2 + $0x278] sm:$0xff] %v721
      %754 = vst [vmem:[#allocation2 + $0x290] sm:$0xff] %v722
      %755 = vst [vmem:[#allocation2 + $0x2a8] sm:$0xff] %v723
      %756 = vst [vmem:[#allocation2 + $0x2c0] sm:$0xff] %v724
      %757 = vst [vmem:[#allocation2 + $0x2d8] sm:$0xff] %v725
      %758 = vst [vmem:[#allocation2 + $0x2f0] sm:$0xff] %v726
      %759 = vst [vmem:[#allocation2 + $0x308] sm:$0xff] %v727
      %760 = vst [vmem:[#allocation2 + $0x320] sm:$0xff] %v728
      %v761 = vld [vmem:[#allocation2 + $0x20] sm:$0x80]
      %v762 = vld [vmem:[#allocation2 + $0x38] sm:$0xff]
      %v763 = vld [vmem:[#allocation2 + $0x50] sm:$0xff]
      %v764 = vld [vmem:[#allocation2 + $0x68] sm:$0xff]
      %v765 = vld [vmem:[#allocation2 + $0x80] sm:$0xff]
      %v766 = vld [vmem:[#allocation2 + $0x98] sm:$0xff]
      %v767 = vld [vmem:[#allocation2 + $0xb0] sm:$0xff]
      %v768 = vld [vmem:[#allocation2 + $0xc8] sm:$0xff]
      %v769 = vld [vmem:[#allocation2 + $0xe0] sm:$0xff]
      %v770 = vld [vmem:[#allocation2 + $0xf8] sm:$0xff]
      %v771 = vld [vmem:[#allocation2 + $0x110] sm:$0xff]
      %v772 = vld [vmem:[#allocation2 + $0x128] sm:$0xff]
      %v773 = vld [vmem:[#allocation2 + $0x140] sm:$0xff]
      %v774 = vld [vmem:[#allocation2 + $0x158] sm:$0xff]
      %v775 = vld [vmem:[#allocation2 + $0x170] sm:$0xff]
      %v776 = vld [vmem:[#allocation2 + $0x188] sm:$0xff]
      %v777 = vld [vmem:[#allocation2 + $0x1a0] sm:$0xff]
      %v778 = vld [vmem:[#allocation2 + $0x1b8] sm:$0xff]
      %v779 = vld [vmem:[#allocation2 + $0x1d0] sm:$0xff]
      %v780 = vld [vmem:[#allocation2 + $0x1e8] sm:$0xff]
      %v781 = vld [vmem:[#allocation2 + $0x200] sm:$0xff]
      %v782 = vld [vmem:[#allocation2 + $0x218] sm:$0xff]
      %v783 = vld [vmem:[#allocation2 + $0x230] sm:$0xff]
      %v784 = vld [vmem:[#allocation2 + $0x248] sm:$0xff]
      %v785 = vld [vmem:[#allocation2 + $0x260] sm:$0xff]
      %v786 = vld [vmem:[#allocation2 + $0x278] sm:$0xff]
      %v787 = vld [vmem:[#allocation2 + $0x290] sm:$0xff]
      %v788 = vld [vmem:[#allocation2 + $0x2a8] sm:$0xff]
      %v789 = vld [vmem:[#allocation2 + $0x2c0] sm:$0xff]
      %v790 = vld [vmem:[#allocation2 + $0x2d8] sm:$0xff]
      %v791 = vld [vmem:[#allocation2 + $0x2f0] sm:$0xff]
      %v792 = vld [vmem:[#allocation2 + $0x308] sm:$0xff]
      %v793 = vld [vmem:[#allocation2 + $0x320] sm:$0x7f]
      %v794 = vld [vmem:[%s5] sm:$0xff]
      %v795 = vld [vmem:[%s5 + $0x8] sm:$0xff]
      %v796 = vld [vmem:[%s5 + $0x10] sm:$0xff]
      %v797 = vld [vmem:[%s5 + $0x18] sm:$0xff]
      %v798 = vld [vmem:[%s5 + $0x20] sm:$0xff]
      %v799 = vld [vmem:[%s5 + $0x28] sm:$0xff]
      %v800 = vld [vmem:[%s5 + $0x30] sm:$0xff]
      %v801 = vld [vmem:[%s5 + $0x38] sm:$0xff]
      %v802 = vld [vmem:[%s5 + $0x40] sm:$0xff]
      %v803 = vld [vmem:[%s5 + $0x48] sm:$0xff]
      %v804 = vld [vmem:[%s5 + $0x50] sm:$0xff]
      %v805 = vld [vmem:[%s5 + $0x58] sm:$0xff]
      %v806 = vld [vmem:[%s5 + $0x60] sm:$0xff]
      %v807 = vld [vmem:[%s5 + $0x68] sm:$0xff]
      %v808 = vld [vmem:[%s5 + $0x70] sm:$0xff]
      %v809 = vld [vmem:[%s5 + $0x78] sm:$0xff]
      %v810 = vld [vmem:[%s5 + $0x80] sm:$0xff]
      %v811 = vld [vmem:[%s5 + $0x88] sm:$0xff]
      %v812 = vld [vmem:[%s5 + $0x90] sm:$0xff]
      %v813 = vld [vmem:[%s5 + $0x98] sm:$0xff]
      %v814 = vld [vmem:[%s5 + $0xa0] sm:$0xff]
      %v815 = vld [vmem:[%s5 + $0xa8] sm:$0xff]
      %v816 = vld [vmem:[%s5 + $0xb0] sm:$0xff]
      %v817 = vld [vmem:[%s5 + $0xb8] sm:$0xff]
      %v818 = vld [vmem:[%s5 + $0xc0] sm:$0xff]
      %v819 = vld [vmem:[%s5 + $0xc8] sm:$0xff]
      %v820 = vld [vmem:[%s5 + $0xd0] sm:$0xff]
      %v821 = vld [vmem:[%s5 + $0xd8] sm:$0xff]
      %v822 = vld [vmem:[%s5 + $0xe0] sm:$0xff]
      %v823 = vld [vmem:[%s5 + $0xe8] sm:$0xff]
      %v824 = vld [vmem:[%s5 + $0xf0] sm:$0xff]
      %v825 = vld [vmem:[%s5 + $0xf8] sm:$0xff]
      %827 = vset.pattern.permute.xlu0 0
      %828 = vperm.xlu0 %827, %v794
      %v829 = vpop.permute.xlu0 %828
      %831 = vset.pattern.permute.xlu0 0
      %832 = vperm.xlu0 %831, %v795
      %v833 = vpop.permute.xlu0 %832
      %835 = vset.pattern.permute.xlu0 0
      %836 = vperm.xlu0 %835, %v796
      %v837 = vpop.permute.xlu0 %836
      %839 = vset.pattern.permute.xlu0 0
      %840 = vperm.xlu0 %839, %v797
      %v841 = vpop.permute.xlu0 %840
      %843 = vset.pattern.permute.xlu0 0
      %844 = vperm.xlu0 %843, %v798
      %v845 = vpop.permute.xlu0 %844
      %847 = vset.pattern.permute.xlu0 0
      %848 = vperm.xlu0 %847, %v799
      %v849 = vpop.permute.xlu0 %848
      %851 = vset.pattern.permute.xlu0 0
      %852 = vperm.xlu0 %851, %v800
      %v853 = vpop.permute.xlu0 %852
      %855 = vset.pattern.permute.xlu0 0
      %856 = vperm.xlu0 %855, %v801
      %v857 = vpop.permute.xlu0 %856
      %859 = vset.pattern.permute.xlu0 0
      %860 = vperm.xlu0 %859, %v802
      %v861 = vpop.permute.xlu0 %860
      %863 = vset.pattern.permute.xlu0 0
      %864 = vperm.xlu0 %863, %v803
      %v865 = vpop.permute.xlu0 %864
      %867 = vset.pattern.permute.xlu0 0
      %868 = vperm.xlu0 %867, %v804
      %v869 = vpop.permute.xlu0 %868
      %871 = vset.pattern.permute.xlu0 0
      %872 = vperm.xlu0 %871, %v805
      %v873 = vpop.permute.xlu0 %872
      %875 = vset.pattern.permute.xlu0 0
      %876 = vperm.xlu0 %875, %v806
      %v877 = vpop.permute.xlu0 %876
      %879 = vset.pattern.permute.xlu0 0
      %880 = vperm.xlu0 %879, %v807
      %v881 = vpop.permute.xlu0 %880
      %883 = vset.pattern.permute.xlu0 0
      %884 = vperm.xlu0 %883, %v808
      %v885 = vpop.permute.xlu0 %884
      %887 = vset.pattern.permute.xlu0 0
      %888 = vperm.xlu0 %887, %v809
      %v889 = vpop.permute.xlu0 %888
      %891 = vset.pattern.permute.xlu0 0
      %892 = vperm.xlu0 %891, %v810
      %v893 = vpop.permute.xlu0 %892
      %895 = vset.pattern.permute.xlu0 0
      %896 = vperm.xlu0 %895, %v811
      %v897 = vpop.permute.xlu0 %896
      %899 = vset.pattern.permute.xlu0 0
      %900 = vperm.xlu0 %899, %v812
      %v901 = vpop.permute.xlu0 %900
      %903 = vset.pattern.permute.xlu0 0
      %904 = vperm.xlu0 %903, %v813
      %v905 = vpop.permute.xlu0 %904
      %907 = vset.pattern.permute.xlu0 0
      %908 = vperm.xlu0 %907, %v814
      %v909 = vpop.permute.xlu0 %908
      %911 = vset.pattern.permute.xlu0 0
      %912 = vperm.xlu0 %911, %v815
      %v913 = vpop.permute.xlu0 %912
      %915 = vset.pattern.permute.xlu0 0
      %916 = vperm.xlu0 %915, %v816
      %v917 = vpop.permute.xlu0 %916
      %919 = vset.pattern.permute.xlu0 0
      %920 = vperm.xlu0 %919, %v817
      %v921 = vpop.permute.xlu0 %920
      %923 = vset.pattern.permute.xlu0 0
      %924 = vperm.xlu0 %923, %v818
      %v925 = vpop.permute.xlu0 %924
      %927 = vset.pattern.permute.xlu0 0
      %928 = vperm.xlu0 %927, %v819
      %v929 = vpop.permute.xlu0 %928
      %931 = vset.pattern.permute.xlu0 0
      %932 = vperm.xlu0 %931, %v820
      %v933 = vpop.permute.xlu0 %932
      %935 = vset.pattern.permute.xlu0 0
      %936 = vperm.xlu0 %935, %v821
      %v937 = vpop.permute.xlu0 %936
      %939 = vset.pattern.permute.xlu0 0
      %940 = vperm.xlu0 %939, %v822
      %v941 = vpop.permute.xlu0 %940
      %943 = vset.pattern.permute.xlu0 0
      %944 = vperm.xlu0 %943, %v823
      %v945 = vpop.permute.xlu0 %944
      %947 = vset.pattern.permute.xlu0 0
      %948 = vperm.xlu0 %947, %v824
      %v949 = vpop.permute.xlu0 %948
      %951 = vset.pattern.permute.xlu0 0
      %952 = vperm.xlu0 %951, %v825
      %v953 = vpop.permute.xlu0 %952
      %vm954 = vcmask 1046528
      %v955 = vrot.slane %v829, 1
      %v956 = vrot.slane %v833, 1
      %v957 = vsel %vm954, %v955, %v956
      %v958 = vrot.slane %v837, 1
      %v959 = vsel %vm954, %v956, %v958
      %v960 = vrot.slane %v841, 1
      %v961 = vsel %vm954, %v958, %v960
      %v962 = vrot.slane %v845, 1
      %v963 = vsel %vm954, %v960, %v962
      %v964 = vrot.slane %v849, 1
      %v965 = vsel %vm954, %v962, %v964
      %v966 = vrot.slane %v853, 1
      %v967 = vsel %vm954, %v964, %v966
      %v968 = vrot.slane %v857, 1
      %v969 = vsel %vm954, %v966, %v968
      %v970 = vrot.slane %v861, 1
      %v971 = vsel %vm954, %v968, %v970
      %v972 = vrot.slane %v865, 1
      %v973 = vsel %vm954, %v970, %v972
      %v974 = vrot.slane %v869, 1
      %v975 = vsel %vm954, %v972, %v974
      %v976 = vrot.slane %v873, 1
      %v977 = vsel %vm954, %v974, %v976
      %v978 = vrot.slane %v877, 1
      %v979 = vsel %vm954, %v976, %v978
      %v980 = vrot.slane %v881, 1
      %v981 = vsel %vm954, %v978, %v980
      %v982 = vrot.slane %v885, 1
      %v983 = vsel %vm954, %v980, %v982
      %v984 = vrot.slane %v889, 1
      %v985 = vsel %vm954, %v982, %v984
      %v986 = vrot.slane %v893, 1
      %v987 = vsel %vm954, %v984, %v986
      %v988 = vrot.slane %v897, 1
      %v989 = vsel %vm954, %v986, %v988
      %v990 = vrot.slane %v901, 1
      %v991 = vsel %vm954, %v988, %v990
      %v992 = vrot.slane %v905, 1
      %v993 = vsel %vm954, %v990, %v992
      %v994 = vrot.slane %v909, 1
      %v995 = vsel %vm954, %v992, %v994
      %v996 = vrot.slane %v913, 1
      %v997 = vsel %vm954, %v994, %v996
      %v998 = vrot.slane %v917, 1
      %v999 = vsel %vm954, %v996, %v998
      %v1000 = vrot.slane %v921, 1
      %v1001 = vsel %vm954, %v998, %v1000
      %v1002 = vrot.slane %v925, 1
      %v1003 = vsel %vm954, %v1000, %v1002
      %v1004 = vrot.slane %v929, 1
      %v1005 = vsel %vm954, %v1002, %v1004
      %v1006 = vrot.slane %v933, 1
      %v1007 = vsel %vm954, %v1004, %v1006
      %v1008 = vrot.slane %v937, 1
      %v1009 = vsel %vm954, %v1006, %v1008
      %v1010 = vrot.slane %v941, 1
      %v1011 = vsel %vm954, %v1008, %v1010
      %v1012 = vrot.slane %v945, 1
      %v1013 = vsel %vm954, %v1010, %v1012
      %v1014 = vrot.slane %v949, 1
      %v1015 = vsel %vm954, %v1012, %v1014
      %v1016 = vrot.slane %v953, 1
      %v1017 = vsel %vm954, %v1014, %v1016
      %v1051 = vmul.f32 %v761, %v955
      %v1052 = vmul.f32 %v762, %v957
      %v1053 = vmul.f32 %v763, %v959
      %v1054 = vmul.f32 %v764, %v961
      %v1055 = vmul.f32 %v765, %v963
      %v1056 = vmul.f32 %v766, %v965
      %v1057 = vmul.f32 %v767, %v967
      %v1058 = vmul.f32 %v768, %v969
      %v1059 = vmul.f32 %v769, %v971
      %v1060 = vmul.f32 %v770, %v973
      %v1061 = vmul.f32 %v771, %v975
      %v1062 = vmul.f32 %v772, %v977
      %v1063 = vmul.f32 %v773, %v979
      %v1064 = vmul.f32 %v774, %v981
      %v1065 = vmul.f32 %v775, %v983
      %v1066 = vmul.f32 %v776, %v985
      %v1067 = vmul.f32 %v777, %v987
      %v1068 = vmul.f32 %v778, %v989
      %v1069 = vmul.f32 %v779, %v991
      %v1070 = vmul.f32 %v780, %v993
      %v1071 = vmul.f32 %v781, %v995
      %v1072 = vmul.f32 %v782, %v997
      %v1073 = vmul.f32 %v783, %v999
      %v1074 = vmul.f32 %v784, %v1001
      %v1075 = vmul.f32 %v785, %v1003
      %v1076 = vmul.f32 %v786, %v1005
      %v1077 = vmul.f32 %v787, %v1007
      %v1078 = vmul.f32 %v788, %v1009
      %v1079 = vmul.f32 %v789, %v1011
      %v1080 = vmul.f32 %v790, %v1013
      %v1081 = vmul.f32 %v791, %v1015
      %v1082 = vmul.f32 %v792, %v1017
      %v1083 = vmul.f32 %v793, %v1016
      %vm1117 = vcmask 1040384
      %v1118 = vrot.slane %v1051, 7
      %v1119 = vrot.slane %v1052, 7
      %v1120 = vsel %vm1117, %v1118, %v1119
      %v1121 = vrot.slane %v1053, 7
      %v1122 = vsel %vm1117, %v1119, %v1121
      %v1123 = vrot.slane %v1054, 7
      %v1124 = vsel %vm1117, %v1121, %v1123
      %v1125 = vrot.slane %v1055, 7
      %v1126 = vsel %vm1117, %v1123, %v1125
      %v1127 = vrot.slane %v1056, 7
      %v1128 = vsel %vm1117, %v1125, %v1127
      %v1129 = vrot.slane %v1057, 7
      %v1130 = vsel %vm1117, %v1127, %v1129
      %v1131 = vrot.slane %v1058, 7
      %v1132 = vsel %vm1117, %v1129, %v1131
      %v1133 = vrot.slane %v1059, 7
      %v1134 = vsel %vm1117, %v1131, %v1133
      %v1135 = vrot.slane %v1060, 7
      %v1136 = vsel %vm1117, %v1133, %v1135
      %v1137 = vrot.slane %v1061, 7
      %v1138 = vsel %vm1117, %v1135, %v1137
      %v1139 = vrot.slane %v1062, 7
      %v1140 = vsel %vm1117, %v1137, %v1139
      %v1141 = vrot.slane %v1063, 7
      %v1142 = vsel %vm1117, %v1139, %v1141
      %v1143 = vrot.slane %v1064, 7
      %v1144 = vsel %vm1117, %v1141, %v1143
      %v1145 = vrot.slane %v1065, 7
      %v1146 = vsel %vm1117, %v1143, %v1145
      %v1147 = vrot.slane %v1066, 7
      %v1148 = vsel %vm1117, %v1145, %v1147
      %v1149 = vrot.slane %v1067, 7
      %v1150 = vsel %vm1117, %v1147, %v1149
      %v1151 = vrot.slane %v1068, 7
      %v1152 = vsel %vm1117, %v1149, %v1151
      %v1153 = vrot.slane %v1069, 7
      %v1154 = vsel %vm1117, %v1151, %v1153
      %v1155 = vrot.slane %v1070, 7
      %v1156 = vsel %vm1117, %v1153, %v1155
      %v1157 = vrot.slane %v1071, 7
      %v1158 = vsel %vm1117, %v1155, %v1157
      %v1159 = vrot.slane %v1072, 7
      %v1160 = vsel %vm1117, %v1157, %v1159
      %v1161 = vrot.slane %v1073, 7
      %v1162 = vsel %vm1117, %v1159, %v1161
      %v1163 = vrot.slane %v1074, 7
      %v1164 = vsel %vm1117, %v1161, %v1163
      %v1165 = vrot.slane %v1075, 7
      %v1166 = vsel %vm1117, %v1163, %v1165
      %v1167 = vrot.slane %v1076, 7
      %v1168 = vsel %vm1117, %v1165, %v1167
      %v1169 = vrot.slane %v1077, 7
      %v1170 = vsel %vm1117, %v1167, %v1169
      %v1171 = vrot.slane %v1078, 7
      %v1172 = vsel %vm1117, %v1169, %v1171
      %v1173 = vrot.slane %v1079, 7
      %v1174 = vsel %vm1117, %v1171, %v1173
      %v1175 = vrot.slane %v1080, 7
      %v1176 = vsel %vm1117, %v1173, %v1175
      %v1177 = vrot.slane %v1081, 7
      %v1178 = vsel %vm1117, %v1175, %v1177
      %v1179 = vrot.slane %v1082, 7
      %v1180 = vsel %vm1117, %v1177, %v1179
      %v1181 = vrot.slane %v1083, 7
      %v1182 = vsel %vm1117, %v1179, %v1181
      %1215 = vst [vmem:[#allocation2 + $0x30] sm:$0xff] %v1120
      %1216 = vst [vmem:[#allocation2 + $0x48] sm:$0xff] %v1122
      %1217 = vst [vmem:[#allocation2 + $0x60] sm:$0xff] %v1124
      %1218 = vst [vmem:[#allocation2 + $0x78] sm:$0xff] %v1126
      %1219 = vst [vmem:[#allocation2 + $0x90] sm:$0xff] %v1128
      %1220 = vst [vmem:[#allocation2 + $0xa8] sm:$0xff] %v1130
      %1221 = vst [vmem:[#allocation2 + $0xc0] sm:$0xff] %v1132
      %1222 = vst [vmem:[#allocation2 + $0xd8] sm:$0xff] %v1134
      %1223 = vst [vmem:[#allocation2 + $0xf0] sm:$0xff] %v1136
      %1224 = vst [vmem:[#allocation2 + $0x108] sm:$0xff] %v1138
      %1225 = vst [vmem:[#allocation2 + $0x120] sm:$0xff] %v1140
      %1226 = vst [vmem:[#allocation2 + $0x138] sm:$0xff] %v1142
      %1227 = vst [vmem:[#allocation2 + $0x150] sm:$0xff] %v1144
      %1228 = vst [vmem:[#allocation2 + $0x168] sm:$0xff] %v1146
      %1229 = vst [vmem:[#allocation2 + $0x180] sm:$0xff] %v1148
      %1230 = vst [vmem:[#allocation2 + $0x198] sm:$0xff] %v1150
      %1231 = vst [vmem:[#allocation2 + $0x1b0] sm:$0xff] %v1152
      %1232 = vst [vmem:[#allocation2 + $0x1c8] sm:$0xff] %v1154
      %1233 = vst [vmem:[#allocation2 + $0x1e0] sm:$0xff] %v1156
      %1234 = vst [vmem:[#allocation2 + $0x1f8] sm:$0xff] %v1158
      %1235 = vst [vmem:[#allocation2 + $0x210] sm:$0xff] %v1160
      %1236 = vst [vmem:[#allocation2 + $0x228] sm:$0xff] %v1162
      %1237 = vst [vmem:[#allocation2 + $0x240] sm:$0xff] %v1164
      %1238 = vst [vmem:[#allocation2 + $0x258] sm:$0xff] %v1166
      %1239 = vst [vmem:[#allocation2 + $0x270] sm:$0xff] %v1168
      %1240 = vst [vmem:[#allocation2 + $0x288] sm:$0xff] %v1170
      %1241 = vst [vmem:[#allocation2 + $0x2a0] sm:$0xff] %v1172
      %1242 = vst [vmem:[#allocation2 + $0x2b8] sm:$0xff] %v1174
      %1243 = vst [vmem:[#allocation2 + $0x2d0] sm:$0xff] %v1176
      %1244 = vst [vmem:[#allocation2 + $0x2e8] sm:$0xff] %v1178
      %1245 = vst [vmem:[#allocation2 + $0x300] sm:$0xff] %v1180
      %1246 = vst [vmem:[#allocation2 + $0x318] sm:$0xff] %v1182
      %v1247 = vld [vmem:[#allocation2 + $0x38] sm:$0xfe]
      %v1248 = vld [vmem:[#allocation2 + $0x50] sm:$0xff]
      %v1249 = vld [vmem:[#allocation2 + $0x68] sm:$0xff]
      %v1250 = vld [vmem:[#allocation2 + $0x80] sm:$0xff]
      %v1251 = vld [vmem:[#allocation2 + $0x98] sm:$0xff]
      %v1252 = vld [vmem:[#allocation2 + $0xb0] sm:$0xff]
      %v1253 = vld [vmem:[#allocation2 + $0xc8] sm:$0xff]
      %v1254 = vld [vmem:[#allocation2 + $0xe0] sm:$0xff]
      %v1255 = vld [vmem:[#allocation2 + $0xf8] sm:$0xff]
      %v1256 = vld [vmem:[#allocation2 + $0x110] sm:$0xff]
      %v1257 = vld [vmem:[#allocation2 + $0x128] sm:$0xff]
      %v1258 = vld [vmem:[#allocation2 + $0x140] sm:$0xff]
      %v1259 = vld [vmem:[#allocation2 + $0x158] sm:$0xff]
      %v1260 = vld [vmem:[#allocation2 + $0x170] sm:$0xff]
      %v1261 = vld [vmem:[#allocation2 + $0x188] sm:$0xff]
      %v1262 = vld [vmem:[#allocation2 + $0x1a0] sm:$0xff]
      %v1263 = vld [vmem:[#allocation2 + $0x1b8] sm:$0xff]
      %v1264 = vld [vmem:[#allocation2 + $0x1d0] sm:$0xff]
      %v1265 = vld [vmem:[#allocation2 + $0x1e8] sm:$0xff]
      %v1266 = vld [vmem:[#allocation2 + $0x200] sm:$0xff]
      %v1267 = vld [vmem:[#allocation2 + $0x218] sm:$0xff]
      %v1268 = vld [vmem:[#allocation2 + $0x230] sm:$0xff]
      %v1269 = vld [vmem:[#allocation2 + $0x248] sm:$0xff]
      %v1270 = vld [vmem:[#allocation2 + $0x260] sm:$0xff]
      %v1271 = vld [vmem:[#allocation2 + $0x278] sm:$0xff]
      %v1272 = vld [vmem:[#allocation2 + $0x290] sm:$0xff]
      %v1273 = vld [vmem:[#allocation2 + $0x2a8] sm:$0xff]
      %v1274 = vld [vmem:[#allocation2 + $0x2c0] sm:$0xff]
      %v1275 = vld [vmem:[#allocation2 + $0x2d8] sm:$0xff]
      %v1276 = vld [vmem:[#allocation2 + $0x2f0] sm:$0xff]
      %v1277 = vld [vmem:[#allocation2 + $0x308] sm:$0xff]
      %v1278 = vld [vmem:[#allocation2 + $0x320] sm:$0xff]
      %v1279 = vld [vmem:[#allocation2 + $0x338] sm:$0x1]
      %s1280 = scalar_lea.vmem %s5, 256
      %v1281 = vld [vmem:[%s1280] sm:$0xff]
      %v1282 = vld [vmem:[%s1280 + $0x8] sm:$0xff]
      %v1283 = vld [vmem:[%s1280 + $0x10] sm:$0xff]
      %v1284 = vld [vmem:[%s1280 + $0x18] sm:$0xff]
      %v1285 = vld [vmem:[%s1280 + $0x20] sm:$0xff]
      %v1286 = vld [vmem:[%s1280 + $0x28] sm:$0xff]
      %v1287 = vld [vmem:[%s1280 + $0x30] sm:$0xff]
      %v1288 = vld [vmem:[%s1280 + $0x38] sm:$0xff]
      %v1289 = vld [vmem:[%s1280 + $0x40] sm:$0xff]
      %v1290 = vld [vmem:[%s1280 + $0x48] sm:$0xff]
      %v1291 = vld [vmem:[%s1280 + $0x50] sm:$0xff]
      %v1292 = vld [vmem:[%s1280 + $0x58] sm:$0xff]
      %v1293 = vld [vmem:[%s1280 + $0x60] sm:$0xff]
      %v1294 = vld [vmem:[%s1280 + $0x68] sm:$0xff]
      %v1295 = vld [vmem:[%s1280 + $0x70] sm:$0xff]
      %v1296 = vld [vmem:[%s1280 + $0x78] sm:$0xff]
      %v1297 = vld [vmem:[%s1280 + $0x80] sm:$0xff]
      %v1298 = vld [vmem:[%s1280 + $0x88] sm:$0xff]
      %v1299 = vld [vmem:[%s1280 + $0x90] sm:$0xff]
      %v1300 = vld [vmem:[%s1280 + $0x98] sm:$0xff]
      %v1301 = vld [vmem:[%s1280 + $0xa0] sm:$0xff]
      %v1302 = vld [vmem:[%s1280 + $0xa8] sm:$0xff]
      %v1303 = vld [vmem:[%s1280 + $0xb0] sm:$0xff]
      %v1304 = vld [vmem:[%s1280 + $0xb8] sm:$0xff]
      %v1305 = vld [vmem:[%s1280 + $0xc0] sm:$0xff]
      %v1306 = vld [vmem:[%s1280 + $0xc8] sm:$0xff]
      %v1307 = vld [vmem:[%s1280 + $0xd0] sm:$0xff]
      %v1308 = vld [vmem:[%s1280 + $0xd8] sm:$0xff]
      %v1309 = vld [vmem:[%s1280 + $0xe0] sm:$0xff]
      %v1310 = vld [vmem:[%s1280 + $0xe8] sm:$0xff]
      %v1311 = vld [vmem:[%s1280 + $0xf0] sm:$0xff]
      %v1312 = vld [vmem:[%s1280 + $0xf8] sm:$0xff]
      %1314 = vset.pattern.permute.xlu0 0
      %1315 = vperm.xlu0 %1314, %v1281
      %v1316 = vpop.permute.xlu0 %1315
      %1318 = vset.pattern.permute.xlu0 0
      %1319 = vperm.xlu0 %1318, %v1282
      %v1320 = vpop.permute.xlu0 %1319
      %1322 = vset.pattern.permute.xlu0 0
      %1323 = vperm.xlu0 %1322, %v1283
      %v1324 = vpop.permute.xlu0 %1323
      %1326 = vset.pattern.permute.xlu0 0
      %1327 = vperm.xlu0 %1326, %v1284
      %v1328 = vpop.permute.xlu0 %1327
      %1330 = vset.pattern.permute.xlu0 0
      %1331 = vperm.xlu0 %1330, %v1285
      %v1332 = vpop.permute.xlu0 %1331
      %1334 = vset.pattern.permute.xlu0 0
      %1335 = vperm.xlu0 %1334, %v1286
      %v1336 = vpop.permute.xlu0 %1335
      %1338 = vset.pattern.permute.xlu0 0
      %1339 = vperm.xlu0 %1338, %v1287
      %v1340 = vpop.permute.xlu0 %1339
      %1342 = vset.pattern.permute.xlu0 0
      %1343 = vperm.xlu0 %1342, %v1288
      %v1344 = vpop.permute.xlu0 %1343
      %1346 = vset.pattern.permute.xlu0 0
      %1347 = vperm.xlu0 %1346, %v1289
      %v1348 = vpop.permute.xlu0 %1347
      %1350 = vset.pattern.permute.xlu0 0
      %1351 = vperm.xlu0 %1350, %v1290
      %v1352 = vpop.permute.xlu0 %1351
      %1354 = vset.pattern.permute.xlu0 0
      %1355 = vperm.xlu0 %1354, %v1291
      %v1356 = vpop.permute.xlu0 %1355
      %1358 = vset.pattern.permute.xlu0 0
      %1359 = vperm.xlu0 %1358, %v1292
      %v1360 = vpop.permute.xlu0 %1359
      %1362 = vset.pattern.permute.xlu0 0
      %1363 = vperm.xlu0 %1362, %v1293
      %v1364 = vpop.permute.xlu0 %1363
      %1366 = vset.pattern.permute.xlu0 0
      %1367 = vperm.xlu0 %1366, %v1294
      %v1368 = vpop.permute.xlu0 %1367
      %1370 = vset.pattern.permute.xlu0 0
      %1371 = vperm.xlu0 %1370, %v1295
      %v1372 = vpop.permute.xlu0 %1371
      %1374 = vset.pattern.permute.xlu0 0
      %1375 = vperm.xlu0 %1374, %v1296
      %v1376 = vpop.permute.xlu0 %1375
      %1378 = vset.pattern.permute.xlu0 0
      %1379 = vperm.xlu0 %1378, %v1297
      %v1380 = vpop.permute.xlu0 %1379
      %1382 = vset.pattern.permute.xlu0 0
      %1383 = vperm.xlu0 %1382, %v1298
      %v1384 = vpop.permute.xlu0 %1383
      %1386 = vset.pattern.permute.xlu0 0
      %1387 = vperm.xlu0 %1386, %v1299
      %v1388 = vpop.permute.xlu0 %1387
      %1390 = vset.pattern.permute.xlu0 0
      %1391 = vperm.xlu0 %1390, %v1300
      %v1392 = vpop.permute.xlu0 %1391
      %1394 = vset.pattern.permute.xlu0 0
      %1395 = vperm.xlu0 %1394, %v1301
      %v1396 = vpop.permute.xlu0 %1395
      %1398 = vset.pattern.permute.xlu0 0
      %1399 = vperm.xlu0 %1398, %v1302
      %v1400 = vpop.permute.xlu0 %1399
      %1402 = vset.pattern.permute.xlu0 0
      %1403 = vperm.xlu0 %1402, %v1303
      %v1404 = vpop.permute.xlu0 %1403
      %1406 = vset.pattern.permute.xlu0 0
      %1407 = vperm.xlu0 %1406, %v1304
      %v1408 = vpop.permute.xlu0 %1407
      %1410 = vset.pattern.permute.xlu0 0
      %1411 = vperm.xlu0 %1410, %v1305
      %v1412 = vpop.permute.xlu0 %1411
      %1414 = vset.pattern.permute.xlu0 0
      %1415 = vperm.xlu0 %1414, %v1306
      %v1416 = vpop.permute.xlu0 %1415
      %1418 = vset.pattern.permute.xlu0 0
      %1419 = vperm.xlu0 %1418, %v1307
      %v1420 = vpop.permute.xlu0 %1419
      %1422 = vset.pattern.permute.xlu0 0
      %1423 = vperm.xlu0 %1422, %v1308
      %v1424 = vpop.permute.xlu0 %1423
      %1426 = vset.pattern.permute.xlu0 0
      %1427 = vperm.xlu0 %1426, %v1309
      %v1428 = vpop.permute.xlu0 %1427
      %1430 = vset.pattern.permute.xlu0 0
      %1431 = vperm.xlu0 %1430, %v1310
      %v1432 = vpop.permute.xlu0 %1431
      %1434 = vset.pattern.permute.xlu0 0
      %1435 = vperm.xlu0 %1434, %v1311
      %v1436 = vpop.permute.xlu0 %1435
      %1438 = vset.pattern.permute.xlu0 0
      %1439 = vperm.xlu0 %1438, %v1312
      %v1440 = vpop.permute.xlu0 %1439
      %v1441 = vrot.slane %v1316, 7
      %v1442 = vrot.slane %v1320, 7
      %v1443 = vsel %vm1117, %v1441, %v1442
      %v1444 = vrot.slane %v1324, 7
      %v1445 = vsel %vm1117, %v1442, %v1444
      %v1446 = vrot.slane %v1328, 7
      %v1447 = vsel %vm1117, %v1444, %v1446
      %v1448 = vrot.slane %v1332, 7
      %v1449 = vsel %vm1117, %v1446, %v1448
      %v1450 = vrot.slane %v1336, 7
      %v1451 = vsel %vm1117, %v1448, %v1450
      %v1452 = vrot.slane %v1340, 7
      %v1453 = vsel %vm1117, %v1450, %v1452
      %v1454 = vrot.slane %v1344, 7
      %v1455 = vsel %vm1117, %v1452, %v1454
      %v1456 = vrot.slane %v1348, 7
      %v1457 = vsel %vm1117, %v1454, %v1456
      %v1458 = vrot.slane %v1352, 7
      %v1459 = vsel %vm1117, %v1456, %v1458
      %v1460 = vrot.slane %v1356, 7
      %v1461 = vsel %vm1117, %v1458, %v1460
      %v1462 = vrot.slane %v1360, 7
      %v1463 = vsel %vm1117, %v1460, %v1462
      %v1464 = vrot.slane %v1364, 7
      %v1465 = vsel %vm1117, %v1462, %v1464
      %v1466 = vrot.slane %v1368, 7
      %v1467 = vsel %vm1117, %v1464, %v1466
      %v1468 = vrot.slane %v1372, 7
      %v1469 = vsel %vm1117, %v1466, %v1468
      %v1470 = vrot.slane %v1376, 7
      %v1471 = vsel %vm1117, %v1468, %v1470
      %v1472 = vrot.slane %v1380, 7
      %v1473 = vsel %vm1117, %v1470, %v1472
      %v1474 = vrot.slane %v1384, 7
      %v1475 = vsel %vm1117, %v1472, %v1474
      %v1476 = vrot.slane %v1388, 7
      %v1477 = vsel %vm1117, %v1474, %v1476
      %v1478 = vrot.slane %v1392, 7
      %v1479 = vsel %vm1117, %v1476, %v1478
      %v1480 = vrot.slane %v1396, 7
      %v1481 = vsel %vm1117, %v1478, %v1480
      %v1482 = vrot.slane %v1400, 7
      %v1483 = vsel %vm1117, %v1480, %v1482
      %v1484 = vrot.slane %v1404, 7
      %v1485 = vsel %vm1117, %v1482, %v1484
      %v1486 = vrot.slane %v1408, 7
      %v1487 = vsel %vm1117, %v1484, %v1486
      %v1488 = vrot.slane %v1412, 7
      %v1489 = vsel %vm1117, %v1486, %v1488
      %v1490 = vrot.slane %v1416, 7
      %v1491 = vsel %vm1117, %v1488, %v1490
      %v1492 = vrot.slane %v1420, 7
      %v1493 = vsel %vm1117, %v1490, %v1492
      %v1494 = vrot.slane %v1424, 7
      %v1495 = vsel %vm1117, %v1492, %v1494
      %v1496 = vrot.slane %v1428, 7
      %v1497 = vsel %vm1117, %v1494, %v1496
      %v1498 = vrot.slane %v1432, 7
      %v1499 = vsel %vm1117, %v1496, %v1498
      %v1500 = vrot.slane %v1436, 7
      %v1501 = vsel %vm1117, %v1498, %v1500
      %v1502 = vrot.slane %v1440, 7
      %v1503 = vsel %vm1117, %v1500, %v1502
      %v1537 = vmul.f32 %v1247, %v1441
      %v1538 = vmul.f32 %v1248, %v1443
      %v1539 = vmul.f32 %v1249, %v1445
      %v1540 = vmul.f32 %v1250, %v1447
      %v1541 = vmul.f32 %v1251, %v1449
      %v1542 = vmul.f32 %v1252, %v1451
      %v1543 = vmul.f32 %v1253, %v1453
      %v1544 = vmul.f32 %v1254, %v1455
      %v1545 = vmul.f32 %v1255, %v1457
      %v1546 = vmul.f32 %v1256, %v1459
      %v1547 = vmul.f32 %v1257, %v1461
      %v1548 = vmul.f32 %v1258, %v1463
      %v1549 = vmul.f32 %v1259, %v1465
      %v1550 = vmul.f32 %v1260, %v1467
      %v1551 = vmul.f32 %v1261, %v1469
      %v1552 = vmul.f32 %v1262, %v1471
      %v1553 = vmul.f32 %v1263, %v1473
      %v1554 = vmul.f32 %v1264, %v1475
      %v1555 = vmul.f32 %v1265, %v1477
      %v1556 = vmul.f32 %v1266, %v1479
      %v1557 = vmul.f32 %v1267, %v1481
      %v1558 = vmul.f32 %v1268, %v1483
      %v1559 = vmul.f32 %v1269, %v1485
      %v1560 = vmul.f32 %v1270, %v1487
      %v1561 = vmul.f32 %v1271, %v1489
      %v1562 = vmul.f32 %v1272, %v1491
      %v1563 = vmul.f32 %v1273, %v1493
      %v1564 = vmul.f32 %v1274, %v1495
      %v1565 = vmul.f32 %v1275, %v1497
      %v1566 = vmul.f32 %v1276, %v1499
      %v1567 = vmul.f32 %v1277, %v1501
      %v1568 = vmul.f32 %v1278, %v1503
      %v1569 = vmul.f32 %v1279, %v1502
      %v1603 = vrot.slane %v1537, 1
      %v1604 = vrot.slane %v1538, 1
      %v1605 = vsel %vm954, %v1603, %v1604
      %v1606 = vrot.slane %v1539, 1
      %v1607 = vsel %vm954, %v1604, %v1606
      %v1608 = vrot.slane %v1540, 1
      %v1609 = vsel %vm954, %v1606, %v1608
      %v1610 = vrot.slane %v1541, 1
      %v1611 = vsel %vm954, %v1608, %v1610
      %v1612 = vrot.slane %v1542, 1
      %v1613 = vsel %vm954, %v1610, %v1612
      %v1614 = vrot.slane %v1543, 1
      %v1615 = vsel %vm954, %v1612, %v1614
      %v1616 = vrot.slane %v1544, 1
      %v1617 = vsel %vm954, %v1614, %v1616
      %v1618 = vrot.slane %v1545, 1
      %v1619 = vsel %vm954, %v1616, %v1618
      %v1620 = vrot.slane %v1546, 1
      %v1621 = vsel %vm954, %v1618, %v1620
      %v1622 = vrot.slane %v1547, 1
      %v1623 = vsel %vm954, %v1620, %v1622
      %v1624 = vrot.slane %v1548, 1
      %v1625 = vsel %vm954, %v1622, %v1624
      %v1626 = vrot.slane %v1549, 1
      %v1627 = vsel %vm954, %v1624, %v1626
      %v1628 = vrot.slane %v1550, 1
      %v1629 = vsel %vm954, %v1626, %v1628
      %v1630 = vrot.slane %v1551, 1
      %v1631 = vsel %vm954, %v1628, %v1630
      %v1632 = vrot.slane %v1552, 1
      %v1633 = vsel %vm954, %v1630, %v1632
      %v1634 = vrot.slane %v1553, 1
      %v1635 = vsel %vm954, %v1632, %v1634
      %v1636 = vrot.slane %v1554, 1
      %v1637 = vsel %vm954, %v1634, %v1636
      %v1638 = vrot.slane %v1555, 1
      %v1639 = vsel %vm954, %v1636, %v1638
      %v1640 = vrot.slane %v1556, 1
      %v1641 = vsel %vm954, %v1638, %v1640
      %v1642 = vrot.slane %v1557, 1
      %v1643 = vsel %vm954, %v1640, %v1642
      %v1644 = vrot.slane %v1558, 1
      %v1645 = vsel %vm954, %v1642, %v1644
      %v1646 = vrot.slane %v1559, 1
      %v1647 = vsel %vm954, %v1644, %v1646
      %v1648 = vrot.slane %v1560, 1
      %v1649 = vsel %vm954, %v1646, %v1648
      %v1650 = vrot.slane %v1561, 1
      %v1651 = vsel %vm954, %v1648, %v1650
      %v1652 = vrot.slane %v1562, 1
      %v1653 = vsel %vm954, %v1650, %v1652
      %v1654 = vrot.slane %v1563, 1
      %v1655 = vsel %vm954, %v1652, %v1654
      %v1656 = vrot.slane %v1564, 1
      %v1657 = vsel %vm954, %v1654, %v1656
      %v1658 = vrot.slane %v1565, 1
      %v1659 = vsel %vm954, %v1656, %v1658
      %v1660 = vrot.slane %v1566, 1
      %v1661 = vsel %vm954, %v1658, %v1660
      %v1662 = vrot.slane %v1567, 1
      %v1663 = vsel %vm954, %v1660, %v1662
      %v1664 = vrot.slane %v1568, 1
      %v1665 = vsel %vm954, %v1662, %v1664
      %v1666 = vrot.slane %v1569, 1
      %v1667 = vsel %vm954, %v1664, %v1666
      %1700 = vst [vmem:[#allocation2 + $0x40] sm:$0xff] %v1605
      %1701 = vst [vmem:[#allocation2 + $0x58] sm:$0xff] %v1607
      %1702 = vst [vmem:[#allocation2 + $0x70] sm:$0xff] %v1609
      %1703 = vst [vmem:[#allocation2 + $0x88] sm:$0xff] %v1611
      %1704 = vst [vmem:[#allocation2 + $0xa0] sm:$0xff] %v1613
      %1705 = vst [vmem:[#allocation2 + $0xb8] sm:$0xff] %v1615
      %1706 = vst [vmem:[#allocation2 + $0xd0] sm:$0xff] %v1617
      %1707 = vst [vmem:[#allocation2 + $0xe8] sm:$0xff] %v1619
      %1708 = vst [vmem:[#allocation2 + $0x100] sm:$0xff] %v1621
      %1709 = vst [vmem:[#allocation2 + $0x118] sm:$0xff] %v1623
      %1710 = vst [vmem:[#allocation2 + $0x130] sm:$0xff] %v1625
      %1711 = vst [vmem:[#allocation2 + $0x148] sm:$0xff] %v1627
      %1712 = vst [vmem:[#allocation2 + $0x160] sm:$0xff] %v1629
      %1713 = vst [vmem:[#allocation2 + $0x178] sm:$0xff] %v1631
      %1714 = vst [vmem:[#allocation2 + $0x190] sm:$0xff] %v1633
      %1715 = vst [vmem:[#allocation2 + $0x1a8] sm:$0xff] %v1635
      %1716 = vst [vmem:[#allocation2 + $0x1c0] sm:$0xff] %v1637
      %1717 = vst [vmem:[#allocation2 + $0x1d8] sm:$0xff] %v1639
      %1718 = vst [vmem:[#allocation2 + $0x1f0] sm:$0xff] %v1641
      %1719 = vst [vmem:[#allocation2 + $0x208] sm:$0xff] %v1643
      %1720 = vst [vmem:[#allocation2 + $0x220] sm:$0xff] %v1645
      %1721 = vst [vmem:[#allocation2 + $0x238] sm:$0xff] %v1647
      %1722 = vst [vmem:[#allocation2 + $0x250] sm:$0xff] %v1649
      %1723 = vst [vmem:[#allocation2 + $0x268] sm:$0xff] %v1651
      %1724 = vst [vmem:[#allocation2 + $0x280] sm:$0xff] %v1653
      %1725 = vst [vmem:[#allocation2 + $0x298] sm:$0xff] %v1655
      %1726 = vst [vmem:[#allocation2 + $0x2b0] sm:$0xff] %v1657
      %1727 = vst [vmem:[#allocation2 + $0x2c8] sm:$0xff] %v1659
      %1728 = vst [vmem:[#allocation2 + $0x2e0] sm:$0xff] %v1661
      %1729 = vst [vmem:[#allocation2 + $0x2f8] sm:$0xff] %v1663
      %1730 = vst [vmem:[#allocation2 + $0x310] sm:$0xff] %v1665
      %1731 = vst [vmem:[#allocation2 + $0x328] sm:$0xff] %v1667
      %v1732 = vld [vmem:[#allocation2] sm:$0xff]
      %v1733 = vld [vmem:[#allocation2 + $0x8] sm:$0xff]
      %v1734 = vld [vmem:[#allocation2 + $0x10] sm:$0xff]
      %v1735 = vld [vmem:[#allocation2 + $0x18] sm:$0xff]
      %v1736 = vld [vmem:[#allocation2 + $0x20] sm:$0xff]
      %v1737 = vld [vmem:[#allocation2 + $0x28] sm:$0xff]
      %v1738 = vld [vmem:[#allocation2 + $0x30] sm:$0xff]
      %v1739 = vld [vmem:[#allocation2 + $0x38] sm:$0xff]
      %v1740 = vld [vmem:[#allocation2 + $0x40] sm:$0xff]
      %v1741 = vld [vmem:[#allocation2 + $0x48] sm:$0xff]
      %v1742 = vld [vmem:[#allocation2 + $0x50] sm:$0xff]
      %v1743 = vld [vmem:[#allocation2 + $0x58] sm:$0xff]
      %v1744 = vld [vmem:[#allocation2 + $0x60] sm:$0xff]
      %v1745 = vld [vmem:[#allocation2 + $0x68] sm:$0xff]
      %v1746 = vld [vmem:[#allocation2 + $0x70] sm:$0xff]
      %v1747 = vld [vmem:[#allocation2 + $0x78] sm:$0xff]
      %v1748 = vld [vmem:[#allocation2 + $0x80] sm:$0xff]
      %v1749 = vld [vmem:[#allocation2 + $0x88] sm:$0xff]
      %v1750 = vld [vmem:[#allocation2 + $0x90] sm:$0xff]
      %v1751 = vld [vmem:[#allocation2 + $0x98] sm:$0xff]
      %v1752 = vld [vmem:[#allocation2 + $0xa0] sm:$0xff]
      %v1753 = vld [vmem:[#allocation2 + $0xa8] sm:$0xff]
      %v1754 = vld [vmem:[#allocation2 + $0xb0] sm:$0xff]
      %v1755 = vld [vmem:[#allocation2 + $0xb8] sm:$0xff]
      %v1756 = vld [vmem:[#allocation2 + $0xc0] sm:$0xff]
      %v1757 = vld [vmem:[#allocation2 + $0xc8] sm:$0xff]
      %v1758 = vld [vmem:[#allocation2 + $0xd0] sm:$0xff]
      %v1759 = vld [vmem:[#allocation2 + $0xd8] sm:$0xff]
      %v1760 = vld [vmem:[#allocation2 + $0xe0] sm:$0xff]
      %v1761 = vld [vmem:[#allocation2 + $0xe8] sm:$0xff]
      %v1762 = vld [vmem:[#allocation2 + $0xf0] sm:$0xff]
      %v1763 = vld [vmem:[#allocation2 + $0xf8] sm:$0xff]
      %v1764 = vld [vmem:[#allocation2 + $0x100] sm:$0xff]
      %v1765 = vld [vmem:[#allocation2 + $0x108] sm:$0xff]
      %v1766 = vld [vmem:[#allocation2 + $0x110] sm:$0xff]
      %v1767 = vld [vmem:[#allocation2 + $0x118] sm:$0xff]
      %v1768 = vld [vmem:[#allocation2 + $0x120] sm:$0xff]
      %v1769 = vld [vmem:[#allocation2 + $0x128] sm:$0xff]
      %v1770 = vld [vmem:[#allocation2 + $0x130] sm:$0xff]
      %v1771 = vld [vmem:[#allocation2 + $0x138] sm:$0xff]
      %v1772 = vld [vmem:[#allocation2 + $0x140] sm:$0xff]
      %v1773 = vld [vmem:[#allocation2 + $0x148] sm:$0xff]
      %v1774 = vld [vmem:[#allocation2 + $0x150] sm:$0xff]
      %v1775 = vld [vmem:[#allocation2 + $0x158] sm:$0xff]
      %v1776 = vld [vmem:[#allocation2 + $0x160] sm:$0xff]
      %v1777 = vld [vmem:[#allocation2 + $0x168] sm:$0xff]
      %v1778 = vld [vmem:[#allocation2 + $0x170] sm:$0xff]
      %v1779 = vld [vmem:[#allocation2 + $0x178] sm:$0xff]
      %v1780 = vld [vmem:[#allocation2 + $0x180] sm:$0xff]
      %v1781 = vld [vmem:[#allocation2 + $0x188] sm:$0xff]
      %v1782 = vld [vmem:[#allocation2 + $0x190] sm:$0xff]
      %v1783 = vld [vmem:[#allocation2 + $0x198] sm:$0xff]
      %v1784 = vld [vmem:[#allocation2 + $0x1a0] sm:$0xff]
      %v1785 = vld [vmem:[#allocation2 + $0x1a8] sm:$0xff]
      %v1786 = vld [vmem:[#allocation2 + $0x1b0] sm:$0xff]
      %v1787 = vld [vmem:[#allocation2 + $0x1b8] sm:$0xff]
      %v1788 = vld [vmem:[#allocation2 + $0x1c0] sm:$0xff]
      %v1789 = vld [vmem:[#allocation2 + $0x1c8] sm:$0xff]
      %v1790 = vld [vmem:[#allocation2 + $0x1d0] sm:$0xff]
      %v1791 = vld [vmem:[#allocation2 + $0x1d8] sm:$0xff]
      %v1792 = vld [vmem:[#allocation2 + $0x1e0] sm:$0xff]
      %v1793 = vld [vmem:[#allocation2 + $0x1e8] sm:$0xff]
      %v1794 = vld [vmem:[#allocation2 + $0x1f0] sm:$0xff]
      %v1795 = vld [vmem:[#allocation2 + $0x1f8] sm:$0xff]
      %v1796 = vld [vmem:[#allocation2 + $0x200] sm:$0xff]
      %v1797 = vld [vmem:[#allocation2 + $0x208] sm:$0xff]
      %v1798 = vld [vmem:[#allocation2 + $0x210] sm:$0xff]
      %v1799 = vld [vmem:[#allocation2 + $0x218] sm:$0xff]
      %v1800 = vld [vmem:[#allocation2 + $0x220] sm:$0xff]
      %v1801 = vld [vmem:[#allocation2 + $0x228] sm:$0xff]
      %v1802 = vld [vmem:[#allocation2 + $0x230] sm:$0xff]
      %v1803 = vld [vmem:[#allocation2 + $0x238] sm:$0xff]
      %v1804 = vld [vmem:[#allocation2 + $0x240] sm:$0xff]
      %v1805 = vld [vmem:[#allocation2 + $0x248] sm:$0xff]
      %v1806 = vld [vmem:[#allocation2 + $0x250] sm:$0xff]
      %v1807 = vld [vmem:[#allocation2 + $0x258] sm:$0xff]
      %v1808 = vld [vmem:[#allocation2 + $0x260] sm:$0xff]
      %v1809 = vld [vmem:[#allocation2 + $0x268] sm:$0xff]
      %v1810 = vld [vmem:[#allocation2 + $0x270] sm:$0xff]
      %v1811 = vld [vmem:[#allocation2 + $0x278] sm:$0xff]
      %v1812 = vld [vmem:[#allocation2 + $0x280] sm:$0xff]
      %v1813 = vld [vmem:[#allocation2 + $0x288] sm:$0xff]
      %v1814 = vld [vmem:[#allocation2 + $0x290] sm:$0xff]
      %v1815 = vld [vmem:[#allocation2 + $0x298] sm:$0xff]
      %v1816 = vld [vmem:[#allocation2 + $0x2a0] sm:$0xff]
      %v1817 = vld [vmem:[#allocation2 + $0x2a8] sm:$0xff]
      %v1818 = vld [vmem:[#allocation2 + $0x2b0] sm:$0xff]
      %v1819 = vld [vmem:[#allocation2 + $0x2b8] sm:$0xff]
      %v1820 = vld [vmem:[#allocation2 + $0x2c0] sm:$0xff]
      %v1821 = vld [vmem:[#allocation2 + $0x2c8] sm:$0xff]
      %v1822 = vld [vmem:[#allocation2 + $0x2d0] sm:$0xff]
      %v1823 = vld [vmem:[#allocation2 + $0x2d8] sm:$0xff]
      %v1824 = vld [vmem:[#allocation2 + $0x2e0] sm:$0xff]
      %v1825 = vld [vmem:[#allocation2 + $0x2e8] sm:$0xff]
      %v1826 = vld [vmem:[#allocation2 + $0x2f0] sm:$0xff]
      %v1827 = vld [vmem:[#allocation2 + $0x2f8] sm:$0xff]
      %v1828 = vld [vmem:[%s4] sm:$0xff]
      %v1829 = vld [vmem:[%s4 + $0x8] sm:$0xff]
      %v1830 = vld [vmem:[%s4 + $0x10] sm:$0xff]
      %v1831 = vld [vmem:[%s4 + $0x18] sm:$0xff]
      %v1832 = vld [vmem:[%s4 + $0x20] sm:$0xff]
      %v1833 = vld [vmem:[%s4 + $0x28] sm:$0xff]
      %v1834 = vld [vmem:[%s4 + $0x30] sm:$0xff]
      %v1835 = vld [vmem:[%s4 + $0x38] sm:$0xff]
      %v1836 = vld [vmem:[%s4 + $0x40] sm:$0xff]
      %v1837 = vld [vmem:[%s4 + $0x48] sm:$0xff]
      %v1838 = vld [vmem:[%s4 + $0x50] sm:$0xff]
      %v1839 = vld [vmem:[%s4 + $0x58] sm:$0xff]
      %v1840 = vld [vmem:[%s4 + $0x60] sm:$0xff]
      %v1841 = vld [vmem:[%s4 + $0x68] sm:$0xff]
      %v1842 = vld [vmem:[%s4 + $0x70] sm:$0xff]
      %v1843 = vld [vmem:[%s4 + $0x78] sm:$0xff]
      %v1844 = vld [vmem:[%s4 + $0x80] sm:$0xff]
      %v1845 = vld [vmem:[%s4 + $0x88] sm:$0xff]
      %v1846 = vld [vmem:[%s4 + $0x90] sm:$0xff]
      %v1847 = vld [vmem:[%s4 + $0x98] sm:$0xff]
      %v1848 = vld [vmem:[%s4 + $0xa0] sm:$0xff]
      %v1849 = vld [vmem:[%s4 + $0xa8] sm:$0xff]
      %v1850 = vld [vmem:[%s4 + $0xb0] sm:$0xff]
      %v1851 = vld [vmem:[%s4 + $0xb8] sm:$0xff]
      %v1852 = vld [vmem:[%s4 + $0xc0] sm:$0xff]
      %v1853 = vld [vmem:[%s4 + $0xc8] sm:$0xff]
      %v1854 = vld [vmem:[%s4 + $0xd0] sm:$0xff]
      %v1855 = vld [vmem:[%s4 + $0xd8] sm:$0xff]
      %v1856 = vld [vmem:[%s4 + $0xe0] sm:$0xff]
      %v1857 = vld [vmem:[%s4 + $0xe8] sm:$0xff]
      %v1858 = vld [vmem:[%s4 + $0xf0] sm:$0xff]
      %v1859 = vld [vmem:[%s4 + $0xf8] sm:$0xff]
      %v1860 = vld [vmem:[%s4 + $0x100] sm:$0xff]
      %v1861 = vld [vmem:[%s4 + $0x108] sm:$0xff]
      %v1862 = vld [vmem:[%s4 + $0x110] sm:$0xff]
      %v1863 = vld [vmem:[%s4 + $0x118] sm:$0xff]
      %v1864 = vld [vmem:[%s4 + $0x120] sm:$0xff]
      %v1865 = vld [vmem:[%s4 + $0x128] sm:$0xff]
      %v1866 = vld [vmem:[%s4 + $0x130] sm:$0xff]
      %v1867 = vld [vmem:[%s4 + $0x138] sm:$0xff]
      %v1868 = vld [vmem:[%s4 + $0x140] sm:$0xff]
      %v1869 = vld [vmem:[%s4 + $0x148] sm:$0xff]
      %v1870 = vld [vmem:[%s4 + $0x150] sm:$0xff]
      %v1871 = vld [vmem:[%s4 + $0x158] sm:$0xff]
      %v1872 = vld [vmem:[%s4 + $0x160] sm:$0xff]
      %v1873 = vld [vmem:[%s4 + $0x168] sm:$0xff]
      %v1874 = vld [vmem:[%s4 + $0x170] sm:$0xff]
      %v1875 = vld [vmem:[%s4 + $0x178] sm:$0xff]
      %v1876 = vld [vmem:[#allocation2 + $0x300] sm:$0xff]
      %v1877 = vld [vmem:[#allocation2 + $0x308] sm:$0xff]
      %v1878 = vld [vmem:[#allocation2 + $0x310] sm:$0xff]
      %v1879 = vld [vmem:[#allocation2 + $0x318] sm:$0xff]
      %v1880 = vld [vmem:[#allocation2 + $0x320] sm:$0xff]
      %v1881 = vld [vmem:[#allocation2 + $0x328] sm:$0xff]
      %s1882 = scalar_lea.vmem %s4, 384
      %v1883 = vld [vmem:[%s1882] sm:$0xff]
      %v1884 = vld [vmem:[%s1882 + $0x8] sm:$0xff]
      %v1885 = vld [vmem:[%s1882 + $0x10] sm:$0xff]
      %v1886 = vld [vmem:[%s1882 + $0x18] sm:$0xff]
      %v1887 = vld [vmem:[%s1882 + $0x20] sm:$0xff]
      %v1888 = vld [vmem:[%s1882 + $0x28] sm:$0xff]
      %v1889 = vld [vmem:[%s1882 + $0x30] sm:$0xff]
      %v1890 = vld [vmem:[%s1882 + $0x38] sm:$0xff]
      %v1891 = vld [vmem:[%s1882 + $0x40] sm:$0xff]
      %v1892 = vld [vmem:[%s1882 + $0x48] sm:$0xff]
      %v1893 = vld [vmem:[%s1882 + $0x50] sm:$0xff]
      %v1894 = vld [vmem:[%s1882 + $0x58] sm:$0xff]
      %v1895 = vld [vmem:[%s1882 + $0x60] sm:$0xff]
      %v1896 = vld [vmem:[%s1882 + $0x68] sm:$0xff]
      %v1897 = vld [vmem:[%s1882 + $0x70] sm:$0xff]
      %v1898 = vld [vmem:[%s1882 + $0x78] sm:$0xff]
      %v1899 = vld [vmem:[%s1882 + $0x80] sm:$0xff]
      %v1900 = vld [vmem:[%s1882 + $0x88] sm:$0xff]
      %v1901 = vld [vmem:[%s1882 + $0x90] sm:$0xff]
      %v1902 = vld [vmem:[%s1882 + $0x98] sm:$0xff]
      %v1903 = vld [vmem:[%s1882 + $0xa0] sm:$0xff]
      %v1904 = vld [vmem:[%s1882 + $0xa8] sm:$0xff]
      %v1905 = vld [vmem:[%s1882 + $0xb0] sm:$0xff]
      %v1906 = vld [vmem:[%s1882 + $0xb8] sm:$0xff]
      %v1907 = vld [vmem:[%s1882 + $0xc0] sm:$0xff]
      %v1908 = vld [vmem:[%s1882 + $0xc8] sm:$0xff]
      %v1909 = vld [vmem:[%s1882 + $0xd0] sm:$0xff]
      %v1910 = vld [vmem:[%s1882 + $0xd8] sm:$0xff]
      %v1911 = vld [vmem:[%s1882 + $0xe0] sm:$0xff]
      %v1912 = vld [vmem:[%s1882 + $0xe8] sm:$0xff]
      %v1913 = vld [vmem:[%s1882 + $0xf0] sm:$0xff]
      %v1914 = vld [vmem:[%s1882 + $0xf8] sm:$0xff]
      %v1915 = vld [vmem:[%s1882 + $0x100] sm:$0xff]
      %v1916 = vld [vmem:[%s1882 + $0x108] sm:$0xff]
      %v1917 = vld [vmem:[%s1882 + $0x110] sm:$0xff]
      %v1918 = vld [vmem:[%s1882 + $0x118] sm:$0xff]
      %v1919 = vld [vmem:[%s1882 + $0x120] sm:$0xff]
      %v1920 = vld [vmem:[%s1882 + $0x128] sm:$0xff]
      %v1921 = vld [vmem:[%s1882 + $0x130] sm:$0xff]
      %v1922 = vld [vmem:[%s1882 + $0x138] sm:$0xff]
      %v1923 = vld [vmem:[%s1882 + $0x140] sm:$0xff]
      %v1924 = vld [vmem:[%s1882 + $0x148] sm:$0xff]
      %v1925 = vld [vmem:[%s1882 + $0x150] sm:$0xff]
      %v1926 = vld [vmem:[%s1882 + $0x158] sm:$0xff]
      %v1927 = vld [vmem:[%s1882 + $0x160] sm:$0xff]
      %v1928 = vld [vmem:[%s1882 + $0x168] sm:$0xff]
      %v1929 = vld [vmem:[%s1882 + $0x170] sm:$0xff]
      %v1930 = vld [vmem:[%s1882 + $0x178] sm:$0xff]
      %1931 = vmatprep.subr.mxu0 0.0
      %1932 = vmatpush1.msra.mxu0 %v1883
      %1933 = vmatprep.subr.mxu0 0.0
      %1934 = vmatpush1.msra.mxu0 %v1884
      %1935 = vmatprep.subr.mxu0 0.0
      %1936 = vmatpush1.msra.mxu0 %v1885
      %1937 = vmatprep.subr.mxu0 0.0
      %1938 = vmatpush1.msra.mxu0 %v1886
      %1939 = vmatprep.subr.mxu0 0.0
      %1940 = vmatpush1.msra.mxu0 %v1887
      %1941 = vmatprep.subr.mxu0 0.0
      %1942 = vmatpush1.msra.mxu0 %v1888
      %1943 = vmatprep.subr.mxu0 0.0
      %1944 = vmatpush1.msra.mxu0 %v1889
      %1945 = vmatprep.subr.mxu0 0.0
      %1946 = vmatpush1.msra.mxu0 %v1890
      %1947 = vmatprep.subr.mxu0 0.0
      %1948 = vmatpush1.msra.mxu0 %v1891
      %1949 = vmatprep.subr.mxu0 0.0
      %1950 = vmatpush1.msra.mxu0 %v1892
      %1951 = vmatprep.subr.mxu0 0.0
      %1952 = vmatpush1.msra.mxu0 %v1893
      %1953 = vmatprep.subr.mxu0 0.0
      %1954 = vmatpush1.msra.mxu0 %v1894
      %1955 = vmatprep.subr.mxu0 0.0
      %1956 = vmatpush1.msra.mxu0 %v1895
      %1957 = vmatprep.subr.mxu0 0.0
      %1958 = vmatpush1.msra.mxu0 %v1896
      %1959 = vmatprep.subr.mxu0 0.0
      %1960 = vmatpush1.msra.mxu0 %v1897
      %1961 = vmatprep.subr.mxu0 0.0
      %1962 = vmatpush1.msra.mxu0 %v1898
      %1963 = vmatprep.subr.mxu0 0.0
      %1964 = vmatpush1.msra.mxu0 %v1899
      %1965 = vmatprep.subr.mxu0 0.0
      %1966 = vmatpush1.msra.mxu0 %v1900
      %1967 = vmatprep.subr.mxu0 0.0
      %1968 = vmatpush1.msra.mxu0 %v1901
      %1969 = vmatprep.subr.mxu0 0.0
      %1970 = vmatpush1.msra.mxu0 %v1902
      %1971 = vmatprep.subr.mxu0 0.0
      %1972 = vmatpush1.msra.mxu0 %v1903
      %1973 = vmatprep.subr.mxu0 0.0
      %1974 = vmatpush1.msra.mxu0 %v1904
      %1975 = vmatprep.subr.mxu0 0.0
      %1976 = vmatpush1.msra.mxu0 %v1905
      %1977 = vmatprep.subr.mxu0 0.0
      %1978 = vmatpush1.msra.mxu0 %v1906
      %1979 = vmatprep.subr.mxu0 0.0
      %1980 = vmatpush1.msra.mxu0 %v1907
      %1981 = vmatprep.subr.mxu0 0.0
      %1982 = vmatpush1.msra.mxu0 %v1908
      %1983 = vmatprep.subr.mxu0 0.0
      %1984 = vmatpush1.msra.mxu0 %v1909
      %1985 = vmatprep.subr.mxu0 0.0
      %1986 = vmatpush1.msra.mxu0 %v1910
      %1987 = vmatprep.subr.mxu0 0.0
      %1988 = vmatpush1.msra.mxu0 %v1911
      %1989 = vmatprep.subr.mxu0 0.0
      %1990 = vmatpush1.msra.mxu0 %v1912
      %1991 = vmatprep.subr.mxu0 0.0
      %1992 = vmatpush1.msra.mxu0 %v1913
      %1993 = vmatprep.subr.mxu0 0.0
      %1994 = vmatpush1.msra.mxu0 %v1914
      %1995 = vmatprep.mubr.f32.mxu0 %v1739
      %1996 = vmatmul.mubr.f32.gmra.mrb[0].mxu0 %v1738
      %v1997 = vpop.f32.mrb[0].mxu0
      %v1998 = vadd.f32 0.0, %v1997
      %v1999 = vpop.f32.mrb[0].mxu0
      %2000 = vmatprep.mubr.f32.mxu0 %v1742
      %2001 = vmatmul.mubr.f32.gmra.mrb[0].mxu0 %v1741
      %v2002 = vpop.f32.mrb[0].mxu0
      %v2003 = vadd.f32 0.0, %v2002
      %v2004 = vpop.f32.mrb[0].mxu0
      %2005 = vmatprep.mubr.f32.mxu0 %v1745
      %2006 = vmatmul.mubr.f32.gmra.mrb[0].mxu0 %v1744
      %v2007 = vpop.f32.mrb[0].mxu0
      %v2008 = vadd.f32 0.0, %v2007
      %v2009 = vpop.f32.mrb[0].mxu0
      %2010 = vmatprep.mubr.f32.mxu0 %v1748
      %2011 = vmatmul.mubr.f32.gmra.mrb[0].mxu0 %v1747
      %v2012 = vpop.f32.mrb[0].mxu0
      %v2013 = vadd.f32 0.0, %v2012
      %v2014 = vpop.f32.mrb[0].mxu0
      %2015 = vmatprep.mubr.f32.mxu0 %v1751
      %2016 = vmatmul.mubr.f32.gmra.mrb[0].mxu0 %v1750
      %v2017 = vpop.f32.mrb[0].mxu0
      %v2018 = vadd.f32 0.0, %v2017
      %v2019 = vpop.f32.mrb[0].mxu0
      %2020 = vmatprep.mubr.f32.mxu0 %v1754
      %2021 = vmatmul.mubr.f32.gmra.mrb[0].mxu0 %v1753
      %v2022 = vpop.f32.mrb[0].mxu0
      %v2023 = vadd.f32 0.0, %v2022
      %v2024 = vpop.f32.mrb[0].mxu0
      %2025 = vmatprep.mubr.f32.mxu0 %v1757
      %2026 = vmatmul.mubr.f32.gmra.mrb[0].mxu0 %v1756
      %v2027 = vpop.f32.mrb[0].mxu0
      %v2028 = vadd.f32 0.0, %v2027
      %v2029 = vpop.f32.mrb[0].mxu0
      %2030 = vmatprep.mubr.f32.mxu0 %v1760
      %2031 = vmatmul.mubr.f32.gmra.mrb[0].mxu0 %v1759
      %v2032 = vpop.f32.mrb[0].mxu0
      %v2033 = vadd.f32 0.0, %v2032
      %v2034 = vpop.f32.mrb[0].mxu0
      %2035 = vmatprep.mubr.f32.mxu0 %v1763
      %2036 = vmatmul.mubr.f32.gmra.mrb[0].mxu0 %v1762
      %v2037 = vpop.f32.mrb[0].mxu0
      %v2038 = vadd.f32 0.0, %v2037
      %v2039 = vpop.f32.mrb[0].mxu0
      %2040 = vmatprep.mubr.f32.mxu0 %v1766
      %2041 = vmatmul.mubr.f32.gmra.mrb[0].mxu0 %v1765
      %v2042 = vpop.f32.mrb[0].mxu0
      %v2043 = vadd.f32 0.0, %v2042
      %v2044 = vpop.f32.mrb[0].mxu0
      %2045 = vmatprep.mubr.f32.mxu0 %v1769
      %2046 = vmatmul.mubr.f32.gmra.mrb[0].mxu0 %v1768
      %v2047 = vpop.f32.mrb[0].mxu0
      %v2048 = vadd.f32 0.0, %v2047
      %v2049 = vpop.f32.mrb[0].mxu0
      %2050 = vmatprep.mubr.f32.mxu0 %v1772
      %2051 = vmatmul.mubr.f32.gmra.mrb[0].mxu0 %v1771
      %v2052 = vpop.f32.mrb[0].mxu0
      %v2053 = vadd.f32 0.0, %v2052
      %v2054 = vpop.f32.mrb[0].mxu0
      %2055 = vmatprep.mubr.f32.mxu0 %v1775
      %2056 = vmatmul.mubr.f32.gmra.mrb[0].mxu0 %v1774
      %v2057 = vpop.f32.mrb[0].mxu0
      %v2058 = vadd.f32 0.0, %v2057
      %v2059 = vpop.f32.mrb[0].mxu0
      %2060 = vmatprep.mubr.f32.mxu0 %v1778
      %2061 = vmatmul.mubr.f32.gmra.mrb[0].mxu0 %v1777
      %v2062 = vpop.f32.mrb[0].mxu0
      %v2063 = vadd.f32 0.0, %v2062
      %v2064 = vpop.f32.mrb[0].mxu0
      %2065 = vmatprep.mubr.f32.mxu0 %v1781
      %2066 = vmatmul.mubr.f32.gmra.mrb[0].mxu0 %v1780
      %v2067 = vpop.f32.mrb[0].mxu0
      %v2068 = vadd.f32 0.0, %v2067
      %v2069 = vpop.f32.mrb[0].mxu0
      %2070 = vmatprep.mubr.f32.mxu0 %v1784
      %2071 = vmatmul.mubr.f32.gmra.mrb[0].mxu0 %v1783
      %v2072 = vpop.f32.mrb[0].mxu0
      %v2073 = vadd.f32 0.0, %v2072
      %v2074 = vpop.f32.mrb[0].mxu0
      %2075 = vmatprep.mubr.f32.mxu0 %v1787
      %2076 = vmatmul.mubr.f32.gmra.mrb[0].mxu0 %v1786
      %v2077 = vpop.f32.mrb[0].mxu0
      %v2078 = vadd.f32 0.0, %v2077
      %v2079 = vpop.f32.mrb[0].mxu0
      %2080 = vmatprep.mubr.f32.mxu0 %v1790
      %2081 = vmatmul.mubr.f32.gmra.mrb[0].mxu0 %v1789
      %v2082 = vpop.f32.mrb[0].mxu0
      %v2083 = vadd.f32 0.0, %v2082
      %v2084 = vpop.f32.mrb[0].mxu0
      %2085 = vmatprep.mubr.f32.mxu0 %v1793
      %2086 = vmatmul.mubr.f32.gmra.mrb[0].mxu0 %v1792
      %v2087 = vpop.f32.mrb[0].mxu0
      %v2088 = vadd.f32 0.0, %v2087
      %v2089 = vpop.f32.mrb[0].mxu0
      %2090 = vmatprep.mubr.f32.mxu0 %v1796
      %2091 = vmatmul.mubr.f32.gmra.mrb[0].mxu0 %v1795
      %v2092 = vpop.f32.mrb[0].mxu0
      %v2093 = vadd.f32 0.0, %v2092
      %v2094 = vpop.f32.mrb[0].mxu0
      %2095 = vmatprep.mubr.f32.mxu0 %v1799
      %2096 = vmatmul.mubr.f32.gmra.mrb[0].mxu0 %v1798
      %v2097 = vpop.f32.mrb[0].mxu0
      %v2098 = vadd.f32 0.0, %v2097
      %v2099 = vpop.f32.mrb[0].mxu0
      %2100 = vmatprep.mubr.f32.mxu0 %v1802
      %2101 = vmatmul.mubr.f32.gmra.mrb[0].mxu0 %v1801
      %v2102 = vpop.f32.mrb[0].mxu0
      %v2103 = vadd.f32 0.0, %v2102
      %v2104 = vpop.f32.mrb[0].mxu0
      %2105 = vmatprep.mubr.f32.mxu0 %v1805
      %2106 = vmatmul.mubr.f32.gmra.mrb[0].mxu0 %v1804
      %v2107 = vpop.f32.mrb[0].mxu0
      %v2108 = vadd.f32 0.0, %v2107
      %v2109 = vpop.f32.mrb[0].mxu0
      %2110 = vmatprep.mubr.f32.mxu0 %v1808
      %2111 = vmatmul.mubr.f32.gmra.mrb[0].mxu0 %v1807
      %v2112 = vpop.f32.mrb[0].mxu0
      %v2113 = vadd.f32 0.0, %v2112
      %v2114 = vpop.f32.mrb[0].mxu0
      %2115 = vmatprep.mubr.f32.mxu0 %v1811
      %2116 = vmatmul.mubr.f32.gmra.mrb[0].mxu0 %v1810
      %v2117 = vpop.f32.mrb[0].mxu0
      %v2118 = vadd.f32 0.0, %v2117
      %v2119 = vpop.f32.mrb[0].mxu0
      %2120 = vmatprep.mubr.f32.mxu0 %v1814
      %2121 = vmatmul.mubr.f32.gmra.mrb[0].mxu0 %v1813
      %v2122 = vpop.f32.mrb[0].mxu0
      %v2123 = vadd.f32 0.0, %v2122
      %v2124 = vpop.f32.mrb[0].mxu0
      %2125 = vmatprep.mubr.f32.mxu0 %v1817
      %2126 = vmatmul.mubr.f32.gmra.mrb[0].mxu0 %v1816
      %v2127 = vpop.f32.mrb[0].mxu0
      %v2128 = vadd.f32 0.0, %v2127
      %v2129 = vpop.f32.mrb[0].mxu0
      %2130 = vmatprep.mubr.f32.mxu0 %v1820
      %2131 = vmatmul.mubr.f32.gmra.mrb[0].mxu0 %v1819
      %v2132 = vpop.f32.mrb[0].mxu0
      %v2133 = vadd.f32 0.0, %v2132
      %v2134 = vpop.f32.mrb[0].mxu0
      %2135 = vmatprep.mubr.f32.mxu0 %v1823
      %2136 = vmatmul.mubr.f32.gmra.mrb[0].mxu0 %v1822
      %v2137 = vpop.f32.mrb[0].mxu0
      %v2138 = vadd.f32 0.0, %v2137
      %v2139 = vpop.f32.mrb[0].mxu0
      %2140 = vmatprep.mubr.f32.mxu0 %v1826
      %2141 = vmatmul.mubr.f32.gmra.mrb[0].mxu0 %v1825
      %v2142 = vpop.f32.mrb[0].mxu0
      %v2143 = vadd.f32 0.0, %v2142
      %v2144 = vpop.f32.mrb[0].mxu0
      %2145 = vmatprep.mubr.f32.mxu0 %v1877
      %2146 = vmatmul.mubr.f32.gmra.mrb[0].mxu0 %v1876
      %v2147 = vpop.f32.mrb[0].mxu0
      %v2148 = vadd.f32 0.0, %v2147
      %v2149 = vpop.f32.mrb[0].mxu0
      %2150 = vmatprep.mubr.f32.mxu0 %v1880
      %2151 = vmatmul.mubr.f32.gmra.mrb[0].mxu0 %v1879
      %v2152 = vpop.f32.mrb[0].mxu0
      %v2153 = vadd.f32 0.0, %v2152
      %v2154 = vpop.f32.mrb[0].mxu0
      %2155 = vdwg.mxu0
      %2156 = vmatprep.subr.mxu0 0.0
      %2157 = vmatpush1.msra.mxu0 %v1915
      %2158 = vmatprep.subr.mxu0 0.0
      %2159 = vmatpush1.msra.mxu0 %v1916
      %2160 = vmatprep.subr.mxu0 0.0
      %2161 = vmatpush1.msra.mxu0 %v1917
      %2162 = vmatprep.subr.mxu0 0.0
      %2163 = vmatpush1.msra.mxu0 %v1918
      %2164 = vmatprep.subr.mxu0 0.0
      %2165 = vmatpush1.msra.mxu0 %v1919
      %2166 = vmatprep.subr.mxu0 0.0
      %2167 = vmatpush1.msra.mxu0 %v1920
      %2168 = vmatprep.subr.mxu0 0.0
      %2169 = vmatpush1.msra.mxu0 %v1921
      %2170 = vmatprep.subr.mxu0 0.0
      %2171 = vmatpush1.msra.mxu0 %v1922
      %2172 = vmatprep.subr.mxu0 0.0
      %2173 = vmatpush1.msra.mxu0 %v1923
      %2174 = vmatprep.subr.mxu0 0.0
      %2175 = vmatpush1.msra.mxu0 %v1924
      %2176 = vmatprep.subr.mxu0 0.0
      %2177 = vmatpush1.msra.mxu0 %v1925
      %2178 = vmatprep.subr.mxu0 0.0
      %2179 = vmatpush1.msra.mxu0 %v1926
      %2180 = vmatprep.subr.mxu0 0.0
      %2181 = vmatpush1.msra.mxu0 %v1927
      %2182 = vmatprep.subr.mxu0 0.0
      %2183 = vmatpush1.msra.mxu0 %v1928
      %2184 = vmatprep.subr.mxu0 0.0
      %2185 = vmatpush1.msra.mxu0 %v1929
      %2186 = vmatprep.subr.mxu0 0.0
      %2187 = vmatpush1.msra.mxu0 %v1930
      %2188 = vmatprep.subr.mxu0 0.0
      %2189 = vmatpush1.msra.mxu0 0.0
      %2190 = vmatprep.subr.mxu0 0.0
      %2191 = vmatpush1.msra.mxu0 0.0
      %2192 = vmatprep.subr.mxu0 0.0
      %2193 = vmatpush1.msra.mxu0 0.0
      %2194 = vmatprep.subr.mxu0 0.0
      %2195 = vmatpush1.msra.mxu0 0.0
      %2196 = vmatprep.subr.mxu0 0.0
      %2197 = vmatpush1.msra.mxu0 0.0
      %2198 = vmatprep.subr.mxu0 0.0
      %2199 = vmatpush1.msra.mxu0 0.0
      %2200 = vmatprep.subr.mxu0 0.0
      %2201 = vmatpush1.msra.mxu0 0.0
      %2202 = vmatprep.subr.mxu0 0.0
      %2203 = vmatpush1.msra.mxu0 0.0
      %2204 = vmatprep.subr.mxu0 0.0
      %2205 = vmatpush1.msra.mxu0 0.0
      %2206 = vmatprep.subr.mxu0 0.0
      %2207 = vmatpush1.msra.mxu0 0.0
      %2208 = vmatprep.subr.mxu0 0.0
      %2209 = vmatpush1.msra.mxu0 0.0
      %2210 = vmatprep.subr.mxu0 0.0
      %2211 = vmatpush1.msra.mxu0 0.0
      %2212 = vmatprep.subr.mxu0 0.0
      %2213 = vmatpush1.msra.mxu0 0.0
      %2214 = vmatprep.subr.mxu0 0.0
      %2215 = vmatpush1.msra.mxu0 0.0
      %2216 = vmatprep.subr.mxu0 0.0
      %2217 = vmatpush1.msra.mxu0 0.0
      %2218 = vmatprep.subr.mxu0 0.0
      %2219 = vmatpush1.msra.mxu0 0.0
      %2220 = vmatprep.mubr.f32.mxu0 0.0
      %2221 = vmatmul.mubr.f32.gmra.mrb[0].mxu0 %v1740
      %v2222 = vpop.f32.mrb[0].mxu0
      %v2223 = vadd.f32 %v1998, %v2222
      %v2224 = vpop.f32.mrb[0].mxu0
      %2225 = vmatprep.mubr.f32.mxu0 0.0
      %2226 = vmatmul.mubr.f32.gmra.mrb[0].mxu0 %v1743
      %v2227 = vpop.f32.mrb[0].mxu0
      %v2228 = vadd.f32 %v2003, %v2227
      %v2229 = vpop.f32.mrb[0].mxu0
      %2230 = vmatprep.mubr.f32.mxu0 0.0
      %2231 = vmatmul.mubr.f32.gmra.mrb[0].mxu0 %v1746
      %v2232 = vpop.f32.mrb[0].mxu0
      %v2233 = vadd.f32 %v2008, %v2232
      %v2234 = vpop.f32.mrb[0].mxu0
      %2235 = vmatprep.mubr.f32.mxu0 0.0
      %2236 = vmatmul.mubr.f32.gmra.mrb[0].mxu0 %v1749
      %v2237 = vpop.f32.mrb[0].mxu0
      %v2238 = vadd.f32 %v2013, %v2237
      %v2239 = vpop.f32.mrb[0].mxu0
      %2240 = vmatprep.mubr.f32.mxu0 0.0
      %2241 = vmatmul.mubr.f32.gmra.mrb[0].mxu0 %v1752
      %v2242 = vpop.f32.mrb[0].mxu0
      %v2243 = vadd.f32 %v2018, %v2242
      %v2244 = vpop.f32.mrb[0].mxu0
      %2245 = vmatprep.mubr.f32.mxu0 0.0
      %2246 = vmatmul.mubr.f32.gmra.mrb[0].mxu0 %v1755
      %v2247 = vpop.f32.mrb[0].mxu0
      %v2248 = vadd.f32 %v2023, %v2247
      %v2249 = vpop.f32.mrb[0].mxu0
      %2250 = vmatprep.mubr.f32.mxu0 0.0
      %2251 = vmatmul.mubr.f32.gmra.mrb[0].mxu0 %v1758
      %v2252 = vpop.f32.mrb[0].mxu0
      %v2253 = vadd.f32 %v2028, %v2252
      %v2254 = vpop.f32.mrb[0].mxu0
      %2255 = vmatprep.mubr.f32.mxu0 0.0
      %2256 = vmatmul.mubr.f32.gmra.mrb[0].mxu0 %v1761
      %v2257 = vpop.f32.mrb[0].mxu0
      %v2258 = vadd.f32 %v2033, %v2257
      %v2259 = vpop.f32.mrb[0].mxu0
      %2260 = vmatprep.mubr.f32.mxu0 0.0
      %2261 = vmatmul.mubr.f32.gmra.mrb[0].mxu0 %v1764
      %v2262 = vpop.f32.mrb[0].mxu0
      %v2263 = vadd.f32 %v2038, %v2262
      %v2264 = vpop.f32.mrb[0].mxu0
      %2265 = vmatprep.mubr.f32.mxu0 0.0
      %2266 = vmatmul.mubr.f32.gmra.mrb[0].mxu0 %v1767
      %v2267 = vpop.f32.mrb[0].mxu0
      %v2268 = vadd.f32 %v2043, %v2267
      %v2269 = vpop.f32.mrb[0].mxu0
      %2270 = vmatprep.mubr.f32.mxu0 0.0
      %2271 = vmatmul.mubr.f32.gmra.mrb[0].mxu0 %v1770
      %v2272 = vpop.f32.mrb[0].mxu0
      %v2273 = vadd.f32 %v2048, %v2272
      %v2274 = vpop.f32.mrb[0].mxu0
      %2275 = vmatprep.mubr.f32.mxu0 0.0
      %2276 = vmatmul.mubr.f32.gmra.mrb[0].mxu0 %v1773
      %v2277 = vpop.f32.mrb[0].mxu0
      %v2278 = vadd.f32 %v2053, %v2277
      %v2279 = vpop.f32.mrb[0].mxu0
      %2280 = vmatprep.mubr.f32.mxu0 0.0
      %2281 = vmatmul.mubr.f32.gmra.mrb[0].mxu0 %v1776
      %v2282 = vpop.f32.mrb[0].mxu0
      %v2283 = vadd.f32 %v2058, %v2282
      %v2284 = vpop.f32.mrb[0].mxu0
      %2285 = vmatprep.mubr.f32.mxu0 0.0
      %2286 = vmatmul.mubr.f32.gmra.mrb[0].mxu0 %v1779
      %v2287 = vpop.f32.mrb[0].mxu0
      %v2288 = vadd.f32 %v2063, %v2287
      %v2289 = vpop.f32.mrb[0].mxu0
      %2290 = vmatprep.mubr.f32.mxu0 0.0
      %2291 = vmatmul.mubr.f32.gmra.mrb[0].mxu0 %v1782
      %v2292 = vpop.f32.mrb[0].mxu0
      %v2293 = vadd.f32 %v2068, %v2292
      %v2294 = vpop.f32.mrb[0].mxu0
      %2295 = vmatprep.mubr.f32.mxu0 0.0
      %2296 = vmatmul.mubr.f32.gmra.mrb[0].mxu0 %v1785
      %v2297 = vpop.f32.mrb[0].mxu0
      %v2298 = vadd.f32 %v2073, %v2297
      %v2299 = vpop.f32.mrb[0].mxu0
      %2300 = vmatprep.mubr.f32.mxu0 0.0
      %2301 = vmatmul.mubr.f32.gmra.mrb[0].mxu0 %v1788
      %v2302 = vpop.f32.mrb[0].mxu0
      %v2303 = vadd.f32 %v2078, %v2302
      %v2304 = vpop.f32.mrb[0].mxu0
      %2305 = vmatprep.mubr.f32.mxu0 0.0
      %2306 = vmatmul.mubr.f32.gmra.mrb[0].mxu0 %v1791
      %v2307 = vpop.f32.mrb[0].mxu0
      %v2308 = vadd.f32 %v2083, %v2307
      %v2309 = vpop.f32.mrb[0].mxu0
      %2310 = vmatprep.mubr.f32.mxu0 0.0
      %2311 = vmatmul.mubr.f32.gmra.mrb[0].mxu0 %v1794
      %v2312 = vpop.f32.mrb[0].mxu0
      %v2313 = vadd.f32 %v2088, %v2312
      %v2314 = vpop.f32.mrb[0].mxu0
      %2315 = vmatprep.mubr.f32.mxu0 0.0
      %2316 = vmatmul.mubr.f32.gmra.mrb[0].mxu0 %v1797
      %v2317 = vpop.f32.mrb[0].mxu0
      %v2318 = vadd.f32 %v2093, %v2317
      %v2319 = vpop.f32.mrb[0].mxu0
      %2320 = vmatprep.mubr.f32.mxu0 0.0
      %2321 = vmatmul.mubr.f32.gmra.mrb[0].mxu0 %v1800
      %v2322 = vpop.f32.mrb[0].mxu0
      %v2323 = vadd.f32 %v2098, %v2322
      %v2324 = vpop.f32.mrb[0].mxu0
      %2325 = vmatprep.mubr.f32.mxu0 0.0
      %2326 = vmatmul.mubr.f32.gmra.mrb[0].mxu0 %v1803
      %v2327 = vpop.f32.mrb[0].mxu0
      %v2328 = vadd.f32 %v2103, %v2327
      %v2329 = vpop.f32.mrb[0].mxu0
      %2330 = vmatprep.mubr.f32.mxu0 0.0
      %2331 = vmatmul.mubr.f32.gmra.mrb[0].mxu0 %v1806
      %v2332 = vpop.f32.mrb[0].mxu0
      %v2333 = vadd.f32 %v2108, %v2332
      %v2334 = vpop.f32.mrb[0].mxu0
      %2335 = vmatprep.mubr.f32.mxu0 0.0
      %2336 = vmatmul.mubr.f32.gmra.mrb[0].mxu0 %v1809
      %v2337 = vpop.f32.mrb[0].mxu0
      %v2338 = vadd.f32 %v2113, %v2337
      %v2339 = vpop.f32.mrb[0].mxu0
      %2340 = vmatprep.mubr.f32.mxu0 0.0
      %2341 = vmatmul.mubr.f32.gmra.mrb[0].mxu0 %v1812
      %v2342 = vpop.f32.mrb[0].mxu0
      %v2343 = vadd.f32 %v2118, %v2342
      %v2344 = vpop.f32.mrb[0].mxu0
      %2345 = vmatprep.mubr.f32.mxu0 0.0
      %2346 = vmatmul.mubr.f32.gmra.mrb[0].mxu0 %v1815
      %v2347 = vpop.f32.mrb[0].mxu0
      %v2348 = vadd.f32 %v2123, %v2347
      %v2349 = vpop.f32.mrb[0].mxu0
      %2350 = vmatprep.mubr.f32.mxu0 0.0
      %2351 = vmatmul.mubr.f32.gmra.mrb[0].mxu0 %v1818
      %v2352 = vpop.f32.mrb[0].mxu0
      %v2353 = vadd.f32 %v2128, %v2352
      %v2354 = vpop.f32.mrb[0].mxu0
      %2355 = vmatprep.mubr.f32.mxu0 0.0
      %2356 = vmatmul.mubr.f32.gmra.mrb[0].mxu0 %v1821
      %v2357 = vpop.f32.mrb[0].mxu0
      %v2358 = vadd.f32 %v2133, %v2357
      %v2359 = vpop.f32.mrb[0].mxu0
      %2360 = vmatprep.mubr.f32.mxu0 0.0
      %2361 = vmatmul.mubr.f32.gmra.mrb[0].mxu0 %v1824
      %v2362 = vpop.f32.mrb[0].mxu0
      %v2363 = vadd.f32 %v2138, %v2362
      %v2364 = vpop.f32.mrb[0].mxu0
      %2365 = vmatprep.mubr.f32.mxu0 0.0
      %2366 = vmatmul.mubr.f32.gmra.mrb[0].mxu0 %v1827
      %v2367 = vpop.f32.mrb[0].mxu0
      %v2368 = vadd.f32 %v2143, %v2367
      %v2369 = vpop.f32.mrb[0].mxu0
      %2370 = vmatprep.mubr.f32.mxu0 0.0
      %2371 = vmatmul.mubr.f32.gmra.mrb[0].mxu0 %v1878
      %v2372 = vpop.f32.mrb[0].mxu0
      %v2373 = vadd.f32 %v2148, %v2372
      %v2374 = vpop.f32.mrb[0].mxu0
      %2375 = vmatprep.mubr.f32.mxu0 0.0
      %2376 = vmatmul.mubr.f32.gmra.mrb[0].mxu0 %v1881
      %v2377 = vpop.f32.mrb[0].mxu0
      %v2378 = vadd.f32 %v2153, %v2377
      %v2379 = vpop.f32.mrb[0].mxu0
      %2380 = vdwg.mxu0
      %2381 = vmatprep.subr.mxu0 0.0
      %2382 = vmatpush1.msra.mxu0 %v1828
      %2383 = vmatprep.subr.mxu0 0.0
      %2384 = vmatpush1.msra.mxu0 %v1829
      %2385 = vmatprep.subr.mxu0 0.0
      %2386 = vmatpush1.msra.mxu0 %v1830
      %2387 = vmatprep.subr.mxu0 0.0
      %2388 = vmatpush1.msra.mxu0 %v1831
      %2389 = vmatprep.subr.mxu0 0.0
      %2390 = vmatpush1.msra.mxu0 %v1832
      %2391 = vmatprep.subr.mxu0 0.0
      %2392 = vmatpush1.msra.mxu0 %v1833
      %2393 = vmatprep.subr.mxu0 0.0
      %2394 = vmatpush1.msra.mxu0 %v1834
      %2395 = vmatprep.subr.mxu0 0.0
      %2396 = vmatpush1.msra.mxu0 %v1835
      %2397 = vmatprep.subr.mxu0 0.0
      %2398 = vmatpush1.msra.mxu0 %v1836
      %2399 = vmatprep.subr.mxu0 0.0
      %2400 = vmatpush1.msra.mxu0 %v1837
      %2401 = vmatprep.subr.mxu0 0.0
      %2402 = vmatpush1.msra.mxu0 %v1838
      %2403 = vmatprep.subr.mxu0 0.0
      %2404 = vmatpush1.msra.mxu0 %v1839
      %2405 = vmatprep.subr.mxu0 0.0
      %2406 = vmatpush1.msra.mxu0 %v1840
      %2407 = vmatprep.subr.mxu0 0.0
      %2408 = vmatpush1.msra.mxu0 %v1841
      %2409 = vmatprep.subr.mxu0 0.0
      %2410 = vmatpush1.msra.mxu0 %v1842
      %2411 = vmatprep.subr.mxu0 0.0
      %2412 = vmatpush1.msra.mxu0 %v1843
      %2413 = vmatprep.subr.mxu0 0.0
      %2414 = vmatpush1.msra.mxu0 %v1844
      %2415 = vmatprep.subr.mxu0 0.0
      %2416 = vmatpush1.msra.mxu0 %v1845
      %2417 = vmatprep.subr.mxu0 0.0
      %2418 = vmatpush1.msra.mxu0 %v1846
      %2419 = vmatprep.subr.mxu0 0.0
      %2420 = vmatpush1.msra.mxu0 %v1847
      %2421 = vmatprep.subr.mxu0 0.0
      %2422 = vmatpush1.msra.mxu0 %v1848
      %2423 = vmatprep.subr.mxu0 0.0
      %2424 = vmatpush1.msra.mxu0 %v1849
      %2425 = vmatprep.subr.mxu0 0.0
      %2426 = vmatpush1.msra.mxu0 %v1850
      %2427 = vmatprep.subr.mxu0 0.0
      %2428 = vmatpush1.msra.mxu0 %v1851
      %2429 = vmatprep.subr.mxu0 0.0
      %2430 = vmatpush1.msra.mxu0 %v1852
      %2431 = vmatprep.subr.mxu0 0.0
      %2432 = vmatpush1.msra.mxu0 %v1853
      %2433 = vmatprep.subr.mxu0 0.0
      %2434 = vmatpush1.msra.mxu0 %v1854
      %2435 = vmatprep.subr.mxu0 0.0
      %2436 = vmatpush1.msra.mxu0 %v1855
      %2437 = vmatprep.subr.mxu0 0.0
      %2438 = vmatpush1.msra.mxu0 %v1856
      %2439 = vmatprep.subr.mxu0 0.0
      %2440 = vmatpush1.msra.mxu0 %v1857
      %2441 = vmatprep.subr.mxu0 0.0
      %2442 = vmatpush1.msra.mxu0 %v1858
      %2443 = vmatprep.subr.mxu0 0.0
      %2444 = vmatpush1.msra.mxu0 %v1859
      %2445 = vmatprep.mubr.f32.mxu0 %v1733
      %2446 = vmatmul.mubr.f32.gmra.mrb[0].mxu0 %v1732
      %v2447 = vpop.f32.mrb[0].mxu0
      %v2448 = vadd.f32 %v2223, %v2447
      %v2449 = vpop.f32.mrb[0].mxu0
      %2450 = vmatprep.mubr.f32.mxu0 %v1736
      %2451 = vmatmul.mubr.f32.gmra.mrb[0].mxu0 %v1735
      %v2452 = vpop.f32.mrb[0].mxu0
      %v2453 = vadd.f32 %v2228, %v2452
      %v2454 = vpop.f32.mrb[0].mxu0
      %2455 = vmatprep.mubr.f32.mxu0 %v1739
      %2456 = vmatmul.mubr.f32.gmra.mrb[0].mxu0 %v1738
      %v2457 = vpop.f32.mrb[0].mxu0
      %v2458 = vadd.f32 %v2233, %v2457
      %v2459 = vpop.f32.mrb[0].mxu0
      %2460 = vmatprep.mubr.f32.mxu0 %v1742
      %2461 = vmatmul.mubr.f32.gmra.mrb[0].mxu0 %v1741
      %v2462 = vpop.f32.mrb[0].mxu0
      %v2463 = vadd.f32 %v2238, %v2462
      %v2464 = vpop.f32.mrb[0].mxu0
      %2465 = vmatprep.mubr.f32.mxu0 %v1745
      %2466 = vmatmul.mubr.f32.gmra.mrb[0].mxu0 %v1744
      %v2467 = vpop.f32.mrb[0].mxu0
      %v2468 = vadd.f32 %v2243, %v2467
      %v2469 = vpop.f32.mrb[0].mxu0
      %2470 = vmatprep.mubr.f32.mxu0 %v1748
      %2471 = vmatmul.mubr.f32.gmra.mrb[0].mxu0 %v1747
      %v2472 = vpop.f32.mrb[0].mxu0
      %v2473 = vadd.f32 %v2248, %v2472
      %v2474 = vpop.f32.mrb[0].mxu0
      %2475 = vmatprep.mubr.f32.mxu0 %v1751
      %2476 = vmatmul.mubr.f32.gmra.mrb[0].mxu0 %v1750
      %v2477 = vpop.f32.mrb[0].mxu0
      %v2478 = vadd.f32 %v2253, %v2477
      %v2479 = vpop.f32.mrb[0].mxu0
      %2480 = vmatprep.mubr.f32.mxu0 %v1754
      %2481 = vmatmul.mubr.f32.gmra.mrb[0].mxu0 %v1753
      %v2482 = vpop.f32.mrb[0].mxu0
      %v2483 = vadd.f32 %v2258, %v2482
      %v2484 = vpop.f32.mrb[0].mxu0
      %2485 = vmatprep.mubr.f32.mxu0 %v1757
      %2486 = vmatmul.mubr.f32.gmra.mrb[0].mxu0 %v1756
      %v2487 = vpop.f32.mrb[0].mxu0
      %v2488 = vadd.f32 %v2263, %v2487
      %v2489 = vpop.f32.mrb[0].mxu0
      %2490 = vmatprep.mubr.f32.mxu0 %v1760
      %2491 = vmatmul.mubr.f32.gmra.mrb[0].mxu0 %v1759
      %v2492 = vpop.f32.mrb[0].mxu0
      %v2493 = vadd.f32 %v2268, %v2492
      %v2494 = vpop.f32.mrb[0].mxu0
      %2495 = vmatprep.mubr.f32.mxu0 %v1763
      %2496 = vmatmul.mubr.f32.gmra.mrb[0].mxu0 %v1762
      %v2497 = vpop.f32.mrb[0].mxu0
      %v2498 = vadd.f32 %v2273, %v2497
      %v2499 = vpop.f32.mrb[0].mxu0
      %2500 = vmatprep.mubr.f32.mxu0 %v1766
      %2501 = vmatmul.mubr.f32.gmra.mrb[0].mxu0 %v1765
      %v2502 = vpop.f32.mrb[0].mxu0
      %v2503 = vadd.f32 %v2278, %v2502
      %v2504 = vpop.f32.mrb[0].mxu0
      %2505 = vmatprep.mubr.f32.mxu0 %v1769
      %2506 = vmatmul.mubr.f32.gmra.mrb[0].mxu0 %v1768
      %v2507 = vpop.f32.mrb[0].mxu0
      %v2508 = vadd.f32 %v2283, %v2507
      %v2509 = vpop.f32.mrb[0].mxu0
      %2510 = vmatprep.mubr.f32.mxu0 %v1772
      %2511 = vmatmul.mubr.f32.gmra.mrb[0].mxu0 %v1771
      %v2512 = vpop.f32.mrb[0].mxu0
      %v2513 = vadd.f32 %v2288, %v2512
      %v2514 = vpop.f32.mrb[0].mxu0
      %2515 = vmatprep.mubr.f32.mxu0 %v1775
      %2516 = vmatmul.mubr.f32.gmra.mrb[0].mxu0 %v1774
      %v2517 = vpop.f32.mrb[0].mxu0
      %v2518 = vadd.f32 %v2293, %v2517
      %v2519 = vpop.f32.mrb[0].mxu0
      %2520 = vmatprep.mubr.f32.mxu0 %v1778
      %2521 = vmatmul.mubr.f32.gmra.mrb[0].mxu0 %v1777
      %v2522 = vpop.f32.mrb[0].mxu0
      %v2523 = vadd.f32 %v2298, %v2522
      %v2524 = vpop.f32.mrb[0].mxu0
      %2525 = vmatprep.mubr.f32.mxu0 %v1781
      %2526 = vmatmul.mubr.f32.gmra.mrb[0].mxu0 %v1780
      %v2527 = vpop.f32.mrb[0].mxu0
      %v2528 = vadd.f32 %v2303, %v2527
      %v2529 = vpop.f32.mrb[0].mxu0
      %2530 = vmatprep.mubr.f32.mxu0 %v1784
      %2531 = vmatmul.mubr.f32.gmra.mrb[0].mxu0 %v1783
      %v2532 = vpop.f32.mrb[0].mxu0
      %v2533 = vadd.f32 %v2308, %v2532
      %v2534 = vpop.f32.mrb[0].mxu0
      %2535 = vmatprep.mubr.f32.mxu0 %v1787
      %2536 = vmatmul.mubr.f32.gmra.mrb[0].mxu0 %v1786
      %v2537 = vpop.f32.mrb[0].mxu0
      %v2538 = vadd.f32 %v2313, %v2537
      %v2539 = vpop.f32.mrb[0].mxu0
      %2540 = vmatprep.mubr.f32.mxu0 %v1790
      %2541 = vmatmul.mubr.f32.gmra.mrb[0].mxu0 %v1789
      %v2542 = vpop.f32.mrb[0].mxu0
      %v2543 = vadd.f32 %v2318, %v2542
      %v2544 = vpop.f32.mrb[0].mxu0
      %2545 = vmatprep.mubr.f32.mxu0 %v1793
      %2546 = vmatmul.mubr.f32.gmra.mrb[0].mxu0 %v1792
      %v2547 = vpop.f32.mrb[0].mxu0
      %v2548 = vadd.f32 %v2323, %v2547
      %v2549 = vpop.f32.mrb[0].mxu0
      %2550 = vmatprep.mubr.f32.mxu0 %v1796
      %2551 = vmatmul.mubr.f32.gmra.mrb[0].mxu0 %v1795
      %v2552 = vpop.f32.mrb[0].mxu0
      %v2553 = vadd.f32 %v2328, %v2552
      %v2554 = vpop.f32.mrb[0].mxu0
      %2555 = vmatprep.mubr.f32.mxu0 %v1799
      %2556 = vmatmul.mubr.f32.gmra.mrb[0].mxu0 %v1798
      %v2557 = vpop.f32.mrb[0].mxu0
      %v2558 = vadd.f32 %v2333, %v2557
      %v2559 = vpop.f32.mrb[0].mxu0
      %2560 = vmatprep.mubr.f32.mxu0 %v1802
      %2561 = vmatmul.mubr.f32.gmra.mrb[0].mxu0 %v1801
      %v2562 = vpop.f32.mrb[0].mxu0
      %v2563 = vadd.f32 %v2338, %v2562
      %v2564 = vpop.f32.mrb[0].mxu0
      %2565 = vmatprep.mubr.f32.mxu0 %v1805
      %2566 = vmatmul.mubr.f32.gmra.mrb[0].mxu0 %v1804
      %v2567 = vpop.f32.mrb[0].mxu0
      %v2568 = vadd.f32 %v2343, %v2567
      %v2569 = vpop.f32.mrb[0].mxu0
      %2570 = vmatprep.mubr.f32.mxu0 %v1808
      %2571 = vmatmul.mubr.f32.gmra.mrb[0].mxu0 %v1807
      %v2572 = vpop.f32.mrb[0].mxu0
      %v2573 = vadd.f32 %v2348, %v2572
      %v2574 = vpop.f32.mrb[0].mxu0
      %2575 = vmatprep.mubr.f32.mxu0 %v1811
      %2576 = vmatmul.mubr.f32.gmra.mrb[0].mxu0 %v1810
      %v2577 = vpop.f32.mrb[0].mxu0
      %v2578 = vadd.f32 %v2353, %v2577
      %v2579 = vpop.f32.mrb[0].mxu0
      %2580 = vmatprep.mubr.f32.mxu0 %v1814
      %2581 = vmatmul.mubr.f32.gmra.mrb[0].mxu0 %v1813
      %v2582 = vpop.f32.mrb[0].mxu0
      %v2583 = vadd.f32 %v2358, %v2582
      %v2584 = vpop.f32.mrb[0].mxu0
      %2585 = vmatprep.mubr.f32.mxu0 %v1817
      %2586 = vmatmul.mubr.f32.gmra.mrb[0].mxu0 %v1816
      %v2587 = vpop.f32.mrb[0].mxu0
      %v2588 = vadd.f32 %v2363, %v2587
      %v2589 = vpop.f32.mrb[0].mxu0
      %2590 = vmatprep.mubr.f32.mxu0 %v1820
      %2591 = vmatmul.mubr.f32.gmra.mrb[0].mxu0 %v1819
      %v2592 = vpop.f32.mrb[0].mxu0
      %v2593 = vadd.f32 %v2368, %v2592
      %v2594 = vpop.f32.mrb[0].mxu0
      %2595 = vmatprep.mubr.f32.mxu0 %v1823
      %2596 = vmatmul.mubr.f32.gmra.mrb[0].mxu0 %v1822
      %v2597 = vpop.f32.mrb[0].mxu0
      %v2598 = vadd.f32 %v2373, %v2597
      %v2599 = vpop.f32.mrb[0].mxu0
      %2600 = vmatprep.mubr.f32.mxu0 %v1826
      %2601 = vmatmul.mubr.f32.gmra.mrb[0].mxu0 %v1825
      %v2602 = vpop.f32.mrb[0].mxu0
      %v2603 = vadd.f32 %v2378, %v2602
      %v2604 = vpop.f32.mrb[0].mxu0
      %2605 = vdwg.mxu0
      %2606 = vmatprep.subr.mxu0 0.0
      %2607 = vmatpush1.msra.mxu0 %v1860
      %2608 = vmatprep.subr.mxu0 0.0
      %2609 = vmatpush1.msra.mxu0 %v1861
      %2610 = vmatprep.subr.mxu0 0.0
      %2611 = vmatpush1.msra.mxu0 %v1862
      %2612 = vmatprep.subr.mxu0 0.0
      %2613 = vmatpush1.msra.mxu0 %v1863
      %2614 = vmatprep.subr.mxu0 0.0
      %2615 = vmatpush1.msra.mxu0 %v1864
      %2616 = vmatprep.subr.mxu0 0.0
      %2617 = vmatpush1.msra.mxu0 %v1865
      %2618 = vmatprep.subr.mxu0 0.0
      %2619 = vmatpush1.msra.mxu0 %v1866
      %2620 = vmatprep.subr.mxu0 0.0
      %2621 = vmatpush1.msra.mxu0 %v1867
      %2622 = vmatprep.subr.mxu0 0.0
      %2623 = vmatpush1.msra.mxu0 %v1868
      %2624 = vmatprep.subr.mxu0 0.0
      %2625 = vmatpush1.msra.mxu0 %v1869
      %2626 = vmatprep.subr.mxu0 0.0
      %2627 = vmatpush1.msra.mxu0 %v1870
      %2628 = vmatprep.subr.mxu0 0.0
      %2629 = vmatpush1.msra.mxu0 %v1871
      %2630 = vmatprep.subr.mxu0 0.0
      %2631 = vmatpush1.msra.mxu0 %v1872
      %2632 = vmatprep.subr.mxu0 0.0
      %2633 = vmatpush1.msra.mxu0 %v1873
      %2634 = vmatprep.subr.mxu0 0.0
      %2635 = vmatpush1.msra.mxu0 %v1874
      %2636 = vmatprep.subr.mxu0 0.0
      %2637 = vmatpush1.msra.mxu0 %v1875
      %2638 = vmatprep.subr.mxu0 0.0
      %2639 = vmatpush1.msra.mxu0 0.0
      %2640 = vmatprep.subr.mxu0 0.0
      %2641 = vmatpush1.msra.mxu0 0.0
      %2642 = vmatprep.subr.mxu0 0.0
      %2643 = vmatpush1.msra.mxu0 0.0
      %2644 = vmatprep.subr.mxu0 0.0
      %2645 = vmatpush1.msra.mxu0 0.0
      %2646 = vmatprep.subr.mxu0 0.0
      %2647 = vmatpush1.msra.mxu0 0.0
      %2648 = vmatprep.subr.mxu0 0.0
      %2649 = vmatpush1.msra.mxu0 0.0
      %2650 = vmatprep.subr.mxu0 0.0
      %2651 = vmatpush1.msra.mxu0 0.0
      %2652 = vmatprep.subr.mxu0 0.0
      %2653 = vmatpush1.msra.mxu0 0.0
      %2654 = vmatprep.subr.mxu0 0.0
      %2655 = vmatpush1.msra.mxu0 0.0
      %2656 = vmatprep.subr.mxu0 0.0
      %2657 = vmatpush1.msra.mxu0 0.0
      %2658 = vmatprep.subr.mxu0 0.0
      %2659 = vmatpush1.msra.mxu0 0.0
      %2660 = vmatprep.subr.mxu0 0.0
      %2661 = vmatpush1.msra.mxu0 0.0
      %2662 = vmatprep.subr.mxu0 0.0
      %2663 = vmatpush1.msra.mxu0 0.0
      %2664 = vmatprep.subr.mxu0 0.0
      %2665 = vmatpush1.msra.mxu0 0.0
      %2666 = vmatprep.subr.mxu0 0.0
      %2667 = vmatpush1.msra.mxu0 0.0
      %2668 = vmatprep.subr.mxu0 0.0
      %2669 = vmatpush1.msra.mxu0 0.0
      %2670 = vmatprep.mubr.f32.mxu0 0.0
      %2671 = vmatmul.mubr.f32.gmra.mrb[0].mxu0 %v1734
      %v2672 = vpop.f32.mrb[0].mxu0
      %v2673 = vadd.f32 %v2448, %v2672
      %v2674 = vpop.f32.mrb[0].mxu0
      %2675 = vmatprep.mubr.f32.mxu0 0.0
      %2676 = vmatmul.mubr.f32.gmra.mrb[0].mxu0 %v1737
      %v2677 = vpop.f32.mrb[0].mxu0
      %v2678 = vadd.f32 %v2453, %v2677
      %v2679 = vpop.f32.mrb[0].mxu0
      %2680 = vmatprep.mubr.f32.mxu0 0.0
      %2681 = vmatmul.mubr.f32.gmra.mrb[0].mxu0 %v1740
      %v2682 = vpop.f32.mrb[0].mxu0
      %v2683 = vadd.f32 %v2458, %v2682
      %v2684 = vpop.f32.mrb[0].mxu0
      %2685 = vmatprep.mubr.f32.mxu0 0.0
      %2686 = vmatmul.mubr.f32.gmra.mrb[0].mxu0 %v1743
      %v2687 = vpop.f32.mrb[0].mxu0
      %v2688 = vadd.f32 %v2463, %v2687
      %v2689 = vpop.f32.mrb[0].mxu0
      %2690 = vmatprep.mubr.f32.mxu0 0.0
      %2691 = vmatmul.mubr.f32.gmra.mrb[0].mxu0 %v1746
      %v2692 = vpop.f32.mrb[0].mxu0
      %v2693 = vadd.f32 %v2468, %v2692
      %v2694 = vpop.f32.mrb[0].mxu0
      %2695 = vmatprep.mubr.f32.mxu0 0.0
      %2696 = vmatmul.mubr.f32.gmra.mrb[0].mxu0 %v1749
      %v2697 = vpop.f32.mrb[0].mxu0
      %v2698 = vadd.f32 %v2473, %v2697
      %v2699 = vpop.f32.mrb[0].mxu0
      %2700 = vmatprep.mubr.f32.mxu0 0.0
      %2701 = vmatmul.mubr.f32.gmra.mrb[0].mxu0 %v1752
      %v2702 = vpop.f32.mrb[0].mxu0
      %v2703 = vadd.f32 %v2478, %v2702
      %v2704 = vpop.f32.mrb[0].mxu0
      %2705 = vmatprep.mubr.f32.mxu0 0.0
      %2706 = vmatmul.mubr.f32.gmra.mrb[0].mxu0 %v1755
      %v2707 = vpop.f32.mrb[0].mxu0
      %v2708 = vadd.f32 %v2483, %v2707
      %v2709 = vpop.f32.mrb[0].mxu0
      %2710 = vmatprep.mubr.f32.mxu0 0.0
      %2711 = vmatmul.mubr.f32.gmra.mrb[0].mxu0 %v1758
      %v2712 = vpop.f32.mrb[0].mxu0
      %v2713 = vadd.f32 %v2488, %v2712
      %v2714 = vpop.f32.mrb[0].mxu0
      %2715 = vmatprep.mubr.f32.mxu0 0.0
      %2716 = vmatmul.mubr.f32.gmra.mrb[0].mxu0 %v1761
      %v2717 = vpop.f32.mrb[0].mxu0
      %v2718 = vadd.f32 %v2493, %v2717
      %v2719 = vpop.f32.mrb[0].mxu0
      %2720 = vmatprep.mubr.f32.mxu0 0.0
      %2721 = vmatmul.mubr.f32.gmra.mrb[0].mxu0 %v1764
      %v2722 = vpop.f32.mrb[0].mxu0
      %v2723 = vadd.f32 %v2498, %v2722
      %v2724 = vpop.f32.mrb[0].mxu0
      %2725 = vmatprep.mubr.f32.mxu0 0.0
      %2726 = vmatmul.mubr.f32.gmra.mrb[0].mxu0 %v1767
      %v2727 = vpop.f32.mrb[0].mxu0
      %v2728 = vadd.f32 %v2503, %v2727
      %v2729 = vpop.f32.mrb[0].mxu0
      %2730 = vmatprep.mubr.f32.mxu0 0.0
      %2731 = vmatmul.mubr.f32.gmra.mrb[0].mxu0 %v1770
      %v2732 = vpop.f32.mrb[0].mxu0
      %v2733 = vadd.f32 %v2508, %v2732
      %v2734 = vpop.f32.mrb[0].mxu0
      %2735 = vmatprep.mubr.f32.mxu0 0.0
      %2736 = vmatmul.mubr.f32.gmra.mrb[0].mxu0 %v1773
      %v2737 = vpop.f32.mrb[0].mxu0
      %v2738 = vadd.f32 %v2513, %v2737
      %v2739 = vpop.f32.mrb[0].mxu0
      %2740 = vmatprep.mubr.f32.mxu0 0.0
      %2741 = vmatmul.mubr.f32.gmra.mrb[0].mxu0 %v1776
      %v2742 = vpop.f32.mrb[0].mxu0
      %v2743 = vadd.f32 %v2518, %v2742
      %v2744 = vpop.f32.mrb[0].mxu0
      %2745 = vmatprep.mubr.f32.mxu0 0.0
      %2746 = vmatmul.mubr.f32.gmra.mrb[0].mxu0 %v1779
      %v2747 = vpop.f32.mrb[0].mxu0
      %v2748 = vadd.f32 %v2523, %v2747
      %v2749 = vpop.f32.mrb[0].mxu0
      %2750 = vmatprep.mubr.f32.mxu0 0.0
      %2751 = vmatmul.mubr.f32.gmra.mrb[0].mxu0 %v1782
      %v2752 = vpop.f32.mrb[0].mxu0
      %v2753 = vadd.f32 %v2528, %v2752
      %v2754 = vpop.f32.mrb[0].mxu0
      %2755 = vmatprep.mubr.f32.mxu0 0.0
      %2756 = vmatmul.mubr.f32.gmra.mrb[0].mxu0 %v1785
      %v2757 = vpop.f32.mrb[0].mxu0
      %v2758 = vadd.f32 %v2533, %v2757
      %v2759 = vpop.f32.mrb[0].mxu0
      %2760 = vmatprep.mubr.f32.mxu0 0.0
      %2761 = vmatmul.mubr.f32.gmra.mrb[0].mxu0 %v1788
      %v2762 = vpop.f32.mrb[0].mxu0
      %v2763 = vadd.f32 %v2538, %v2762
      %v2764 = vpop.f32.mrb[0].mxu0
      %2765 = vmatprep.mubr.f32.mxu0 0.0
      %2766 = vmatmul.mubr.f32.gmra.mrb[0].mxu0 %v1791
      %v2767 = vpop.f32.mrb[0].mxu0
      %v2768 = vadd.f32 %v2543, %v2767
      %v2769 = vpop.f32.mrb[0].mxu0
      %2770 = vmatprep.mubr.f32.mxu0 0.0
      %2771 = vmatmul.mubr.f32.gmra.mrb[0].mxu0 %v1794
      %v2772 = vpop.f32.mrb[0].mxu0
      %v2773 = vadd.f32 %v2548, %v2772
      %v2774 = vpop.f32.mrb[0].mxu0
      %2775 = vmatprep.mubr.f32.mxu0 0.0
      %2776 = vmatmul.mubr.f32.gmra.mrb[0].mxu0 %v1797
      %v2777 = vpop.f32.mrb[0].mxu0
      %v2778 = vadd.f32 %v2553, %v2777
      %v2779 = vpop.f32.mrb[0].mxu0
      %2780 = vmatprep.mubr.f32.mxu0 0.0
      %2781 = vmatmul.mubr.f32.gmra.mrb[0].mxu0 %v1800
      %v2782 = vpop.f32.mrb[0].mxu0
      %v2783 = vadd.f32 %v2558, %v2782
      %v2784 = vpop.f32.mrb[0].mxu0
      %2785 = vmatprep.mubr.f32.mxu0 0.0
      %2786 = vmatmul.mubr.f32.gmra.mrb[0].mxu0 %v1803
      %v2787 = vpop.f32.mrb[0].mxu0
      %v2788 = vadd.f32 %v2563, %v2787
      %v2789 = vpop.f32.mrb[0].mxu0
      %2790 = vmatprep.mubr.f32.mxu0 0.0
      %2791 = vmatmul.mubr.f32.gmra.mrb[0].mxu0 %v1806
      %v2792 = vpop.f32.mrb[0].mxu0
      %v2793 = vadd.f32 %v2568, %v2792
      %v2794 = vpop.f32.mrb[0].mxu0
      %2795 = vmatprep.mubr.f32.mxu0 0.0
      %2796 = vmatmul.mubr.f32.gmra.mrb[0].mxu0 %v1809
      %v2797 = vpop.f32.mrb[0].mxu0
      %v2798 = vadd.f32 %v2573, %v2797
      %v2799 = vpop.f32.mrb[0].mxu0
      %2800 = vmatprep.mubr.f32.mxu0 0.0
      %2801 = vmatmul.mubr.f32.gmra.mrb[0].mxu0 %v1812
      %v2802 = vpop.f32.mrb[0].mxu0
      %v2803 = vadd.f32 %v2578, %v2802
      %v2804 = vpop.f32.mrb[0].mxu0
      %2805 = vmatprep.mubr.f32.mxu0 0.0
      %2806 = vmatmul.mubr.f32.gmra.mrb[0].mxu0 %v1815
      %v2807 = vpop.f32.mrb[0].mxu0
      %v2808 = vadd.f32 %v2583, %v2807
      %v2809 = vpop.f32.mrb[0].mxu0
      %2810 = vmatprep.mubr.f32.mxu0 0.0
      %2811 = vmatmul.mubr.f32.gmra.mrb[0].mxu0 %v1818
      %v2812 = vpop.f32.mrb[0].mxu0
      %v2813 = vadd.f32 %v2588, %v2812
      %v2814 = vpop.f32.mrb[0].mxu0
      %2815 = vmatprep.mubr.f32.mxu0 0.0
      %2816 = vmatmul.mubr.f32.gmra.mrb[0].mxu0 %v1821
      %v2817 = vpop.f32.mrb[0].mxu0
      %v2818 = vadd.f32 %v2593, %v2817
      %v2819 = vpop.f32.mrb[0].mxu0
      %2820 = vmatprep.mubr.f32.mxu0 0.0
      %2821 = vmatmul.mubr.f32.gmra.mrb[0].mxu0 %v1824
      %v2822 = vpop.f32.mrb[0].mxu0
      %v2823 = vadd.f32 %v2598, %v2822
      %v2824 = vpop.f32.mrb[0].mxu0
      %2825 = vmatprep.mubr.f32.mxu0 0.0
      %2826 = vmatmul.mubr.f32.gmra.mrb[0].mxu0 %v1827
      %v2827 = vpop.f32.mrb[0].mxu0
      %v2828 = vadd.f32 %v2603, %v2827
      %v2829 = vpop.f32.mrb[0].mxu0
      %2830 = vdwg.mxu0
      %v2831 = vld [vmem:[#allocation2 + $0x60] sm:$0xff]
      %v2832 = vld [vmem:[#allocation2 + $0x68] sm:$0xff]
      %v2833 = vld [vmem:[#allocation2 + $0x70] sm:$0xff]
      %v2834 = vld [vmem:[#allocation2 + $0x78] sm:$0xff]
      %v2835 = vld [vmem:[#allocation2 + $0x80] sm:$0xff]
      %v2836 = vld [vmem:[#allocation2 + $0x88] sm:$0xff]
      %v2837 = vld [vmem:[#allocation2 + $0x90] sm:$0xff]
      %v2838 = vld [vmem:[#allocation2 + $0x98] sm:$0xff]
      %v2839 = vld [vmem:[#allocation2 + $0xa0] sm:$0xff]
      %v2840 = vld [vmem:[#allocation2 + $0xa8] sm:$0xff]
      %v2841 = vld [vmem:[#allocation2 + $0xb0] sm:$0xff]
      %v2842 = vld [vmem:[#allocation2 + $0xb8] sm:$0xff]
      %v2843 = vld [vmem:[#allocation2 + $0xc0] sm:$0xff]
      %v2844 = vld [vmem:[#allocation2 + $0xc8] sm:$0xff]
      %v2845 = vld [vmem:[#allocation2 + $0xd0] sm:$0xff]
      %v2846 = vld [vmem:[#allocation2 + $0xd8] sm:$0xff]
      %v2847 = vld [vmem:[#allocation2 + $0xe0] sm:$0xff]
      %v2848 = vld [vmem:[#allocation2 + $0xe8] sm:$0xff]
      %v2849 = vld [vmem:[#allocation2 + $0xf0] sm:$0xff]
      %v2850 = vld [vmem:[#allocation2 + $0xf8] sm:$0xff]
      %v2851 = vld [vmem:[#allocation2 + $0x100] sm:$0xff]
      %v2852 = vld [vmem:[#allocation2 + $0x108] sm:$0xff]
      %v2853 = vld [vmem:[#allocation2 + $0x110] sm:$0xff]
      %v2854 = vld [vmem:[#allocation2 + $0x118] sm:$0xff]
      %v2855 = vld [vmem:[#allocation2 + $0x120] sm:$0xff]
      %v2856 = vld [vmem:[#allocation2 + $0x128] sm:$0xff]
      %v2857 = vld [vmem:[#allocation2 + $0x130] sm:$0xff]
      %v2858 = vld [vmem:[#allocation2 + $0x138] sm:$0xff]
      %v2859 = vld [vmem:[#allocation2 + $0x140] sm:$0xff]
      %v2860 = vld [vmem:[#allocation2 + $0x148] sm:$0xff]
      %v2861 = vld [vmem:[#allocation2 + $0x150] sm:$0xff]
      %v2862 = vld [vmem:[#allocation2 + $0x158] sm:$0xff]
      %v2863 = vld [vmem:[#allocation2 + $0x160] sm:$0xff]
      %v2864 = vld [vmem:[#allocation2 + $0x168] sm:$0xff]
      %v2865 = vld [vmem:[#allocation2 + $0x170] sm:$0xff]
      %v2866 = vld [vmem:[#allocation2 + $0x178] sm:$0xff]
      %v2867 = vld [vmem:[#allocation2 + $0x180] sm:$0xff]
      %v2868 = vld [vmem:[#allocation2 + $0x188] sm:$0xff]
      %v2869 = vld [vmem:[#allocation2 + $0x190] sm:$0xff]
      %v2870 = vld [vmem:[#allocation2 + $0x198] sm:$0xff]
      %v2871 = vld [vmem:[#allocation2 + $0x1a0] sm:$0xff]
      %v2872 = vld [vmem:[#allocation2 + $0x1a8] sm:$0xff]
      %v2873 = vld [vmem:[#allocation2 + $0x1b0] sm:$0xff]
      %v2874 = vld [vmem:[#allocation2 + $0x1b8] sm:$0xff]
      %v2875 = vld [vmem:[#allocation2 + $0x1c0] sm:$0xff]
      %v2876 = vld [vmem:[#allocation2 + $0x1c8] sm:$0xff]
      %v2877 = vld [vmem:[#allocation2 + $0x1d0] sm:$0xff]
      %v2878 = vld [vmem:[#allocation2 + $0x1d8] sm:$0xff]
      %v2879 = vld [vmem:[#allocation2 + $0x1e0] sm:$0xff]
      %v2880 = vld [vmem:[#allocation2 + $0x1e8] sm:$0xff]
      %v2881 = vld [vmem:[#allocation2 + $0x1f0] sm:$0xff]
      %v2882 = vld [vmem:[#allocation2 + $0x1f8] sm:$0xff]
      %v2883 = vld [vmem:[#allocation2 + $0x200] sm:$0xff]
      %v2884 = vld [vmem:[#allocation2 + $0x208] sm:$0xff]
      %v2885 = vld [vmem:[#allocation2 + $0x210] sm:$0xff]
      %v2886 = vld [vmem:[#allocation2 + $0x218] sm:$0xff]
      %v2887 = vld [vmem:[#allocation2 + $0x220] sm:$0xff]
      %v2888 = vld [vmem:[#allocation2 + $0x228] sm:$0xff]
      %v2889 = vld [vmem:[#allocation2 + $0x230] sm:$0xff]
      %v2890 = vld [vmem:[#allocation2 + $0x238] sm:$0xff]
      %v2891 = vld [vmem:[#allocation2 + $0x240] sm:$0xff]
      %v2892 = vld [vmem:[#allocation2 + $0x248] sm:$0xff]
      %v2893 = vld [vmem:[#allocation2 + $0x250] sm:$0xff]
      %v2894 = vld [vmem:[#allocation2 + $0x258] sm:$0xff]
      %v2895 = vld [vmem:[#allocation2 + $0x260] sm:$0xff]
      %v2896 = vld [vmem:[#allocation2 + $0x268] sm:$0xff]
      %v2897 = vld [vmem:[#allocation2 + $0x270] sm:$0xff]
      %v2898 = vld [vmem:[#allocation2 + $0x278] sm:$0xff]
      %v2899 = vld [vmem:[#allocation2 + $0x280] sm:$0xff]
      %v2900 = vld [vmem:[#allocation2 + $0x288] sm:$0xff]
      %v2901 = vld [vmem:[#allocation2 + $0x290] sm:$0xff]
      %v2902 = vld [vmem:[#allocation2 + $0x298] sm:$0xff]
      %v2903 = vld [vmem:[#allocation2 + $0x2a0] sm:$0xff]
      %v2904 = vld [vmem:[#allocation2 + $0x2a8] sm:$0xff]
      %v2905 = vld [vmem:[#allocation2 + $0x2b0] sm:$0xff]
      %v2906 = vld [vmem:[#allocation2 + $0x2b8] sm:$0xff]
      %v2907 = vld [vmem:[#allocation2 + $0x2c0] sm:$0xff]
      %v2908 = vld [vmem:[#allocation2 + $0x2c8] sm:$0xff]
      %v2909 = vld [vmem:[#allocation2 + $0x2d0] sm:$0xff]
      %v2910 = vld [vmem:[#allocation2 + $0x2d8] sm:$0xff]
      %v2911 = vld [vmem:[#allocation2 + $0x2e0] sm:$0xff]
      %v2912 = vld [vmem:[#allocation2 + $0x2e8] sm:$0xff]
      %v2913 = vld [vmem:[#allocation2 + $0x2f0] sm:$0xff]
      %v2914 = vld [vmem:[#allocation2 + $0x2f8] sm:$0xff]
      %v2915 = vld [vmem:[#allocation2 + $0x300] sm:$0xff]
      %v2916 = vld [vmem:[#allocation2 + $0x308] sm:$0xff]
      %v2917 = vld [vmem:[#allocation2 + $0x310] sm:$0xff]
      %v2918 = vld [vmem:[#allocation2 + $0x318] sm:$0xff]
      %v2919 = vld [vmem:[#allocation2 + $0x320] sm:$0xff]
      %v2920 = vld [vmem:[#allocation2 + $0x328] sm:$0xff]
      %v2921 = vld [vmem:[#allocation2 + $0x330] sm:$0xff]
      %v2922 = vld [vmem:[#allocation2 + $0x338] sm:$0xff]
      %v2923 = vld [vmem:[#allocation2 + $0x340] sm:$0xff]
      %v2924 = vld [vmem:[#allocation2 + $0x348] sm:$0xff]
      %v2925 = vld [vmem:[#allocation2 + $0x350] sm:$0xff]
      %v2926 = vld [vmem:[#allocation2 + $0x358] sm:$0xff]
      %s2927 = scalar_lea.vmem %s4, 768
      %v2928 = vld [vmem:[%s2927] sm:$0xff]
      %v2929 = vld [vmem:[%s2927 + $0x8] sm:$0xff]
      %v2930 = vld [vmem:[%s2927 + $0x10] sm:$0xff]
      %v2931 = vld [vmem:[%s2927 + $0x18] sm:$0xff]
      %v2932 = vld [vmem:[%s2927 + $0x20] sm:$0xff]
      %v2933 = vld [vmem:[%s2927 + $0x28] sm:$0xff]
      %v2934 = vld [vmem:[%s2927 + $0x30] sm:$0xff]
      %v2935 = vld [vmem:[%s2927 + $0x38] sm:$0xff]
      %v2936 = vld [vmem:[%s2927 + $0x40] sm:$0xff]
      %v2937 = vld [vmem:[%s2927 + $0x48] sm:$0xff]
      %v2938 = vld [vmem:[%s2927 + $0x50] sm:$0xff]
      %v2939 = vld [vmem:[%s2927 + $0x58] sm:$0xff]
      %v2940 = vld [vmem:[%s2927 + $0x60] sm:$0xff]
      %v2941 = vld [vmem:[%s2927 + $0x68] sm:$0xff]
      %v2942 = vld [vmem:[%s2927 + $0x70] sm:$0xff]
      %v2943 = vld [vmem:[%s2927 + $0x78] sm:$0xff]
      %v2944 = vld [vmem:[%s2927 + $0x80] sm:$0xff]
      %v2945 = vld [vmem:[%s2927 + $0x88] sm:$0xff]
      %v2946 = vld [vmem:[%s2927 + $0x90] sm:$0xff]
      %v2947 = vld [vmem:[%s2927 + $0x98] sm:$0xff]
      %v2948 = vld [vmem:[%s2927 + $0xa0] sm:$0xff]
      %v2949 = vld [vmem:[%s2927 + $0xa8] sm:$0xff]
      %v2950 = vld [vmem:[%s2927 + $0xb0] sm:$0xff]
      %v2951 = vld [vmem:[%s2927 + $0xb8] sm:$0xff]
      %v2952 = vld [vmem:[%s2927 + $0xc0] sm:$0xff]
      %v2953 = vld [vmem:[%s2927 + $0xc8] sm:$0xff]
      %v2954 = vld [vmem:[%s2927 + $0xd0] sm:$0xff]
      %v2955 = vld [vmem:[%s2927 + $0xd8] sm:$0xff]
      %v2956 = vld [vmem:[%s2927 + $0xe0] sm:$0xff]
      %v2957 = vld [vmem:[%s2927 + $0xe8] sm:$0xff]
      %v2958 = vld [vmem:[%s2927 + $0xf0] sm:$0xff]
      %v2959 = vld [vmem:[%s2927 + $0xf8] sm:$0xff]
      %v2960 = vld [vmem:[%s2927 + $0x100] sm:$0xff]
      %v2961 = vld [vmem:[%s2927 + $0x108] sm:$0xff]
      %v2962 = vld [vmem:[%s2927 + $0x110] sm:$0xff]
      %v2963 = vld [vmem:[%s2927 + $0x118] sm:$0xff]
      %v2964 = vld [vmem:[%s2927 + $0x120] sm:$0xff]
      %v2965 = vld [vmem:[%s2927 + $0x128] sm:$0xff]
      %v2966 = vld [vmem:[%s2927 + $0x130] sm:$0xff]
      %v2967 = vld [vmem:[%s2927 + $0x138] sm:$0xff]
      %v2968 = vld [vmem:[%s2927 + $0x140] sm:$0xff]
      %v2969 = vld [vmem:[%s2927 + $0x148] sm:$0xff]
      %v2970 = vld [vmem:[%s2927 + $0x150] sm:$0xff]
      %v2971 = vld [vmem:[%s2927 + $0x158] sm:$0xff]
      %v2972 = vld [vmem:[%s2927 + $0x160] sm:$0xff]
      %v2973 = vld [vmem:[%s2927 + $0x168] sm:$0xff]
      %v2974 = vld [vmem:[%s2927 + $0x170] sm:$0xff]
      %v2975 = vld [vmem:[%s2927 + $0x178] sm:$0xff]
      %2976 = vmatprep.subr.mxu0 0.0
      %2977 = vmatpush1.msra.mxu0 %v2928
      %2978 = vmatprep.subr.mxu0 0.0
      %2979 = vmatpush1.msra.mxu0 %v2929
      %2980 = vmatprep.subr.mxu0 0.0
      %2981 = vmatpush1.msra.mxu0 %v2930
      %2982 = vmatprep.subr.mxu0 0.0
      %2983 = vmatpush1.msra.mxu0 %v2931
      %2984 = vmatprep.subr.mxu0 0.0
      %2985 = vmatpush1.msra.mxu0 %v2932
      %2986 = vmatprep.subr.mxu0 0.0
      %2987 = vmatpush1.msra.mxu0 %v2933
      %2988 = vmatprep.subr.mxu0 0.0
      %2989 = vmatpush1.msra.mxu0 %v2934
      %2990 = vmatprep.subr.mxu0 0.0
      %2991 = vmatpush1.msra.mxu0 %v2935
      %2992 = vmatprep.subr.mxu0 0.0
      %2993 = vmatpush1.msra.mxu0 %v2936
      %2994 = vmatprep.subr.mxu0 0.0
      %2995 = vmatpush1.msra.mxu0 %v2937
      %2996 = vmatprep.subr.mxu0 0.0
      %2997 = vmatpush1.msra.mxu0 %v2938
      %2998 = vmatprep.subr.mxu0 0.0
      %2999 = vmatpush1.msra.mxu0 %v2939
      %3000 = vmatprep.subr.mxu0 0.0
      %3001 = vmatpush1.msra.mxu0 %v2940
      %3002 = vmatprep.subr.mxu0 0.0
      %3003 = vmatpush1.msra.mxu0 %v2941
      %3004 = vmatprep.subr.mxu0 0.0
      %3005 = vmatpush1.msra.mxu0 %v2942
      %3006 = vmatprep.subr.mxu0 0.0
      %3007 = vmatpush1.msra.mxu0 %v2943
      %3008 = vmatprep.subr.mxu0 0.0
      %3009 = vmatpush1.msra.mxu0 %v2944
      %3010 = vmatprep.subr.mxu0 0.0
      %3011 = vmatpush1.msra.mxu0 %v2945
      %3012 = vmatprep.subr.mxu0 0.0
      %3013 = vmatpush1.msra.mxu0 %v2946
      %3014 = vmatprep.subr.mxu0 0.0
      %3015 = vmatpush1.msra.mxu0 %v2947
      %3016 = vmatprep.subr.mxu0 0.0
      %3017 = vmatpush1.msra.mxu0 %v2948
      %3018 = vmatprep.subr.mxu0 0.0
      %3019 = vmatpush1.msra.mxu0 %v2949
      %3020 = vmatprep.subr.mxu0 0.0
      %3021 = vmatpush1.msra.mxu0 %v2950
      %3022 = vmatprep.subr.mxu0 0.0
      %3023 = vmatpush1.msra.mxu0 %v2951
      %3024 = vmatprep.subr.mxu0 0.0
      %3025 = vmatpush1.msra.mxu0 %v2952
      %3026 = vmatprep.subr.mxu0 0.0
      %3027 = vmatpush1.msra.mxu0 %v2953
      %3028 = vmatprep.subr.mxu0 0.0
      %3029 = vmatpush1.msra.mxu0 %v2954
      %3030 = vmatprep.subr.mxu0 0.0
      %3031 = vmatpush1.msra.mxu0 %v2955
      %3032 = vmatprep.subr.mxu0 0.0
      %3033 = vmatpush1.msra.mxu0 %v2956
      %3034 = vmatprep.subr.mxu0 0.0
      %3035 = vmatpush1.msra.mxu0 %v2957
      %3036 = vmatprep.subr.mxu0 0.0
      %3037 = vmatpush1.msra.mxu0 %v2958
      %3038 = vmatprep.subr.mxu0 0.0
      %3039 = vmatpush1.msra.mxu0 %v2959
      %3040 = vmatprep.mubr.f32.mxu0 %v2832
      %3041 = vmatmul.mubr.f32.gmra.mrb[0].mxu0 %v2831
      %v3042 = vpop.f32.mrb[0].mxu0
      %v3043 = vadd.f32 0.0, %v3042
      %v3044 = vpop.f32.mrb[0].mxu0
      %3045 = vmatprep.mubr.f32.mxu0 %v2835
      %3046 = vmatmul.mubr.f32.gmra.mrb[0].mxu0 %v2834
      %v3047 = vpop.f32.mrb[0].mxu0
      %v3048 = vadd.f32 0.0, %v3047
      %v3049 = vpop.f32.mrb[0].mxu0
      %3050 = vmatprep.mubr.f32.mxu0 %v2838
      %3051 = vmatmul.mubr.f32.gmra.mrb[0].mxu0 %v2837
      %v3052 = vpop.f32.mrb[0].mxu0
      %v3053 = vadd.f32 0.0, %v3052
      %v3054 = vpop.f32.mrb[0].mxu0
      %3055 = vmatprep.mubr.f32.mxu0 %v2841
      %3056 = vmatmul.mubr.f32.gmra.mrb[0].mxu0 %v2840
      %v3057 = vpop.f32.mrb[0].mxu0
      %v3058 = vadd.f32 0.0, %v3057
      %v3059 = vpop.f32.mrb[0].mxu0
      %3060 = vmatprep.mubr.f32.mxu0 %v2844
      %3061 = vmatmul.mubr.f32.gmra.mrb[0].mxu0 %v2843
      %v3062 = vpop.f32.mrb[0].mxu0
      %v3063 = vadd.f32 0.0, %v3062
      %v3064 = vpop.f32.mrb[0].mxu0
      %3065 = vmatprep.mubr.f32.mxu0 %v2847
      %3066 = vmatmul.mubr.f32.gmra.mrb[0].mxu0 %v2846
      %v3067 = vpop.f32.mrb[0].mxu0
      %v3068 = vadd.f32 0.0, %v3067
      %v3069 = vpop.f32.mrb[0].mxu0
      %3070 = vmatprep.mubr.f32.mxu0 %v2850
      %3071 = vmatmul.mubr.f32.gmra.mrb[0].mxu0 %v2849
      %v3072 = vpop.f32.mrb[0].mxu0
      %v3073 = vadd.f32 0.0, %v3072
      %v3074 = vpop.f32.mrb[0].mxu0
      %3075 = vmatprep.mubr.f32.mxu0 %v2853
      %3076 = vmatmul.mubr.f32.gmra.mrb[0].mxu0 %v2852
      %v3077 = vpop.f32.mrb[0].mxu0
      %v3078 = vadd.f32 0.0, %v3077
      %v3079 = vpop.f32.mrb[0].mxu0
      %3080 = vmatprep.mubr.f32.mxu0 %v2856
      %3081 = vmatmul.mubr.f32.gmra.mrb[0].mxu0 %v2855
      %v3082 = vpop.f32.mrb[0].mxu0
      %v3083 = vadd.f32 0.0, %v3082
      %v3084 = vpop.f32.mrb[0].mxu0
      %3085 = vmatprep.mubr.f32.mxu0 %v2859
      %3086 = vmatmul.mubr.f32.gmra.mrb[0].mxu0 %v2858
      %v3087 = vpop.f32.mrb[0].mxu0
      %v3088 = vadd.f32 0.0, %v3087
      %v3089 = vpop.f32.mrb[0].mxu0
      %3090 = vmatprep.mubr.f32.mxu0 %v2862
      %3091 = vmatmul.mubr.f32.gmra.mrb[0].mxu0 %v2861
      %v3092 = vpop.f32.mrb[0].mxu0
      %v3093 = vadd.f32 0.0, %v3092
      %v3094 = vpop.f32.mrb[0].mxu0
      %3095 = vmatprep.mubr.f32.mxu0 %v2865
      %3096 = vmatmul.mubr.f32.gmra.mrb[0].mxu0 %v2864
      %v3097 = vpop.f32.mrb[0].mxu0
      %v3098 = vadd.f32 0.0, %v3097
      %v3099 = vpop.f32.mrb[0].mxu0
      %3100 = vmatprep.mubr.f32.mxu0 %v2868
      %3101 = vmatmul.mubr.f32.gmra.mrb[0].mxu0 %v2867
      %v3102 = vpop.f32.mrb[0].mxu0
      %v3103 = vadd.f32 0.0, %v3102
      %v3104 = vpop.f32.mrb[0].mxu0
      %3105 = vmatprep.mubr.f32.mxu0 %v2871
      %3106 = vmatmul.mubr.f32.gmra.mrb[0].mxu0 %v2870
      %v3107 = vpop.f32.mrb[0].mxu0
      %v3108 = vadd.f32 0.0, %v3107
      %v3109 = vpop.f32.mrb[0].mxu0
      %3110 = vmatprep.mubr.f32.mxu0 %v2874
      %3111 = vmatmul.mubr.f32.gmra.mrb[0].mxu0 %v2873
      %v3112 = vpop.f32.mrb[0].mxu0
      %v3113 = vadd.f32 0.0, %v3112
      %v3114 = vpop.f32.mrb[0].mxu0
      %3115 = vmatprep.mubr.f32.mxu0 %v2877
      %3116 = vmatmul.mubr.f32.gmra.mrb[0].mxu0 %v2876
      %v3117 = vpop.f32.mrb[0].mxu0
      %v3118 = vadd.f32 0.0, %v3117
      %v3119 = vpop.f32.mrb[0].mxu0
      %3120 = vmatprep.mubr.f32.mxu0 %v2880
      %3121 = vmatmul.mubr.f32.gmra.mrb[0].mxu0 %v2879
      %v3122 = vpop.f32.mrb[0].mxu0
      %v3123 = vadd.f32 0.0, %v3122
      %v3124 = vpop.f32.mrb[0].mxu0
      %3125 = vmatprep.mubr.f32.mxu0 %v2883
      %3126 = vmatmul.mubr.f32.gmra.mrb[0].mxu0 %v2882
      %v3127 = vpop.f32.mrb[0].mxu0
      %v3128 = vadd.f32 0.0, %v3127
      %v3129 = vpop.f32.mrb[0].mxu0
      %3130 = vmatprep.mubr.f32.mxu0 %v2886
      %3131 = vmatmul.mubr.f32.gmra.mrb[0].mxu0 %v2885
      %v3132 = vpop.f32.mrb[0].mxu0
      %v3133 = vadd.f32 0.0, %v3132
      %v3134 = vpop.f32.mrb[0].mxu0
      %3135 = vmatprep.mubr.f32.mxu0 %v2889
      %3136 = vmatmul.mubr.f32.gmra.mrb[0].mxu0 %v2888
      %v3137 = vpop.f32.mrb[0].mxu0
      %v3138 = vadd.f32 0.0, %v3137
      %v3139 = vpop.f32.mrb[0].mxu0
      %3140 = vmatprep.mubr.f32.mxu0 %v2892
      %3141 = vmatmul.mubr.f32.gmra.mrb[0].mxu0 %v2891
      %v3142 = vpop.f32.mrb[0].mxu0
      %v3143 = vadd.f32 0.0, %v3142
      %v3144 = vpop.f32.mrb[0].mxu0
      %3145 = vmatprep.mubr.f32.mxu0 %v2895
      %3146 = vmatmul.mubr.f32.gmra.mrb[0].mxu0 %v2894
      %v3147 = vpop.f32.mrb[0].mxu0
      %v3148 = vadd.f32 0.0, %v3147
      %v3149 = vpop.f32.mrb[0].mxu0
      %3150 = vmatprep.mubr.f32.mxu0 %v2898
      %3151 = vmatmul.mubr.f32.gmra.mrb[0].mxu0 %v2897
      %v3152 = vpop.f32.mrb[0].mxu0
      %v3153 = vadd.f32 0.0, %v3152
      %v3154 = vpop.f32.mrb[0].mxu0
      %3155 = vmatprep.mubr.f32.mxu0 %v2901
      %3156 = vmatmul.mubr.f32.gmra.mrb[0].mxu0 %v2900
      %v3157 = vpop.f32.mrb[0].mxu0
      %v3158 = vadd.f32 0.0, %v3157
      %v3159 = vpop.f32.mrb[0].mxu0
      %3160 = vmatprep.mubr.f32.mxu0 %v2904
      %3161 = vmatmul.mubr.f32.gmra.mrb[0].mxu0 %v2903
      %v3162 = vpop.f32.mrb[0].mxu0
      %v3163 = vadd.f32 0.0, %v3162
      %v3164 = vpop.f32.mrb[0].mxu0
      %3165 = vmatprep.mubr.f32.mxu0 %v2907
      %3166 = vmatmul.mubr.f32.gmra.mrb[0].mxu0 %v2906
      %v3167 = vpop.f32.mrb[0].mxu0
      %v3168 = vadd.f32 0.0, %v3167
      %v3169 = vpop.f32.mrb[0].mxu0
      %3170 = vmatprep.mubr.f32.mxu0 %v2910
      %3171 = vmatmul.mubr.f32.gmra.mrb[0].mxu0 %v2909
      %v3172 = vpop.f32.mrb[0].mxu0
      %v3173 = vadd.f32 0.0, %v3172
      %v3174 = vpop.f32.mrb[0].mxu0
      %3175 = vmatprep.mubr.f32.mxu0 %v2913
      %3176 = vmatmul.mubr.f32.gmra.mrb[0].mxu0 %v2912
      %v3177 = vpop.f32.mrb[0].mxu0
      %v3178 = vadd.f32 0.0, %v3177
      %v3179 = vpop.f32.mrb[0].mxu0
      %3180 = vmatprep.mubr.f32.mxu0 %v2916
      %3181 = vmatmul.mubr.f32.gmra.mrb[0].mxu0 %v2915
      %v3182 = vpop.f32.mrb[0].mxu0
      %v3183 = vadd.f32 0.0, %v3182
      %v3184 = vpop.f32.mrb[0].mxu0
      %3185 = vmatprep.mubr.f32.mxu0 %v2919
      %3186 = vmatmul.mubr.f32.gmra.mrb[0].mxu0 %v2918
      %v3187 = vpop.f32.mrb[0].mxu0
      %v3188 = vadd.f32 0.0, %v3187
      %v3189 = vpop.f32.mrb[0].mxu0
      %3190 = vmatprep.mubr.f32.mxu0 %v2922
      %3191 = vmatmul.mubr.f32.gmra.mrb[0].mxu0 %v2921
      %v3192 = vpop.f32.mrb[0].mxu0
      %v3193 = vadd.f32 0.0, %v3192
      %v3194 = vpop.f32.mrb[0].mxu0
      %3195 = vmatprep.mubr.f32.mxu0 %v2925
      %3196 = vmatmul.mubr.f32.gmra.mrb[0].mxu0 %v2924
      %v3197 = vpop.f32.mrb[0].mxu0
      %v3198 = vadd.f32 0.0, %v3197
      %v3199 = vpop.f32.mrb[0].mxu0
      %3200 = vdwg.mxu0
      %3201 = vmatprep.subr.mxu0 0.0
      %3202 = vmatpush1.msra.mxu0 %v2960
      %3203 = vmatprep.subr.mxu0 0.0
      %3204 = vmatpush1.msra.mxu0 %v2961
      %3205 = vmatprep.subr.mxu0 0.0
      %3206 = vmatpush1.msra.mxu0 %v2962
      %3207 = vmatprep.subr.mxu0 0.0
      %3208 = vmatpush1.msra.mxu0 %v2963
      %3209 = vmatprep.subr.mxu0 0.0
      %3210 = vmatpush1.msra.mxu0 %v2964
      %3211 = vmatprep.subr.mxu0 0.0
      %3212 = vmatpush1.msra.mxu0 %v2965
      %3213 = vmatprep.subr.mxu0 0.0
      %3214 = vmatpush1.msra.mxu0 %v2966
      %3215 = vmatprep.subr.mxu0 0.0
      %3216 = vmatpush1.msra.mxu0 %v2967
      %3217 = vmatprep.subr.mxu0 0.0
      %3218 = vmatpush1.msra.mxu0 %v2968
      %3219 = vmatprep.subr.mxu0 0.0
      %3220 = vmatpush1.msra.mxu0 %v2969
      %3221 = vmatprep.subr.mxu0 0.0
      %3222 = vmatpush1.msra.mxu0 %v2970
      %3223 = vmatprep.subr.mxu0 0.0
      %3224 = vmatpush1.msra.mxu0 %v2971
      %3225 = vmatprep.subr.mxu0 0.0
      %3226 = vmatpush1.msra.mxu0 %v2972
      %3227 = vmatprep.subr.mxu0 0.0
      %3228 = vmatpush1.msra.mxu0 %v2973
      %3229 = vmatprep.subr.mxu0 0.0
      %3230 = vmatpush1.msra.mxu0 %v2974
      %3231 = vmatprep.subr.mxu0 0.0
      %3232 = vmatpush1.msra.mxu0 %v2975
      %3233 = vmatprep.subr.mxu0 0.0
      %3234 = vmatpush1.msra.mxu0 0.0
      %3235 = vmatprep.subr.mxu0 0.0
      %3236 = vmatpush1.msra.mxu0 0.0
      %3237 = vmatprep.subr.mxu0 0.0
      %3238 = vmatpush1.msra.mxu0 0.0
      %3239 = vmatprep.subr.mxu0 0.0
      %3240 = vmatpush1.msra.mxu0 0.0
      %3241 = vmatprep.subr.mxu0 0.0
      %3242 = vmatpush1.msra.mxu0 0.0
      %3243 = vmatprep.subr.mxu0 0.0
      %3244 = vmatpush1.msra.mxu0 0.0
      %3245 = vmatprep.subr.mxu0 0.0
      %3246 = vmatpush1.msra.mxu0 0.0
      %3247 = vmatprep.subr.mxu0 0.0
      %3248 = vmatpush1.msra.mxu0 0.0
      %3249 = vmatprep.subr.mxu0 0.0
      %3250 = vmatpush1.msra.mxu0 0.0
      %3251 = vmatprep.subr.mxu0 0.0
      %3252 = vmatpush1.msra.mxu0 0.0
      %3253 = vmatprep.subr.mxu0 0.0
      %3254 = vmatpush1.msra.mxu0 0.0
      %3255 = vmatprep.subr.mxu0 0.0
      %3256 = vmatpush1.msra.mxu0 0.0
      %3257 = vmatprep.subr.mxu0 0.0
      %3258 = vmatpush1.msra.mxu0 0.0
      %3259 = vmatprep.subr.mxu0 0.0
      %3260 = vmatpush1.msra.mxu0 0.0
      %3261 = vmatprep.subr.mxu0 0.0
      %3262 = vmatpush1.msra.mxu0 0.0
      %3263 = vmatprep.subr.mxu0 0.0
      %3264 = vmatpush1.msra.mxu0 0.0
      %3265 = vmatprep.mubr.f32.mxu0 0.0
      %3266 = vmatmul.mubr.f32.gmra.mrb[0].mxu0 %v2833
      %v3267 = vpop.f32.mrb[0].mxu0
      %v3268 = vadd.f32 %v3043, %v3267
      %v3269 = vpop.f32.mrb[0].mxu0
      %3270 = vmatprep.mubr.f32.mxu0 0.0
      %3271 = vmatmul.mubr.f32.gmra.mrb[0].mxu0 %v2836
      %v3272 = vpop.f32.mrb[0].mxu0
      %v3273 = vadd.f32 %v3048, %v3272
      %v3274 = vpop.f32.mrb[0].mxu0
      %3275 = vmatprep.mubr.f32.mxu0 0.0
      %3276 = vmatmul.mubr.f32.gmra.mrb[0].mxu0 %v2839
      %v3277 = vpop.f32.mrb[0].mxu0
      %v3278 = vadd.f32 %v3053, %v3277
      %v3279 = vpop.f32.mrb[0].mxu0
      %3280 = vmatprep.mubr.f32.mxu0 0.0
      %3281 = vmatmul.mubr.f32.gmra.mrb[0].mxu0 %v2842
      %v3282 = vpop.f32.mrb[0].mxu0
      %v3283 = vadd.f32 %v3058, %v3282
      %v3284 = vpop.f32.mrb[0].mxu0
      %3285 = vmatprep.mubr.f32.mxu0 0.0
      %3286 = vmatmul.mubr.f32.gmra.mrb[0].mxu0 %v2845
      %v3287 = vpop.f32.mrb[0].mxu0
      %v3288 = vadd.f32 %v3063, %v3287
      %v3289 = vpop.f32.mrb[0].mxu0
      %3290 = vmatprep.mubr.f32.mxu0 0.0
      %3291 = vmatmul.mubr.f32.gmra.mrb[0].mxu0 %v2848
      %v3292 = vpop.f32.mrb[0].mxu0
      %v3293 = vadd.f32 %v3068, %v3292
      %v3294 = vpop.f32.mrb[0].mxu0
      %3295 = vmatprep.mubr.f32.mxu0 0.0
      %3296 = vmatmul.mubr.f32.gmra.mrb[0].mxu0 %v2851
      %v3297 = vpop.f32.mrb[0].mxu0
      %v3298 = vadd.f32 %v3073, %v3297
      %v3299 = vpop.f32.mrb[0].mxu0
      %3300 = vmatprep.mubr.f32.mxu0 0.0
      %3301 = vmatmul.mubr.f32.gmra.mrb[0].mxu0 %v2854
      %v3302 = vpop.f32.mrb[0].mxu0
      %v3303 = vadd.f32 %v3078, %v3302
      %v3304 = vpop.f32.mrb[0].mxu0
      %3305 = vmatprep.mubr.f32.mxu0 0.0
      %3306 = vmatmul.mubr.f32.gmra.mrb[0].mxu0 %v2857
      %v3307 = vpop.f32.mrb[0].mxu0
      %v3308 = vadd.f32 %v3083, %v3307
      %v3309 = vpop.f32.mrb[0].mxu0
      %3310 = vmatprep.mubr.f32.mxu0 0.0
      %3311 = vmatmul.mubr.f32.gmra.mrb[0].mxu0 %v2860
      %v3312 = vpop.f32.mrb[0].mxu0
      %v3313 = vadd.f32 %v3088, %v3312
      %v3314 = vpop.f32.mrb[0].mxu0
      %3315 = vmatprep.mubr.f32.mxu0 0.0
      %3316 = vmatmul.mubr.f32.gmra.mrb[0].mxu0 %v2863
      %v3317 = vpop.f32.mrb[0].mxu0
      %v3318 = vadd.f32 %v3093, %v3317
      %v3319 = vpop.f32.mrb[0].mxu0
      %3320 = vmatprep.mubr.f32.mxu0 0.0
      %3321 = vmatmul.mubr.f32.gmra.mrb[0].mxu0 %v2866
      %v3322 = vpop.f32.mrb[0].mxu0
      %v3323 = vadd.f32 %v3098, %v3322
      %v3324 = vpop.f32.mrb[0].mxu0
      %3325 = vmatprep.mubr.f32.mxu0 0.0
      %3326 = vmatmul.mubr.f32.gmra.mrb[0].mxu0 %v2869
      %v3327 = vpop.f32.mrb[0].mxu0
      %v3328 = vadd.f32 %v3103, %v3327
      %v3329 = vpop.f32.mrb[0].mxu0
      %3330 = vmatprep.mubr.f32.mxu0 0.0
      %3331 = vmatmul.mubr.f32.gmra.mrb[0].mxu0 %v2872
      %v3332 = vpop.f32.mrb[0].mxu0
      %v3333 = vadd.f32 %v3108, %v3332
      %v3334 = vpop.f32.mrb[0].mxu0
      %3335 = vmatprep.mubr.f32.mxu0 0.0
      %3336 = vmatmul.mubr.f32.gmra.mrb[0].mxu0 %v2875
      %v3337 = vpop.f32.mrb[0].mxu0
      %v3338 = vadd.f32 %v3113, %v3337
      %v3339 = vpop.f32.mrb[0].mxu0
      %3340 = vmatprep.mubr.f32.mxu0 0.0
      %3341 = vmatmul.mubr.f32.gmra.mrb[0].mxu0 %v2878
      %v3342 = vpop.f32.mrb[0].mxu0
      %v3343 = vadd.f32 %v3118, %v3342
      %v3344 = vpop.f32.mrb[0].mxu0
      %3345 = vmatprep.mubr.f32.mxu0 0.0
      %3346 = vmatmul.mubr.f32.gmra.mrb[0].mxu0 %v2881
      %v3347 = vpop.f32.mrb[0].mxu0
      %v3348 = vadd.f32 %v3123, %v3347
      %v3349 = vpop.f32.mrb[0].mxu0
      %3350 = vmatprep.mubr.f32.mxu0 0.0
      %3351 = vmatmul.mubr.f32.gmra.mrb[0].mxu0 %v2884
      %v3352 = vpop.f32.mrb[0].mxu0
      %v3353 = vadd.f32 %v3128, %v3352
      %v3354 = vpop.f32.mrb[0].mxu0
      %3355 = vmatprep.mubr.f32.mxu0 0.0
      %3356 = vmatmul.mubr.f32.gmra.mrb[0].mxu0 %v2887
      %v3357 = vpop.f32.mrb[0].mxu0
      %v3358 = vadd.f32 %v3133, %v3357
      %v3359 = vpop.f32.mrb[0].mxu0
      %3360 = vmatprep.mubr.f32.mxu0 0.0
      %3361 = vmatmul.mubr.f32.gmra.mrb[0].mxu0 %v2890
      %v3362 = vpop.f32.mrb[0].mxu0
      %v3363 = vadd.f32 %v3138, %v3362
      %v3364 = vpop.f32.mrb[0].mxu0
      %3365 = vmatprep.mubr.f32.mxu0 0.0
      %3366 = vmatmul.mubr.f32.gmra.mrb[0].mxu0 %v2893
      %v3367 = vpop.f32.mrb[0].mxu0
      %v3368 = vadd.f32 %v3143, %v3367
      %v3369 = vpop.f32.mrb[0].mxu0
      %3370 = vmatprep.mubr.f32.mxu0 0.0
      %3371 = vmatmul.mubr.f32.gmra.mrb[0].mxu0 %v2896
      %v3372 = vpop.f32.mrb[0].mxu0
      %v3373 = vadd.f32 %v3148, %v3372
      %v3374 = vpop.f32.mrb[0].mxu0
      %3375 = vmatprep.mubr.f32.mxu0 0.0
      %3376 = vmatmul.mubr.f32.gmra.mrb[0].mxu0 %v2899
      %v3377 = vpop.f32.mrb[0].mxu0
      %v3378 = vadd.f32 %v3153, %v3377
      %v3379 = vpop.f32.mrb[0].mxu0
      %3380 = vmatprep.mubr.f32.mxu0 0.0
      %3381 = vmatmul.mubr.f32.gmra.mrb[0].mxu0 %v2902
      %v3382 = vpop.f32.mrb[0].mxu0
      %v3383 = vadd.f32 %v3158, %v3382
      %v3384 = vpop.f32.mrb[0].mxu0
      %3385 = vmatprep.mubr.f32.mxu0 0.0
      %3386 = vmatmul.mubr.f32.gmra.mrb[0].mxu0 %v2905
      %v3387 = vpop.f32.mrb[0].mxu0
      %v3388 = vadd.f32 %v3163, %v3387
      %v3389 = vpop.f32.mrb[0].mxu0
      %3390 = vmatprep.mubr.f32.mxu0 0.0
      %3391 = vmatmul.mubr.f32.gmra.mrb[0].mxu0 %v2908
      %v3392 = vpop.f32.mrb[0].mxu0
      %v3393 = vadd.f32 %v3168, %v3392
      %v3394 = vpop.f32.mrb[0].mxu0
      %3395 = vmatprep.mubr.f32.mxu0 0.0
      %3396 = vmatmul.mubr.f32.gmra.mrb[0].mxu0 %v2911
      %v3397 = vpop.f32.mrb[0].mxu0
      %v3398 = vadd.f32 %v3173, %v3397
      %v3399 = vpop.f32.mrb[0].mxu0
      %3400 = vmatprep.mubr.f32.mxu0 0.0
      %3401 = vmatmul.mubr.f32.gmra.mrb[0].mxu0 %v2914
      %v3402 = vpop.f32.mrb[0].mxu0
      %v3403 = vadd.f32 %v3178, %v3402
      %v3404 = vpop.f32.mrb[0].mxu0
      %3405 = vmatprep.mubr.f32.mxu0 0.0
      %3406 = vmatmul.mubr.f32.gmra.mrb[0].mxu0 %v2917
      %v3407 = vpop.f32.mrb[0].mxu0
      %v3408 = vadd.f32 %v3183, %v3407
      %v3409 = vpop.f32.mrb[0].mxu0
      %3410 = vmatprep.mubr.f32.mxu0 0.0
      %3411 = vmatmul.mubr.f32.gmra.mrb[0].mxu0 %v2920
      %v3412 = vpop.f32.mrb[0].mxu0
      %v3413 = vadd.f32 %v3188, %v3412
      %v3414 = vpop.f32.mrb[0].mxu0
      %3415 = vmatprep.mubr.f32.mxu0 0.0
      %3416 = vmatmul.mubr.f32.gmra.mrb[0].mxu0 %v2923
      %v3417 = vpop.f32.mrb[0].mxu0
      %v3418 = vadd.f32 %v3193, %v3417
      %v3419 = vpop.f32.mrb[0].mxu0
      %3420 = vmatprep.mubr.f32.mxu0 0.0
      %3421 = vmatmul.mubr.f32.gmra.mrb[0].mxu0 %v2926
      %v3422 = vpop.f32.mrb[0].mxu0
      %v3423 = vadd.f32 %v3198, %v3422
      %v3424 = vpop.f32.mrb[0].mxu0
      %3425 = vdwg.mxu0
      %v3426 = vadd.f32 %v2673, %v3268
      %v3427 = vadd.f32 %v2678, %v3273
      %v3428 = vadd.f32 %v2683, %v3278
      %v3429 = vadd.f32 %v2688, %v3283
      %v3430 = vadd.f32 %v2693, %v3288
      %v3431 = vadd.f32 %v2698, %v3293
      %v3432 = vadd.f32 %v2703, %v3298
      %v3433 = vadd.f32 %v2708, %v3303
      %v3434 = vadd.f32 %v2713, %v3308
      %v3435 = vadd.f32 %v2718, %v3313
      %v3436 = vadd.f32 %v2723, %v3318
      %v3437 = vadd.f32 %v2728, %v3323
      %v3438 = vadd.f32 %v2733, %v3328
      %v3439 = vadd.f32 %v2738, %v3333
      %v3440 = vadd.f32 %v2743, %v3338
      %v3441 = vadd.f32 %v2748, %v3343
      %v3442 = vadd.f32 %v2753, %v3348
      %v3443 = vadd.f32 %v2758, %v3353
      %v3444 = vadd.f32 %v2763, %v3358
      %v3445 = vadd.f32 %v2768, %v3363
      %v3446 = vadd.f32 %v2773, %v3368
      %v3447 = vadd.f32 %v2778, %v3373
      %v3448 = vadd.f32 %v2783, %v3378
      %v3449 = vadd.f32 %v2788, %v3383
      %v3450 = vadd.f32 %v2793, %v3388
      %v3451 = vadd.f32 %v2798, %v3393
      %v3452 = vadd.f32 %v2803, %v3398
      %v3453 = vadd.f32 %v2808, %v3403
      %v3454 = vadd.f32 %v2813, %v3408
      %v3455 = vadd.f32 %v2818, %v3413
      %v3456 = vadd.f32 %v2823, %v3418
      %v3457 = vadd.f32 %v2828, %v3423
      %3458 = vst [vmem:[%s321] sm:$0xff] %v3426
      %3459 = vst [vmem:[%s321 + $0x8] sm:$0xff] %v3427
      %3460 = vst [vmem:[%s321 + $0x10] sm:$0xff] %v3428
      %3461 = vst [vmem:[%s321 + $0x18] sm:$0xff] %v3429
      %3462 = vst [vmem:[%s321 + $0x20] sm:$0xff] %v3430
      %3463 = vst [vmem:[%s321 + $0x28] sm:$0xff] %v3431
      %3464 = vst [vmem:[%s321 + $0x30] sm:$0xff] %v3432
      %3465 = vst [vmem:[%s321 + $0x38] sm:$0xff] %v3433
      %3466 = vst [vmem:[%s321 + $0x40] sm:$0xff] %v3434
      %3467 = vst [vmem:[%s321 + $0x48] sm:$0xff] %v3435
      %3468 = vst [vmem:[%s321 + $0x50] sm:$0xff] %v3436
      %3469 = vst [vmem:[%s321 + $0x58] sm:$0xff] %v3437
      %3470 = vst [vmem:[%s321 + $0x60] sm:$0xff] %v3438
      %3471 = vst [vmem:[%s321 + $0x68] sm:$0xff] %v3439
      %3472 = vst [vmem:[%s321 + $0x70] sm:$0xff] %v3440
      %3473 = vst [vmem:[%s321 + $0x78] sm:$0xff] %v3441
      %3474 = vst [vmem:[%s321 + $0x80] sm:$0xff] %v3442
      %3475 = vst [vmem:[%s321 + $0x88] sm:$0xff] %v3443
      %3476 = vst [vmem:[%s321 + $0x90] sm:$0xff] %v3444
      %3477 = vst [vmem:[%s321 + $0x98] sm:$0xff] %v3445
      %3478 = vst [vmem:[%s321 + $0xa0] sm:$0xff] %v3446
      %3479 = vst [vmem:[%s321 + $0xa8] sm:$0xff] %v3447
      %3480 = vst [vmem:[%s321 + $0xb0] sm:$0xff] %v3448
      %3481 = vst [vmem:[%s321 + $0xb8] sm:$0xff] %v3449
      %3482 = vst [vmem:[%s321 + $0xc0] sm:$0xff] %v3450
      %3483 = vst [vmem:[%s321 + $0xc8] sm:$0xff] %v3451
      %3484 = vst [vmem:[%s321 + $0xd0] sm:$0xff] %v3452
      %3485 = vst [vmem:[%s321 + $0xd8] sm:$0xff] %v3453
      %3486 = vst [vmem:[%s321 + $0xe0] sm:$0xff] %v3454
      %3487 = vst [vmem:[%s321 + $0xe8] sm:$0xff] %v3455
      %3488 = vst [vmem:[%s321 + $0xf0] sm:$0xff] %v3456
      %3489 = vst [vmem:[%s321 + $0xf8] sm:$0xff] %v3457
      %v3490 = vld [vmem:[%s328] sm:$0x1]
      %v3491 = vadd.f32 %v3426, %v3427
      %v3492 = vadd.f32 %v3491, %v3428
      %v3493 = vadd.f32 %v3492, %v3429
      %v3494 = vadd.f32 %v3493, %v3430
      %v3495 = vadd.f32 %v3494, %v3431
      %v3496 = vadd.f32 %v3495, %v3432
      %v3497 = vadd.f32 %v3496, %v3433
      %v3498 = vadd.f32 %v3497, %v3434
      %v3499 = vadd.f32 %v3498, %v3435
      %v3500 = vadd.f32 %v3499, %v3436
      %v3501 = vadd.f32 %v3500, %v3437
      %v3502 = vadd.f32 %v3501, %v3438
      %v3503 = vadd.f32 %v3502, %v3439
      %v3504 = vadd.f32 %v3503, %v3440
      %v3505 = vadd.f32 %v3504, %v3441
      %v3506 = vadd.f32 %v3505, %v3442
      %v3507 = vadd.f32 %v3506, %v3443
      %v3508 = vadd.f32 %v3507, %v3444
      %v3509 = vadd.f32 %v3508, %v3445
      %v3510 = vadd.f32 %v3509, %v3446
      %v3511 = vadd.f32 %v3510, %v3447
      %v3512 = vadd.f32 %v3511, %v3448
      %v3513 = vadd.f32 %v3512, %v3449
      %v3514 = vadd.f32 %v3513, %v3450
      %v3515 = vadd.f32 %v3514, %v3451
      %v3516 = vadd.f32 %v3515, %v3452
      %v3517 = vadd.f32 %v3516, %v3453
      %v3518 = vadd.f32 %v3517, %v3454
      %v3519 = vadd.f32 %v3518, %v3455
      %v3520 = vadd.f32 %v3519, %v3456
      %v3521 = vadd.f32 %v3520, %v3457
      %v3522 = vrot.slane %v3521, 4
      %v3523 = vadd.f32 %v3521, %v3522
      %v3524 = vrot.slane %v3523, 2
      %v3525 = vadd.f32 %v3523, %v3524
      %v3526 = vrot.slane %v3525, 1
      %v3527 = vadd.f32 %v3525, %v3526
      %v3528 = vadd.f32 %v3490, %v3527
      %3529 = vst [vmem:[%s328] sm:$0x1] %v3528
      %v3530 = vld [vmem:[%s328 + $0x1] sm:$0x1]
      %v3531 = vmul.f32 %v3426, %v3426
      %v3532 = vmul.f32 %v3427, %v3427
      %v3533 = vmul.f32 %v3428, %v3428
      %v3534 = vmul.f32 %v3429, %v3429
      %v3535 = vmul.f32 %v3430, %v3430
      %v3536 = vmul.f32 %v3431, %v3431
      %v3537 = vmul.f32 %v3432, %v3432
      %v3538 = vmul.f32 %v3433, %v3433
      %v3539 = vmul.f32 %v3434, %v3434
      %v3540 = vmul.f32 %v3435, %v3435
      %v3541 = vmul.f32 %v3436, %v3436
      %v3542 = vmul.f32 %v3437, %v3437
      %v3543 = vmul.f32 %v3438, %v3438
      %v3544 = vmul.f32 %v3439, %v3439
      %v3545 = vmul.f32 %v3440, %v3440
      %v3546 = vmul.f32 %v3441, %v3441
      %v3547 = vmul.f32 %v3442, %v3442
      %v3548 = vmul.f32 %v3443, %v3443
      %v3549 = vmul.f32 %v3444, %v3444
      %v3550 = vmul.f32 %v3445, %v3445
      %v3551 = vmul.f32 %v3446, %v3446
      %v3552 = vmul.f32 %v3447, %v3447
      %v3553 = vmul.f32 %v3448, %v3448
      %v3554 = vmul.f32 %v3449, %v3449
      %v3555 = vmul.f32 %v3450, %v3450
      %v3556 = vmul.f32 %v3451, %v3451
      %v3557 = vmul.f32 %v3452, %v3452
      %v3558 = vmul.f32 %v3453, %v3453
      %v3559 = vmul.f32 %v3454, %v3454
      %v3560 = vmul.f32 %v3455, %v3455
      %v3561 = vmul.f32 %v3456, %v3456
      %v3562 = vmul.f32 %v3457, %v3457
      %v3563 = vadd.f32 %v3531, %v3532
      %v3564 = vadd.f32 %v3563, %v3533
      %v3565 = vadd.f32 %v3564, %v3534
      %v3566 = vadd.f32 %v3565, %v3535
      %v3567 = vadd.f32 %v3566, %v3536
      %v3568 = vadd.f32 %v3567, %v3537
      %v3569 = vadd.f32 %v3568, %v3538
      %v3570 = vadd.f32 %v3569, %v3539
      %v3571 = vadd.f32 %v3570, %v3540
      %v3572 = vadd.f32 %v3571, %v3541
      %v3573 = vadd.f32 %v3572, %v3542
      %v3574 = vadd.f32 %v3573, %v3543
      %v3575 = vadd.f32 %v3574, %v3544
      %v3576 = vadd.f32 %v3575, %v3545
      %v3577 = vadd.f32 %v3576, %v3546
      %v3578 = vadd.f32 %v3577, %v3547
      %v3579 = vadd.f32 %v3578, %v3548
      %v3580 = vadd.f32 %v3579, %v3549
      %v3581 = vadd.f32 %v3580, %v3550
      %v3582 = vadd.f32 %v3581, %v3551
      %v3583 = vadd.f32 %v3582, %v3552
      %v3584 = vadd.f32 %v3583, %v3553
      %v3585 = vadd.f32 %v3584, %v3554
      %v3586 = vadd.f32 %v3585, %v3555
      %v3587 = vadd.f32 %v3586, %v3556
      %v3588 = vadd.f32 %v3587, %v3557
      %v3589 = vadd.f32 %v3588, %v3558
      %v3590 = vadd.f32 %v3589, %v3559
      %v3591 = vadd.f32 %v3590, %v3560
      %v3592 = vadd.f32 %v3591, %v3561
      %v3593 = vadd.f32 %v3592, %v3562
      %v3594 = vrot.slane %v3593, 4
      %v3595 = vadd.f32 %v3593, %v3594
      %v3596 = vrot.slane %v3595, 2
      %v3597 = vadd.f32 %v3595, %v3596
      %v3598 = vrot.slane %v3597, 1
      %v3599 = vadd.f32 %v3597, %v3598
      %v3600 = vadd.f32 %v3530, %v3599
      %3601 = vst [vmem:[%s328 + $0x1] sm:$0x1] %v3600
      %s3602 = smul.u32 %s23, 2
      %s3603 = sadd.s32 %s3602, %s24
      %s3604 = smul.u32 32, %s3603
      %p3605 = scmp.lt.s32.totalorder %s3604, 127
      %s3606 = scalar_select %p3605, %s3604, 127
      %s3607 = smul.addr %s3606, 8
      %s3608 = scalar_lea.vmem %s6, %s3607
      %p3609 = scmp.lt.s32.totalorder %s23, 1
      %s3610 = scalar_select %p3609, %s23, 1
      %s3611 = smul.addr %s3610, 8
      %s3612 = scalar_lea.vmem %s7, %s3611
      // Predicated region
      $region49: #{bottleneck_forward.4} parent=43 // pred_check
        %p3613 = pneg %p188
      $region50: #{bottleneck_forward.4} parent=43 // pred_check_branch
        %3615 = sbr.rel (%p3613) target = $region52
      $region51: #{bottleneck_forward.4} parent=43 // pred_region
        %s3616 = smul.u32 %s23, 2
        %s3617 = sadd.s32 %s3616, %s24
        %s3618 = smul.u32 32, %s3617
      $region52: #{bottleneck_forward.4} parent=43 // pred_fallthru
        _
      // Predicated region
      $region53: #{bottleneck_forward.4} parent=43 // pred_check
        %p3619 = pneg %p214
      $region54: #{bottleneck_forward.4} parent=43 // pred_check_branch
        %3621 = sbr.rel (%p3619) target = $region56
      $region55: #{bottleneck_forward.4} parent=43 // pred_region
        _
      $region56: #{bottleneck_forward.4} parent=43 // pred_fallthru
        _
    $region44: #{bottleneck_forward.4} parent=5 // pred_fallthru
      _
    %p3622 = scmp.le.s32.totalorder 2, %s14
    // Predicated region
    $region57: #{bottleneck_forward.4} parent=5 // pred_check
      %p3623 = pneg %p3622
    $region58: #{bottleneck_forward.4} parent=5 // pred_check_branch
      %3625 = sbr.rel (%p3623) target = $region60
    $region59: #{bottleneck_forward.4} parent=5 // pred_region
      %s3626 = ssub.s32 %s14, 2
      // Predicated region
      $region61: #{bottleneck_forward.4} parent=59 // pred_check
        %p3627 = pneg %p194
      $region62: #{bottleneck_forward.4} parent=59 // pred_check_branch
        %3629 = sbr.rel (%p3627) target = $region64
      $region63: #{bottleneck_forward.4} parent=59 // pred_region
        %s3630 = smul.u32 %s25, 2
        %s3631 = sadd.s32 %s3630, %s26
        %s3632 = smul.u32 32, %s3631
        %p3633 = scmp.lt.s32.totalorder %s3632, 127
        %s3634 = scalar_select %p3633, %s3632, 127
        %s3635 = smul.addr %s3634, 8
        %s3636 = scalar_lea.vmem %s6, %s3635
      $region64: #{bottleneck_forward.4} parent=59 // pred_fallthru
        _
      // Predicated region
      $region65: #{bottleneck_forward.4} parent=59 // pred_check
        %p3637 = pneg %p220
      $region66: #{bottleneck_forward.4} parent=59 // pred_check_branch
        %3639 = sbr.rel (%p3637) target = $region68
      $region67: #{bottleneck_forward.4} parent=59 // pred_region
        %p3640 = scmp.lt.s32.totalorder %s25, 1
        %s3641 = scalar_select %p3640, %s25, 1
        %s3642 = smul.addr %s3641, 8
        %s3643 = scalar_lea.vmem %s7, %s3642
      $region68: #{bottleneck_forward.4} parent=59 // pred_fallthru
        _
    $region60: #{bottleneck_forward.4} parent=5 // pred_fallthru
      _
  $region6: #{bottleneck_forward.4} parent=0 // loop_footer
    %s18 = sadd.s32 1, %s14
  $region7: #{bottleneck_forward.4} parent=0 // loop_footer_branch
    %13 = sbr.rel target = $region3
  $region8: #{bottleneck_forward.4} parent=0 // loop_exit
    _

</llo_original>
